<compile_context>
chip_gen: v5e
topology: v5e:2x2
jax: 0.10.0
libtpu: 0.0.40
codegen_flags: <defaults>
</compile_context>

<pallas_src>
import functools

import numpy as np
import jax
import jax.numpy as jnp
from jax import lax
from jax.experimental import pallas as pl
from jax.experimental.pallas import tpu as pltpu

# ---------------------------------------------------------------------------
# "opt" defaults (small, consistent with the module)
# ---------------------------------------------------------------------------
DIM = 3
N_POINTS = 128          # opt.num_point (N == M for the demo)
N_KEYPOINTS = 8         # opt.n_keypoints == token_l
BOTTLENECK = 32         # opt.bottleneck_size
TOKEN_C = 16            # opt.token_c
ICO_DIV = 1             # opt.ico_sphere_div  -> 42 cage vertices, 80 faces
CAGE_SIZE = 1.4         # opt.cage_size
BALL_R = 0.2            # opt.ball_r
N_INFLUENCE_RATIO = 1.0 # opt.n_influence_ratio
CAGE_OPT_DIST = 0.4     # optimize_cage(distance=0.4, iters=100, step=0.01)
CAGE_OPT_ITERS = 100
CAGE_OPT_STEP = 0.01
CAGE_OPT_UNROLL = 5     # manual unroll factor (divides CAGE_OPT_ITERS)
NEG_SLOPE = 0.01        # LeakyReLU slope used by the custom Linear('lrelu')
LANES = 128


# ---------------------------------------------------------------------------
# Cage template (pytorch3d.utils.ico_sphere replacement, pure numpy)
# ---------------------------------------------------------------------------
def icosphere(level=1):
    t = (1.0 + 5.0 ** 0.5) / 2.0
    verts = np.array(
        [[-1, t, 0], [1, t, 0], [-1, -t, 0], [1, -t, 0],
         [0, -1, t], [0, 1, t], [0, -1, -t], [0, 1, -t],
         [t, 0, -1], [t, 0, 1], [-t, 0, -1], [-t, 0, 1]], dtype=np.float64)
    verts /= np.linalg.norm(verts, axis=1, keepdims=True)
    faces = np.array(
        [[0, 11, 5], [0, 5, 1], [0, 1, 7], [0, 7, 10], [0, 10, 11],
         [1, 5, 9], [5, 11, 4], [11, 10, 2], [10, 7, 6], [7, 1, 8],
         [3, 9, 4], [3, 4, 2], [3, 2, 6], [3, 6, 8], [3, 8, 9],
         [4, 9, 5], [2, 4, 11], [6, 2, 10], [8, 6, 7], [9, 8, 1]],
        dtype=np.int32)
    for _ in range(level):
        verts_list = list(verts)
        edge_map = {}
        new_faces = []

        def midpoint(a, b):
            key = (min(a, b), max(a, b))
            if key in edge_map:
                return edge_map[key]
            m = (verts_list[a] + verts_list[b]) / 2.0
            m = m / np.linalg.norm(m)
            verts_list.append(m)
            edge_map[key] = len(verts_list) - 1
            return edge_map[key]

        for a, b, c in faces:
            ab, bc, ca = midpoint(a, b), midpoint(b, c), midpoint(c, a)
            new_faces += [[a, ab, ca], [b, bc, ab], [c, ca, bc], [ab, bc, ca]]
        verts = np.array(verts_list)
        faces = np.array(new_faces, dtype=np.int32)
    return verts.astype(np.float32), faces


def normalize_to_box(v):
    vmin, vmax = v.min(0), v.max(0)
    center = (vmin + vmax) / 2.0
    scale = (vmax - vmin).max() / 2.0
    return (v - center) / scale


def _round_up(x, m):
    return ((x + m - 1) // m) * m


def _lrelu(x):
    return jnp.where(x >= 0, x, NEG_SLOPE * x)


# ---------------------------------------------------------------------------
# Packed parameter slab layout: each entry -> (row0, col0, rows, cols)
# ---------------------------------------------------------------------------
def _param_layout(c):
    h, k, ct = BOTTLENECK, N_KEYPOINTS, TOKEN_C
    layout = {}
    row = [0]

    def block(entries):
        col, height = 0, 0
        for name, r, cc in entries:
            layout[name] = (row[0], col, r, cc)
            col += cc
            height = max(height, r)
        assert col <= LANES
        row[0] += height

    block([("kp_w1", h, 3), ("kp_b1", h, 1), ("kp_w2", h, h), ("kp_b2", h, 1)])
    block([("kp_w3", 3 * k, h), ("kp_b3", 3 * k, 1), ("kp_b3_row", 1, 3 * k)])
    block([("tok_w", ct, 3), ("tok_b", ct, 1)])
    block([("inf_w1_tok", c, ct), ("inf_w1_eye", c, k), ("inf_b1", c, 1),
           ("influence_param", c, k), ("cage_template", c, 3)])
    block([("inf_w2", c, c), ("inf_b2", c, 1)])
    block([("inf_w3", c, c), ("inf_b3", c, 1)])
    return layout, _round_up(row[0], 8)


def _batch_block(b):
    # v7x: 2 TensorCores/chip -> keep the size-B "parallel" grid (free 2x split of
    # the dominant serial loop).  Single-TC chips (v5e/v6e): fold the whole batch
    # into one grid step so the 100-iteration cage loop runs once, not B times.
    try:
        kind = jax.devices()[0].device_kind.lower()
    except Exception:
        kind = ""
    if ("v7" in kind or "7x" in kind) and b > 1:
        return 1
    return b


# ---------------------------------------------------------------------------
# Fused CageSkinning kernel: one grid step == one batch block of `bb` elements
# ---------------------------------------------------------------------------
def _cage_skinning_kernel(src_ref, tgt_ref, prm_ref,
                          small_ref, def_ref, w_ref,
                          *, bb, c, n_influence, layout):
    K, C = N_KEYPOINTS, c
    CAGE_ROW, NEWCAGE_ROW = 6, 6 + C
    INFLM_ROW, INFLOFF_ROW = 6 + 2 * C, 6 + 3 * C

    def P(name):
        r0, c0, r, cc = layout[name]
        return prm_ref[r0:r0 + r, c0:c0 + cc]

    # ---- parameters: one lane-dense slab, static ref slices ------------------
    kp_w1, kp_b1 = P("kp_w1"), P("kp_b1")
    kp_w2, kp_b2 = P("kp_w2"), P("kp_b2")
    kp_w3, kp_b3, kp_b3_row = P("kp_w3"), P("kp_b3"), P("kp_b3_row")
    tok_w, tok_b = P("tok_w"), P("tok_b")
    inf_w1t, inf_w1e, inf_b1 = P("inf_w1_tok"), P("inf_w1_eye"), P("inf_b1")
    inf_w2, inf_b2 = P("inf_w2"), P("inf_b2")
    inf_w3, inf_b3 = P("inf_w3"), P("inf_b3")
    inf_param = P("influence_param")
    cage_tmpl = P("cage_template")                               # (C, 3)

    tmpl_cols = [cage_tmpl[:, d:d + 1] for d in range(3)]        # 3 x (C, 1)
    cage_sq0 = (tmpl_cols[0] * tmpl_cols[0] + tmpl_cols[1] * tmpl_cols[1]
                + tmpl_cols[2] * tmpl_cols[2])                   # (C, 1)

    # ---- per-cloud point rows, kept live for the whole kernel ----------------
    src_rows, tgt_rows, src_sq = [], [], []
    for b in range(bb):
        s = src_ref[b]                                           # (3, N)
        t = tgt_ref[b]
        ps = [s[d:d + 1, :] for d in range(3)]
        pt = [t[d:d + 1, :] for d in range(3)]
        src_rows.append(ps)
        tgt_rows.append(pt)
        src_sq.append(ps[0] * ps[0] + ps[1] * ps[1] + ps[2] * ps[2])  # (1, N)

    # ---- keypoint predictor: shared per-point MLP + maxpool, batched head ----
    def pool(prow):
        f = _lrelu(kp_w1[:, 0:1] * prow[0] + kp_w1[:, 1:2] * prow[1]
                   + kp_w1[:, 2:3] * prow[2] + kp_b1)            # (H, N)
        return jnp.max(f, axis=1, keepdims=True)                 # (H, 1)

    g_cols = ([pool(src_rows[b]) for b in range(bb)]
              + [pool(tgt_rows[b]) for b in range(bb)])
    g = jnp.concatenate(g_cols, axis=1)                          # (H, 2*bb)
    hfeat = _lrelu(jnp.dot(kp_w2, g, preferred_element_type=jnp.float32)
                   + kp_b2)                                      # (H, 2*bb)
    # head in both orientations (no in-kernel transpose needed):
    kp_cols = jnp.clip(jnp.dot(kp_w3, hfeat, preferred_element_type=jnp.float32)
                       + kp_b3, -1.0, 1.0)                       # (3K, 2*bb)
    kp_rows = jnp.clip(
        lax.dot_general(hfeat, kp_w3, (((0,), (1,)), ((), ())),
                        preferred_element_type=jnp.float32) + kp_b3_row,
        -1.0, 1.0)                                               # (2*bb, 3K)

    def col_kp(j):
        return [kp_cols[d * K:(d + 1) * K, j:j + 1] for d in range(3)]  # (K,1)x3

    def row_kp(j):
        return [kp_rows[j:j + 1, d * K:(d + 1) * K] for d in range(3)]  # (1,K)x3

    for b in range(bb):
        small_ref[b, 0:3, 0:K] = jnp.concatenate(row_kp(b), axis=0)        # src kp
        small_ref[b, 3:6, 0:K] = jnp.concatenate(row_kp(bb + b), axis=0)   # tgt kp

    # ---- token encoder (simplified YOGO: distance-softmax pooled features) ---
    tok_list = []
    for b in range(bb):
        ps, ps_sq = src_rows[b], src_sq[b]
        skp = col_kp(b)
        pf = _lrelu(tok_w[:, 0:1] * ps[0] + tok_w[:, 1:2] * ps[1]
                    + tok_w[:, 2:3] * ps[2] + tok_b)             # (Ct, N)
        kp_sq = skp[0] * skp[0] + skp[1] * skp[1] + skp[2] * skp[2]   # (K, 1)
        cross = skp[0] * ps[0] + skp[1] * ps[1] + skp[2] * ps[2]      # (K, N)
        logits = -(kp_sq + ps_sq - 2.0 * cross) * (1.0 / (BALL_R * BALL_R))
        m = jnp.max(logits, axis=1, keepdims=True)
        e = jnp.exp(logits - m)
        attn = e * pl.reciprocal(jnp.sum(e, axis=1, keepdims=True), approx=True)
        tok_list.append(lax.dot_general(pf, attn, (((1,), (1,)), ((), ())),
                                        preferred_element_type=jnp.float32))  # (Ct,K)

    # ---- influence decoder, batched across the batch block -------------------
    cat = (lambda xs: xs[0]) if bb == 1 else (lambda xs: jnp.concatenate(xs, axis=1))
    tok_all = cat(tok_list)                                      # (Ct, bb*K)
    bias1_all = cat([inf_w1e + inf_b1] * bb)                     # (C, bb*K)
    h1 = _lrelu(jnp.dot(inf_w1t, tok_all, preferred_element_type=jnp.float32)
                + bias1_all)
    h2 = _lrelu(jnp.dot(inf_w2, h1, preferred_element_type=jnp.float32) + inf_b2)
    off_all = jnp.dot(inf_w3, h2, preferred_element_type=jnp.float32) + inf_b3
    infl_all = cat([inf_param] * bb) + off_all                   # (C, bb*K)

    # ---- optimize_cage: scale-carry rewrite, manually unrolled ---------------
    dist2 = CAGE_OPT_DIST * CAGE_OPT_DIST
    cross0 = [tmpl_cols[0] * src_rows[b][0] + tmpl_cols[1] * src_rows[b][1]
              + tmpl_cols[2] * src_rows[b][2] for b in range(bb)]     # bb x (C, N)

    def cage_body(_, s_tuple):
        for _ in range(CAGE_OPT_UNROLL):
            new_s = []
            for b in range(bb):
                sb = s_tuple[b]
                d2 = ((sb * sb) * cage_sq0 + src_sq[b]
                      - (2.0 * sb) * cross0[b])                  # (C, N)
                mind2 = jnp.min(d2, axis=1, keepdims=True)       # (C, 1)
                upd = (mind2 > dist2).astype(jnp.float32)
                new_s.append(sb * (1.0 - CAGE_OPT_STEP * upd))
            s_tuple = tuple(new_s)
        return s_tuple

    assert CAGE_OPT_ITERS % CAGE_OPT_UNROLL == 0
    s_init = tuple(jnp.ones((C, 1), jnp.float32) for _ in range(bb))
    s_fin = lax.fori_loop(0, CAGE_OPT_ITERS // CAGE_OPT_UNROLL, cage_body, s_init)

    # ---- per-batch epilogue ---------------------------------------------------
    for b in range(bb):
        sb = s_fin[b]
        cage_cols = [sb * tmpl_cols[d] for d in range(3)]        # 3 x (C, 1)
        cage_sq = (sb * sb) * cage_sq0                           # (C, 1)
        cage_tile = sb * cage_tmpl                               # (C, 3)
        small_ref[b, CAGE_ROW:CAGE_ROW + C, 0:3] = cage_tile

        skp_c, tkp_c = col_kp(b), col_kp(bb + b)
        skp_r = row_kp(b)
        off_ck = off_all[:, b * K:(b + 1) * K]                   # (C, K)
        infl_ck = infl_all[:, b * K:(b + 1) * K]
        small_ref[b, INFLOFF_ROW:INFLOFF_ROW + C, 0:K] = off_ck

        # keep the n_influence closest cage vertices per keypoint
        # (iterated-min emulation of torch.topk(..., largest=False); ties rare)
        kp_sq_row = (skp_r[0] * skp_r[0] + skp_r[1] * skp_r[1]
                     + skp_r[2] * skp_r[2])                      # (1, K)
        dkc = (cage_sq + kp_sq_row
               - 2.0 * (cage_cols[0] * skp_r[0] + cage_cols[1] * skp_r[1]
                        + cage_cols[2] * skp_r[2]))              # (C, K)
        vals, thr = dkc, jnp.min(dkc, axis=0, keepdims=True)
        for _ in range(n_influence - 1):
            vals = jnp.where(vals <= thr, jnp.inf, vals)
            thr = jnp.min(vals, axis=0, keepdims=True)
        infl_m = infl_ck * (dkc <= thr).astype(jnp.float32)      # (C, K)
        small_ref[b, INFLM_ROW:INFLM_ROW + C, 0:K] = infl_m

        # new cage = cage + influence @ keypoint offsets (single MXU dot)
        kp_off = jnp.concatenate([tkp_c[d] - skp_c[d] for d in range(3)],
                                 axis=1)                         # (K, 3)
        new_cage = cage_tile + jnp.dot(infl_m, kp_off,
                                       preferred_element_type=jnp.float32)  # (C,3)
        small_ref[b, NEWCAGE_ROW:NEWCAGE_ROW + C, 0:3] = new_cage

        # cage weights + deformed points
        # TODO(synk): deform_with_MVC / mean_value_coordinates_3D (external) not
        # reproduced; normalized inverse-squared-distance cage weights instead.
        ps, ps_sq = src_rows[b], src_sq[b]
        dpc = (cage_sq + ps_sq
               - 2.0 * (cage_cols[0] * ps[0] + cage_cols[1] * ps[1]
                        + cage_cols[2] * ps[2]))                 # (C, N)
        dpc = jnp.maximum(dpc, 0.0) + 1e-6                       # clamp fp cancellation
        winv = pl.reciprocal(dpc, approx=True)
        w_cn = winv * pl.reciprocal(jnp.sum(winv, axis=0, keepdims=True))  # exact norm
        w_ref[b] = w_cn
        def_ref[b] = lax.dot_general(new_cage, w_cn, (((0,), (0,)), ((), ())),
                                     preferred_element_type=jnp.float32)   # (3, N)


def fused_cage_skinning(params, source_shape, target_shape):
    """source_shape/target_shape: (B, 3, N) channel-first."""
    b = source_shape.shape[0]
    c = params["cage_template"].shape[0]
    k, n = N_KEYPOINTS, N_POINTS
    n_influence = max(5, int(c / k * N_INFLUENCE_RATIO))
    layout, prm_rows = _param_layout(c)
    small_rows = _round_up(6 + 4 * c, 8)
    bb = _batch_block(b)
    grid = (b // bb,)

    # pack all tiny parameters into one lane-dense slab (single DMA per step)
    entries = dict(params)
    entries["kp_b3_row"] = jnp.reshape(params["kp_b3"], (1, 3 * k))
    slab = jnp.zeros((prm_rows, LANES), jnp.float32)
    for name, (r0, c0, r, cc) in layout.items():
        slab = slab.at[r0:r0 + r, c0:c0 + cc].set(entries[name])

    kernel = functools.partial(_cage_skinning_kernel, bb=bb, c=c,
                               n_influence=n_influence, layout=layout)

    out_shapes = (
        jax.ShapeDtypeStruct((b, small_rows, LANES), jnp.float32),  # packed smalls
        jax.ShapeDtypeStruct((b, 3, n), jnp.float32),               # deformed (3,N)
        jax.ShapeDtypeStruct((b, c, n), jnp.float32),               # weights (C,N)
    )
    out_specs = (
        pl.BlockSpec((bb, small_rows, LANES), lambda i: (i, 0, 0)),
        pl.BlockSpec((bb, 3, n), lambda i: (i, 0, 0)),
        pl.BlockSpec((bb, c, n), lambda i: (i, 0, 0)),
    )
    in_specs = [
        pl.BlockSpec((bb, 3, n), lambda i: (i, 0, 0)),
        pl.BlockSpec((bb, 3, n), lambda i: (i, 0, 0)),
        pl.BlockSpec((prm_rows, LANES), lambda i: (0, 0)),
    ]
    return pl.pallas_call(
        kernel,
        out_shape=out_shapes,
        grid=grid,
        in_specs=in_specs,
        out_specs=out_specs,
        compiler_params=pltpu.CompilerParams(dimension_semantics=("parallel",)),
    )(source_shape, target_shape, slab)


# ---------------------------------------------------------------------------
# sample_farthest_points (plain JAX glue; sequential data-dependent algorithm)
# ---------------------------------------------------------------------------
def farthest_point_sampling(shape_b3n, n_samples):
    p = jnp.transpose(shape_b3n, (0, 2, 1))                    # (B, N, 3)

    def per_batch(x):
        n = x.shape[0]

        def body(i, state):
            idxs, dists = state
            last = x[idxs[i - 1]]
            d = jnp.sum((x - last) ** 2, axis=-1)
            dists = jnp.minimum(dists, d)
            idxs = idxs.at[i].set(jnp.argmax(dists).astype(jnp.int32))
            return idxs, dists

        idxs0 = jnp.zeros((n_samples,), jnp.int32)
        dists0 = jnp.full((n,), jnp.inf, jnp.float32)
        idxs, _ = lax.fori_loop(1, n_samples, body, (idxs0, dists0))
        return x[idxs]                                         # (n_samples, 3)

    sampled = jax.vmap(per_batch)(p)                           # (B, n_samples, 3)
    return jnp.transpose(sampled, (0, 2, 1))                   # (B, 3, n_samples)


# ---------------------------------------------------------------------------
# Parameters (deterministic synthetic init; influence_param zeros as in torch)
# ---------------------------------------------------------------------------
def init_params(key):
    verts, faces = icosphere(ICO_DIV)                          # (42,3), (80,3)
    verts = normalize_to_box(verts) * CAGE_SIZE
    c = verts.shape[0]
    keys = jax.random.split(key, 8)

    def w(k_, shape, scale=0.1):
        return scale * jax.random.normal(k_, shape, jnp.float32)

    return {
        "cage_template": jnp.asarray(verts, jnp.float32),      # (C, 3)
        "template_faces": jnp.asarray(faces, jnp.int32)[None], # (1, F, 3)
        # keypoint predictor (simplified PointNet + MLP head)
        "kp_w1": w(keys[0], (BOTTLENECK, 3)),
        "kp_b1": jnp.zeros((BOTTLENECK, 1), jnp.float32),
        "kp_w2": w(keys[1], (BOTTLENECK, BOTTLENECK)),
        "kp_b2": jnp.zeros((BOTTLENECK, 1), jnp.float32),
        "kp_w3": w(keys[2], (3 * N_KEYPOINTS, BOTTLENECK)),
        "kp_b3": jnp.zeros((3 * N_KEYPOINTS, 1), jnp.float32),
        # token encoder
        "tok_w": w(keys[3], (TOKEN_C, 3)),
        "tok_b": jnp.zeros((TOKEN_C, 1), jnp.float32),
        # influence decoder (transposed layout (C, in)); the region one-hot
        # embedding part of layer 1 reduces to an additive (C, K) term.
        "inf_w1_tok": w(keys[4], (c, TOKEN_C)),
        "inf_w1_eye": w(keys[5], (c, N_KEYPOINTS)),
        "inf_b1": jnp.zeros((c, 1), jnp.float32),
        "inf_w2": w(keys[6], (c, c)),
        "inf_b2": jnp.zeros((c, 1), jnp.float32),
        "inf_w3": w(keys[7], (c, c)),
        "inf_b3": jnp.zeros((c, 1), jnp.float32),
        "influence_param": jnp.zeros((c, N_KEYPOINTS), jnp.float32),  # (C, K)
    }


# ---------------------------------------------------------------------------
# Full forward (partial_pc=False, cat_target_token=False, no_optimize_cage=False)
# ---------------------------------------------------------------------------
def cage_skinning_forward(params, source_shape, target_shape):
    b = source_shape.shape[0]
    c = params["cage_template"].shape[0]
    k = N_KEYPOINTS
    shape = jnp.concatenate([source_shape, target_shape], axis=0)      # (2B,3,N)

    n_fps = 2 * N_KEYPOINTS
    init_keypoints = farthest_point_sampling(shape, n_fps)             # (2B,3,2K)
    source_init_keypoints = init_keypoints[:b]
    target_init_keypoints = init_keypoints[b:]

    small, deformed_3n, weights_cn = fused_cage_skinning(
        params, source_shape, target_shape)

    skp = small[:, 0:3, 0:k]                                   # (B, 3, K)
    tkp = small[:, 3:6, 0:k]                                   # (B, 3, K)
    cage = small[:, 6:6 + c, 0:3]                              # (B, C, 3)
    new_cage = small[:, 6 + c:6 + 2 * c, 0:3]                  # (B, C, 3)
    inflm = small[:, 6 + 2 * c:6 + 3 * c, 0:k]                 # (B, C, K)
    infloff = small[:, 6 + 3 * c:6 + 4 * c, 0:k]               # (B, C, K)

    return {
        "cage": cage,                                          # (B, C, 3)
        "cage_face": params["template_faces"],                 # (1, F, 3)
        "new_cage": new_cage,                                  # (B, C, 3)
        "deformed": jnp.transpose(deformed_3n, (0, 2, 1)),     # (B, N, 3)
        "weight": jnp.transpose(weights_cn, (0, 2, 1)),        # (B, N, C)
        "influence": jnp.transpose(inflm, (0, 2, 1)),          # (B, K, C)
        "influence_offset": jnp.transpose(infloff, (0, 2, 1)), # (B, K, C)
        "source_keypoints": skp,                               # (B, 3, K)
        "target_keypoints": tkp,                               # (B, 3, K)
        "source_init_keypoints": source_init_keypoints,        # (B, 3, 2K)
        "target_init_keypoints": target_init_keypoints,        # (B, 3, 2K)
    }


# ---------------------------------------------------------------------------
if __name__ == "__main__":
    key = jax.random.PRNGKey(0)
    pkey, skey, tkey = jax.random.split(key, 3)
    params = init_params(pkey)

    B = 2
    source_shape = jax.random.uniform(skey, (B, 3, N_POINTS), jnp.float32,
                                      minval=-0.8, maxval=0.8)
    target_shape = jax.random.uniform(tkey, (B, 3, N_POINTS), jnp.float32,
                                      minval=-0.8, maxval=0.8)

    outputs = jax.jit(cage_skinning_forward)(params, source_shape, target_shape)
    outputs = jax.block_until_ready(outputs)

    C = params["cage_template"].shape[0]
    assert outputs["cage"].shape == (B, C, 3)
    assert outputs["new_cage"].shape == (B, C, 3)
    assert outputs["deformed"].shape == (B, N_POINTS, 3)
    assert outputs["weight"].shape == (B, N_POINTS, C)
    assert outputs["influence"].shape == (B, N_KEYPOINTS, C)
    assert outputs["source_keypoints"].shape == (B, 3, N_KEYPOINTS)
    assert outputs["source_init_keypoints"].shape == (B, 3, 2 * N_KEYPOINTS)
    assert bool(jnp.all(jnp.isfinite(outputs["deformed"])))
    assert bool(jnp.all(jnp.isfinite(outputs["weight"])))
    assert bool(jnp.all(jnp.abs(outputs["source_keypoints"]) <= 1.0))
    # cage weights normalized over C
    assert bool(jnp.allclose(jnp.sum(outputs["weight"], axis=-1), 1.0, atol=1e-4))

    print("KERNEL_OK")
</pallas_src>

<mosaic_0001>
module attributes {stable_mosaic.version = 11 : i64} {
  func.func @_cage_skinning_kernel(%arg0: i32, %arg1: memref<2x3x128xf32, #tpu.memory_space<vmem>>, %arg2: memref<2x3x128xf32, #tpu.memory_space<vmem>>, %arg3: memref<200x128xf32, #tpu.memory_space<vmem>>, %arg4: memref<2x176x128xf32, #tpu.memory_space<vmem>>, %arg5: memref<2x3x128xf32, #tpu.memory_space<vmem>>, %arg6: memref<2x42x128xf32, #tpu.memory_space<vmem>>) attributes {dimension_semantics = [#tpu.dimension_semantics<parallel>], iteration_bounds = array<i64: 1>, scalar_prefetch = 0 : i64, scratch_operands = 0 : i64, tpu.core_type = #tpu.core_type<tc>, window_params = [{transform_indices = @transform_0, window_bounds = array<i64: 2, 3, 128>}, {transform_indices = @transform_1, window_bounds = array<i64: 2, 3, 128>}, {pipeline_mode = #tpu.pipeline_mode<synchronous>, transform_indices = @transform_2, window_bounds = array<i64: 200, 128>}, {transform_indices = @transform_3, window_bounds = array<i64: 2, 176, 128>}, {transform_indices = @transform_4, window_bounds = array<i64: 2, 3, 128>}, {transform_indices = @transform_5, window_bounds = array<i64: 2, 42, 128>}]} {
    %c0 = arith.constant 0 : index
    %c0_0 = arith.constant 0 : index
    %0 = vector.load %arg3[%c0, %c0_0] : memref<200x128xf32, #tpu.memory_space<vmem>>, vector<32x3xf32>
    %c0_1 = arith.constant 0 : index
    %c3 = arith.constant 3 : index
    %1 = vector.load %arg3[%c0_1, %c3] : memref<200x128xf32, #tpu.memory_space<vmem>>, vector<32x1xf32>
    %c0_2 = arith.constant 0 : index
    %c4 = arith.constant 4 : index
    %2 = vector.load %arg3[%c0_2, %c4] : memref<200x128xf32, #tpu.memory_space<vmem>>, vector<32x32xf32>
    %c0_3 = arith.constant 0 : index
    %c36 = arith.constant 36 : index
    %3 = vector.load %arg3[%c0_3, %c36] : memref<200x128xf32, #tpu.memory_space<vmem>>, vector<32x1xf32>
    %c32 = arith.constant 32 : index
    %c0_4 = arith.constant 0 : index
    %4 = vector.load %arg3[%c32, %c0_4] : memref<200x128xf32, #tpu.memory_space<vmem>>, vector<24x32xf32>
    %c32_5 = arith.constant 32 : index
    %c32_6 = arith.constant 32 : index
    %5 = vector.load %arg3[%c32_5, %c32_6] : memref<200x128xf32, #tpu.memory_space<vmem>>, vector<24x1xf32>
    %c32_7 = arith.constant 32 : index
    %c33 = arith.constant 33 : index
    %6 = vector.load %arg3[%c32_7, %c33] : memref<200x128xf32, #tpu.memory_space<vmem>>, vector<1x24xf32>
    %c56 = arith.constant 56 : index
    %c0_8 = arith.constant 0 : index
    %7 = vector.load %arg3[%c56, %c0_8] : memref<200x128xf32, #tpu.memory_space<vmem>>, vector<16x3xf32>
    %c56_9 = arith.constant 56 : index
    %c3_10 = arith.constant 3 : index
    %8 = vector.load %arg3[%c56_9, %c3_10] : memref<200x128xf32, #tpu.memory_space<vmem>>, vector<16x1xf32>
    %c72 = arith.constant 72 : index
    %c0_11 = arith.constant 0 : index
    %9 = vector.load %arg3[%c72, %c0_11] : memref<200x128xf32, #tpu.memory_space<vmem>>, vector<42x16xf32>
    %c72_12 = arith.constant 72 : index
    %c16 = arith.constant 16 : index
    %10 = vector.load %arg3[%c72_12, %c16] : memref<200x128xf32, #tpu.memory_space<vmem>>, vector<42x8xf32>
    %c72_13 = arith.constant 72 : index
    %c24 = arith.constant 24 : index
    %11 = vector.load %arg3[%c72_13, %c24] : memref<200x128xf32, #tpu.memory_space<vmem>>, vector<42x1xf32>
    %c114 = arith.constant 114 : index
    %c0_14 = arith.constant 0 : index
    %12 = vector.load %arg3[%c114, %c0_14] : memref<200x128xf32, #tpu.memory_space<vmem>>, vector<42x42xf32>
    %c114_15 = arith.constant 114 : index
    %c42 = arith.constant 42 : index
    %13 = vector.load %arg3[%c114_15, %c42] : memref<200x128xf32, #tpu.memory_space<vmem>>, vector<42x1xf32>
    %c156 = arith.constant 156 : index
    %c0_16 = arith.constant 0 : index
    %14 = vector.load %arg3[%c156, %c0_16] : memref<200x128xf32, #tpu.memory_space<vmem>>, vector<42x42xf32>
    %c156_17 = arith.constant 156 : index
    %c42_18 = arith.constant 42 : index
    %15 = vector.load %arg3[%c156_17, %c42_18] : memref<200x128xf32, #tpu.memory_space<vmem>>, vector<42x1xf32>
    %c72_19 = arith.constant 72 : index
    %c25 = arith.constant 25 : index
    %16 = vector.load %arg3[%c72_19, %c25] : memref<200x128xf32, #tpu.memory_space<vmem>>, vector<42x8xf32>
    %c72_20 = arith.constant 72 : index
    %c33_21 = arith.constant 33 : index
    %17 = vector.load %arg3[%c72_20, %c33_21] : memref<200x128xf32, #tpu.memory_space<vmem>>, vector<42x3xf32>
    %18 = vector.extract_strided_slice %17 {offsets = [0, 0], sizes = [42, 1], strides = [1, 1]} : vector<42x3xf32> to vector<42x1xf32>
    %19 = vector.extract_strided_slice %17 {offsets = [0, 1], sizes = [42, 1], strides = [1, 1]} : vector<42x3xf32> to vector<42x1xf32>
    %20 = vector.extract_strided_slice %17 {offsets = [0, 2], sizes = [42, 1], strides = [1, 1]} : vector<42x3xf32> to vector<42x1xf32>
    %21 = arith.mulf %18, %18 : vector<42x1xf32>
    %22 = arith.mulf %19, %19 : vector<42x1xf32>
    %23 = arith.addf %21, %22 : vector<42x1xf32>
    %24 = arith.mulf %20, %20 : vector<42x1xf32>
    %25 = arith.addf %23, %24 : vector<42x1xf32>
    %c0_22 = arith.constant 0 : index
    %c0_23 = arith.constant 0 : index
    %c0_24 = arith.constant 0 : index
    %26 = vector.load %arg1[%c0_22, %c0_23, %c0_24] : memref<2x3x128xf32, #tpu.memory_space<vmem>>, vector<1x3x128xf32>
    %27 = vector.shape_cast %26 : vector<1x3x128xf32> to vector<3x128xf32>
    %c0_25 = arith.constant 0 : index
    %c0_26 = arith.constant 0 : index
    %c0_27 = arith.constant 0 : index
    %28 = vector.load %arg2[%c0_25, %c0_26, %c0_27] : memref<2x3x128xf32, #tpu.memory_space<vmem>>, vector<1x3x128xf32>
    %29 = vector.shape_cast %28 : vector<1x3x128xf32> to vector<3x128xf32>
    %30 = vector.extract_strided_slice %27 {offsets = [0, 0], sizes = [1, 128], strides = [1, 1]} : vector<3x128xf32> to vector<1x128xf32>
    %31 = vector.extract_strided_slice %27 {offsets = [1, 0], sizes = [1, 128], strides = [1, 1]} : vector<3x128xf32> to vector<1x128xf32>
    %32 = vector.extract_strided_slice %27 {offsets = [2, 0], sizes = [1, 128], strides = [1, 1]} : vector<3x128xf32> to vector<1x128xf32>
    %33 = vector.extract_strided_slice %29 {offsets = [0, 0], sizes = [1, 128], strides = [1, 1]} : vector<3x128xf32> to vector<1x128xf32>
    %34 = vector.extract_strided_slice %29 {offsets = [1, 0], sizes = [1, 128], strides = [1, 1]} : vector<3x128xf32> to vector<1x128xf32>
    %35 = vector.extract_strided_slice %29 {offsets = [2, 0], sizes = [1, 128], strides = [1, 1]} : vector<3x128xf32> to vector<1x128xf32>
    %36 = arith.mulf %30, %30 : vector<1x128xf32>
    %37 = arith.mulf %31, %31 : vector<1x128xf32>
    %38 = arith.addf %36, %37 : vector<1x128xf32>
    %39 = arith.mulf %32, %32 : vector<1x128xf32>
    %40 = arith.addf %38, %39 : vector<1x128xf32>
    %c1 = arith.constant 1 : index
    %c0_28 = arith.constant 0 : index
    %c0_29 = arith.constant 0 : index
    %41 = vector.load %arg1[%c1, %c0_28, %c0_29] : memref<2x3x128xf32, #tpu.memory_space<vmem>>, vector<1x3x128xf32>
    %42 = vector.shape_cast %41 : vector<1x3x128xf32> to vector<3x128xf32>
    %c1_30 = arith.constant 1 : index
    %c0_31 = arith.constant 0 : index
    %c0_32 = arith.constant 0 : index
    %43 = vector.load %arg2[%c1_30, %c0_31, %c0_32] : memref<2x3x128xf32, #tpu.memory_space<vmem>>, vector<1x3x128xf32>
    %44 = vector.shape_cast %43 : vector<1x3x128xf32> to vector<3x128xf32>
    %45 = vector.extract_strided_slice %42 {offsets = [0, 0], sizes = [1, 128], strides = [1, 1]} : vector<3x128xf32> to vector<1x128xf32>
    %46 = vector.extract_strided_slice %42 {offsets = [1, 0], sizes = [1, 128], strides = [1, 1]} : vector<3x128xf32> to vector<1x128xf32>
    %47 = vector.extract_strided_slice %42 {offsets = [2, 0], sizes = [1, 128], strides = [1, 1]} : vector<3x128xf32> to vector<1x128xf32>
    %48 = vector.extract_strided_slice %44 {offsets = [0, 0], sizes = [1, 128], strides = [1, 1]} : vector<3x128xf32> to vector<1x128xf32>
    %49 = vector.extract_strided_slice %44 {offsets = [1, 0], sizes = [1, 128], strides = [1, 1]} : vector<3x128xf32> to vector<1x128xf32>
    %50 = vector.extract_strided_slice %44 {offsets = [2, 0], sizes = [1, 128], strides = [1, 1]} : vector<3x128xf32> to vector<1x128xf32>
    %51 = arith.mulf %45, %45 : vector<1x128xf32>
    %52 = arith.mulf %46, %46 : vector<1x128xf32>
    %53 = arith.addf %51, %52 : vector<1x128xf32>
    %54 = arith.mulf %47, %47 : vector<1x128xf32>
    %55 = arith.addf %53, %54 : vector<1x128xf32>
    %56 = vector.extract_strided_slice %0 {offsets = [0, 0], sizes = [32, 1], strides = [1, 1]} : vector<32x3xf32> to vector<32x1xf32>
    %57 = vector.broadcast %56 : vector<32x1xf32> to vector<32x128xf32>
    %58 = vector.broadcast %30 : vector<1x128xf32> to vector<32x128xf32>
    %59 = arith.mulf %57, %58 : vector<32x128xf32>
    %60 = vector.extract_strided_slice %0 {offsets = [0, 1], sizes = [32, 1], strides = [1, 1]} : vector<32x3xf32> to vector<32x1xf32>
    %61 = vector.broadcast %60 : vector<32x1xf32> to vector<32x128xf32>
    %62 = vector.broadcast %31 : vector<1x128xf32> to vector<32x128xf32>
    %63 = arith.mulf %61, %62 : vector<32x128xf32>
    %64 = arith.addf %59, %63 : vector<32x128xf32>
    %65 = vector.extract_strided_slice %0 {offsets = [0, 2], sizes = [32, 1], strides = [1, 1]} : vector<32x3xf32> to vector<32x1xf32>
    %66 = vector.broadcast %65 : vector<32x1xf32> to vector<32x128xf32>
    %67 = vector.broadcast %32 : vector<1x128xf32> to vector<32x128xf32>
    %68 = arith.mulf %66, %67 : vector<32x128xf32>
    %69 = arith.addf %64, %68 : vector<32x128xf32>
    %70 = vector.broadcast %1 : vector<32x1xf32> to vector<32x128xf32>
    %71 = arith.addf %69, %70 : vector<32x128xf32>
    %cst = arith.constant 0.000000e+00 : f32
    %72 = vector.broadcast %cst : f32 to vector<32x128xf32>
    %73 = arith.cmpf oge, %71, %72 : vector<32x128xf32>
    %cst_33 = arith.constant 0.00999999977 : f32
    %74 = vector.broadcast %cst_33 : f32 to vector<32x128xf32>
    %75 = arith.mulf %74, %71 : vector<32x128xf32>
    %76 = arith.select %73, %71, %75 : vector<32x128xi1>, vector<32x128xf32>
    %cst_34 = arith.constant dense<0xFF800000> : vector<32xf32>
    %77 = vector.multi_reduction <maximumf>, %76, %cst_34 [1] : vector<32x128xf32> to vector<32xf32>
    %78 = vector.shape_cast %77 : vector<32xf32> to vector<32x1xf32>
    %79 = vector.extract_strided_slice %0 {offsets = [0, 0], sizes = [32, 1], strides = [1, 1]} : vector<32x3xf32> to vector<32x1xf32>
    %80 = vector.broadcast %79 : vector<32x1xf32> to vector<32x128xf32>
    %81 = vector.broadcast %45 : vector<1x128xf32> to vector<32x128xf32>
    %82 = arith.mulf %80, %81 : vector<32x128xf32>
    %83 = vector.extract_strided_slice %0 {offsets = [0, 1], sizes = [32, 1], strides = [1, 1]} : vector<32x3xf32> to vector<32x1xf32>
    %84 = vector.broadcast %83 : vector<32x1xf32> to vector<32x128xf32>
    %85 = vector.broadcast %46 : vector<1x128xf32> to vector<32x128xf32>
    %86 = arith.mulf %84, %85 : vector<32x128xf32>
    %87 = arith.addf %82, %86 : vector<32x128xf32>
    %88 = vector.extract_strided_slice %0 {offsets = [0, 2], sizes = [32, 1], strides = [1, 1]} : vector<32x3xf32> to vector<32x1xf32>
    %89 = vector.broadcast %88 : vector<32x1xf32> to vector<32x128xf32>
    %90 = vector.broadcast %47 : vector<1x128xf32> to vector<32x128xf32>
    %91 = arith.mulf %89, %90 : vector<32x128xf32>
    %92 = arith.addf %87, %91 : vector<32x128xf32>
    %93 = vector.broadcast %1 : vector<32x1xf32> to vector<32x128xf32>
    %94 = arith.addf %92, %93 : vector<32x128xf32>
    %cst_35 = arith.constant 0.000000e+00 : f32
    %95 = vector.broadcast %cst_35 : f32 to vector<32x128xf32>
    %96 = arith.cmpf oge, %94, %95 : vector<32x128xf32>
    %cst_36 = arith.constant 0.00999999977 : f32
    %97 = vector.broadcast %cst_36 : f32 to vector<32x128xf32>
    %98 = arith.mulf %97, %94 : vector<32x128xf32>
    %99 = arith.select %96, %94, %98 : vector<32x128xi1>, vector<32x128xf32>
    %cst_37 = arith.constant dense<0xFF800000> : vector<32xf32>
    %100 = vector.multi_reduction <maximumf>, %99, %cst_37 [1] : vector<32x128xf32> to vector<32xf32>
    %101 = vector.shape_cast %100 : vector<32xf32> to vector<32x1xf32>
    %102 = vector.extract_strided_slice %0 {offsets = [0, 0], sizes = [32, 1], strides = [1, 1]} : vector<32x3xf32> to vector<32x1xf32>
    %103 = vector.broadcast %102 : vector<32x1xf32> to vector<32x128xf32>
    %104 = vector.broadcast %33 : vector<1x128xf32> to vector<32x128xf32>
    %105 = arith.mulf %103, %104 : vector<32x128xf32>
    %106 = vector.extract_strided_slice %0 {offsets = [0, 1], sizes = [32, 1], strides = [1, 1]} : vector<32x3xf32> to vector<32x1xf32>
    %107 = vector.broadcast %106 : vector<32x1xf32> to vector<32x128xf32>
    %108 = vector.broadcast %34 : vector<1x128xf32> to vector<32x128xf32>
    %109 = arith.mulf %107, %108 : vector<32x128xf32>
    %110 = arith.addf %105, %109 : vector<32x128xf32>
    %111 = vector.extract_strided_slice %0 {offsets = [0, 2], sizes = [32, 1], strides = [1, 1]} : vector<32x3xf32> to vector<32x1xf32>
    %112 = vector.broadcast %111 : vector<32x1xf32> to vector<32x128xf32>
    %113 = vector.broadcast %35 : vector<1x128xf32> to vector<32x128xf32>
    %114 = arith.mulf %112, %113 : vector<32x128xf32>
    %115 = arith.addf %110, %114 : vector<32x128xf32>
    %116 = vector.broadcast %1 : vector<32x1xf32> to vector<32x128xf32>
    %117 = arith.addf %115, %116 : vector<32x128xf32>
    %cst_38 = arith.constant 0.000000e+00 : f32
    %118 = vector.broadcast %cst_38 : f32 to vector<32x128xf32>
    %119 = arith.cmpf oge, %117, %118 : vector<32x128xf32>
    %cst_39 = arith.constant 0.00999999977 : f32
    %120 = vector.broadcast %cst_39 : f32 to vector<32x128xf32>
    %121 = arith.mulf %120, %117 : vector<32x128xf32>
    %122 = arith.select %119, %117, %121 : vector<32x128xi1>, vector<32x128xf32>
    %cst_40 = arith.constant dense<0xFF800000> : vector<32xf32>
    %123 = vector.multi_reduction <maximumf>, %122, %cst_40 [1] : vector<32x128xf32> to vector<32xf32>
    %124 = vector.shape_cast %123 : vector<32xf32> to vector<32x1xf32>
    %125 = vector.extract_strided_slice %0 {offsets = [0, 0], sizes = [32, 1], strides = [1, 1]} : vector<32x3xf32> to vector<32x1xf32>
    %126 = vector.broadcast %125 : vector<32x1xf32> to vector<32x128xf32>
    %127 = vector.broadcast %48 : vector<1x128xf32> to vector<32x128xf32>
    %128 = arith.mulf %126, %127 : vector<32x128xf32>
    %129 = vector.extract_strided_slice %0 {offsets = [0, 1], sizes = [32, 1], strides = [1, 1]} : vector<32x3xf32> to vector<32x1xf32>
    %130 = vector.broadcast %129 : vector<32x1xf32> to vector<32x128xf32>
    %131 = vector.broadcast %49 : vector<1x128xf32> to vector<32x128xf32>
    %132 = arith.mulf %130, %131 : vector<32x128xf32>
    %133 = arith.addf %128, %132 : vector<32x128xf32>
    %134 = vector.extract_strided_slice %0 {offsets = [0, 2], sizes = [32, 1], strides = [1, 1]} : vector<32x3xf32> to vector<32x1xf32>
    %135 = vector.broadcast %134 : vector<32x1xf32> to vector<32x128xf32>
    %136 = vector.broadcast %50 : vector<1x128xf32> to vector<32x128xf32>
    %137 = arith.mulf %135, %136 : vector<32x128xf32>
    %138 = arith.addf %133, %137 : vector<32x128xf32>
    %139 = vector.broadcast %1 : vector<32x1xf32> to vector<32x128xf32>
    %140 = arith.addf %138, %139 : vector<32x128xf32>
    %cst_41 = arith.constant 0.000000e+00 : f32
    %141 = vector.broadcast %cst_41 : f32 to vector<32x128xf32>
    %142 = arith.cmpf oge, %140, %141 : vector<32x128xf32>
    %cst_42 = arith.constant 0.00999999977 : f32
    %143 = vector.broadcast %cst_42 : f32 to vector<32x128xf32>
    %144 = arith.mulf %143, %140 : vector<32x128xf32>
    %145 = arith.select %142, %140, %144 : vector<32x128xi1>, vector<32x128xf32>
    %cst_43 = arith.constant dense<0xFF800000> : vector<32xf32>
    %146 = vector.multi_reduction <maximumf>, %145, %cst_43 [1] : vector<32x128xf32> to vector<32xf32>
    %147 = vector.shape_cast %146 : vector<32xf32> to vector<32x1xf32>
    %148 = tpu.concatenate %78, %101, %124, %147 in 1 : vector<32x1xf32>, vector<32x1xf32>, vector<32x1xf32>, vector<32x1xf32> -> vector<32x4xf32>
    %cst_44 = arith.constant dense<0.000000e+00> : vector<32x4xf32>
    %149 = tpu.matmul %2, %148, %cst_44 {dimension_numbers = #tpu.dot_dimension_numbers<[1], [0], [0], [1], [0, 0, 1, 1], [], []>} : vector<32x32xf32>, vector<32x4xf32>, vector<32x4xf32> -> vector<32x4xf32>
    %150 = vector.broadcast %3 : vector<32x1xf32> to vector<32x4xf32>
    %151 = arith.addf %149, %150 : vector<32x4xf32>
    %cst_45 = arith.constant 0.000000e+00 : f32
    %152 = vector.broadcast %cst_45 : f32 to vector<32x4xf32>
    %153 = arith.cmpf oge, %151, %152 : vector<32x4xf32>
    %cst_46 = arith.constant 0.00999999977 : f32
    %154 = vector.broadcast %cst_46 : f32 to vector<32x4xf32>
    %155 = arith.mulf %154, %151 : vector<32x4xf32>
    %156 = arith.select %153, %151, %155 : vector<32x4xi1>, vector<32x4xf32>
    %cst_47 = arith.constant dense<0.000000e+00> : vector<24x4xf32>
    %157 = tpu.matmul %4, %156, %cst_47 {dimension_numbers = #tpu.dot_dimension_numbers<[1], [0], [0], [1], [0, 0, 1, 1], [], []>} : vector<24x32xf32>, vector<32x4xf32>, vector<24x4xf32> -> vector<24x4xf32>
    %158 = vector.broadcast %5 : vector<24x1xf32> to vector<24x4xf32>
    %159 = arith.addf %157, %158 : vector<24x4xf32>
    %cst_48 = arith.constant -1.000000e+00 : f32
    %cst_49 = arith.constant 1.000000e+00 : f32
    %160 = vector.broadcast %cst_48 : f32 to vector<24x4xf32>
    %161 = arith.maximumf %160, %159 : vector<24x4xf32>
    %162 = vector.broadcast %cst_49 : f32 to vector<24x4xf32>
    %163 = arith.minimumf %162, %161 : vector<24x4xf32>
    %cst_50 = arith.constant dense<0.000000e+00> : vector<4x24xf32>
    %164 = tpu.matmul %156, %4, %cst_50 {dimension_numbers = #tpu.dot_dimension_numbers<[0], [1], [1], [0], [0, 1, 1, 0], [], []>} : vector<32x4xf32>, vector<24x32xf32>, vector<4x24xf32> -> vector<4x24xf32>
    %165 = vector.broadcast %6 : vector<1x24xf32> to vector<4x24xf32>
    %166 = arith.addf %164, %165 : vector<4x24xf32>
    %cst_51 = arith.constant -1.000000e+00 : f32
    %cst_52 = arith.constant 1.000000e+00 : f32
    %167 = vector.broadcast %cst_51 : f32 to vector<4x24xf32>
    %168 = arith.maximumf %167, %166 : vector<4x24xf32>
    %169 = vector.broadcast %cst_52 : f32 to vector<4x24xf32>
    %170 = arith.minimumf %169, %168 : vector<4x24xf32>
    %171 = vector.extract_strided_slice %170 {offsets = [0, 0], sizes = [1, 8], strides = [1, 1]} : vector<4x24xf32> to vector<1x8xf32>
    %172 = vector.extract_strided_slice %170 {offsets = [0, 8], sizes = [1, 8], strides = [1, 1]} : vector<4x24xf32> to vector<1x8xf32>
    %173 = vector.extract_strided_slice %170 {offsets = [0, 16], sizes = [1, 8], strides = [1, 1]} : vector<4x24xf32> to vector<1x8xf32>
    %174 = tpu.concatenate %171, %172, %173 in 0 : vector<1x8xf32>, vector<1x8xf32>, vector<1x8xf32> -> vector<3x8xf32>
    %c0_53 = arith.constant 0 : index
    %c0_54 = arith.constant 0 : index
    %c0_55 = arith.constant 0 : index
    %175 = vector.load %arg4[%c0_53, %c0_54, %c0_55] : memref<2x176x128xf32, #tpu.memory_space<vmem>>, vector<1x3x8xf32>
    %176 = vector.shape_cast %175 : vector<1x3x8xf32> to vector<3x8xf32>
    %177 = vector.shape_cast %174 : vector<3x8xf32> to vector<1x3x8xf32>
    tpu.vector_store %arg4[%c0_53, %c0_54, %c0_55], %177 {strides = array<i32>} : memref<2x176x128xf32, #tpu.memory_space<vmem>>, vector<1x3x8xf32>,
    %178 = vector.extract_strided_slice %170 {offsets = [2, 0], sizes = [1, 8], strides = [1, 1]} : vector<4x24xf32> to vector<1x8xf32>
    %179 = vector.extract_strided_slice %170 {offsets = [2, 8], sizes = [1, 8], strides = [1, 1]} : vector<4x24xf32> to vector<1x8xf32>
    %180 = vector.extract_strided_slice %170 {offsets = [2, 16], sizes = [1, 8], strides = [1, 1]} : vector<4x24xf32> to vector<1x8xf32>
    %181 = tpu.concatenate %178, %179, %180 in 0 : vector<1x8xf32>, vector<1x8xf32>, vector<1x8xf32> -> vector<3x8xf32>
    %c0_56 = arith.constant 0 : index
    %c3_57 = arith.constant 3 : index
    %c0_58 = arith.constant 0 : index
    %182 = vector.load %arg4[%c0_56, %c3_57, %c0_58] : memref<2x176x128xf32, #tpu.memory_space<vmem>>, vector<1x3x8xf32>
    %183 = vector.shape_cast %182 : vector<1x3x8xf32> to vector<3x8xf32>
    %184 = vector.shape_cast %181 : vector<3x8xf32> to vector<1x3x8xf32>
    tpu.vector_store %arg4[%c0_56, %c3_57, %c0_58], %184 {strides = array<i32>} : memref<2x176x128xf32, #tpu.memory_space<vmem>>, vector<1x3x8xf32>,
    %185 = vector.extract_strided_slice %170 {offsets = [1, 0], sizes = [1, 8], strides = [1, 1]} : vector<4x24xf32> to vector<1x8xf32>
    %186 = vector.extract_strided_slice %170 {offsets = [1, 8], sizes = [1, 8], strides = [1, 1]} : vector<4x24xf32> to vector<1x8xf32>
    %187 = vector.extract_strided_slice %170 {offsets = [1, 16], sizes = [1, 8], strides = [1, 1]} : vector<4x24xf32> to vector<1x8xf32>
    %188 = tpu.concatenate %185, %186, %187 in 0 : vector<1x8xf32>, vector<1x8xf32>, vector<1x8xf32> -> vector<3x8xf32>
    %c1_59 = arith.constant 1 : index
    %c0_60 = arith.constant 0 : index
    %c0_61 = arith.constant 0 : index
    %189 = vector.load %arg4[%c1_59, %c0_60, %c0_61] : memref<2x176x128xf32, #tpu.memory_space<vmem>>, vector<1x3x8xf32>
    %190 = vector.shape_cast %189 : vector<1x3x8xf32> to vector<3x8xf32>
    %191 = vector.shape_cast %188 : vector<3x8xf32> to vector<1x3x8xf32>
    tpu.vector_store %arg4[%c1_59, %c0_60, %c0_61], %191 {strides = array<i32>} : memref<2x176x128xf32, #tpu.memory_space<vmem>>, vector<1x3x8xf32>,
    %192 = vector.extract_strided_slice %170 {offsets = [3, 0], sizes = [1, 8], strides = [1, 1]} : vector<4x24xf32> to vector<1x8xf32>
    %193 = vector.extract_strided_slice %170 {offsets = [3, 8], sizes = [1, 8], strides = [1, 1]} : vector<4x24xf32> to vector<1x8xf32>
    %194 = vector.extract_strided_slice %170 {offsets = [3, 16], sizes = [1, 8], strides = [1, 1]} : vector<4x24xf32> to vector<1x8xf32>
    %195 = tpu.concatenate %192, %193, %194 in 0 : vector<1x8xf32>, vector<1x8xf32>, vector<1x8xf32> -> vector<3x8xf32>
    %c1_62 = arith.constant 1 : index
    %c3_63 = arith.constant 3 : index
    %c0_64 = arith.constant 0 : index
    %196 = vector.load %arg4[%c1_62, %c3_63, %c0_64] : memref<2x176x128xf32, #tpu.memory_space<vmem>>, vector<1x3x8xf32>
    %197 = vector.shape_cast %196 : vector<1x3x8xf32> to vector<3x8xf32>
    %198 = vector.shape_cast %195 : vector<3x8xf32> to vector<1x3x8xf32>
    tpu.vector_store %arg4[%c1_62, %c3_63, %c0_64], %198 {strides = array<i32>} : memref<2x176x128xf32, #tpu.memory_space<vmem>>, vector<1x3x8xf32>,
    %199 = vector.extract_strided_slice %163 {offsets = [0, 0], sizes = [8, 1], strides = [1, 1]} : vector<24x4xf32> to vector<8x1xf32>
    %200 = vector.extract_strided_slice %163 {offsets = [8, 0], sizes = [8, 1], strides = [1, 1]} : vector<24x4xf32> to vector<8x1xf32>
    %201 = vector.extract_strided_slice %163 {offsets = [16, 0], sizes = [8, 1], strides = [1, 1]} : vector<24x4xf32> to vector<8x1xf32>
    %202 = vector.extract_strided_slice %7 {offsets = [0, 0], sizes = [16, 1], strides = [1, 1]} : vector<16x3xf32> to vector<16x1xf32>
    %203 = vector.broadcast %202 : vector<16x1xf32> to vector<16x128xf32>
    %204 = vector.broadcast %30 : vector<1x128xf32> to vector<16x128xf32>
    %205 = arith.mulf %203, %204 : vector<16x128xf32>
    %206 = vector.extract_strided_slice %7 {offsets = [0, 1], sizes = [16, 1], strides = [1, 1]} : vector<16x3xf32> to vector<16x1xf32>
    %207 = vector.broadcast %206 : vector<16x1xf32> to vector<16x128xf32>
    %208 = vector.broadcast %31 : vector<1x128xf32> to vector<16x128xf32>
    %209 = arith.mulf %207, %208 : vector<16x128xf32>
    %210 = arith.addf %205, %209 : vector<16x128xf32>
    %211 = vector.extract_strided_slice %7 {offsets = [0, 2], sizes = [16, 1], strides = [1, 1]} : vector<16x3xf32> to vector<16x1xf32>
    %212 = vector.broadcast %211 : vector<16x1xf32> to vector<16x128xf32>
    %213 = vector.broadcast %32 : vector<1x128xf32> to vector<16x128xf32>
    %214 = arith.mulf %212, %213 : vector<16x128xf32>
    %215 = arith.addf %210, %214 : vector<16x128xf32>
    %216 = vector.broadcast %8 : vector<16x1xf32> to vector<16x128xf32>
    %217 = arith.addf %215, %216 : vector<16x128xf32>
    %cst_65 = arith.constant 0.000000e+00 : f32
    %218 = vector.broadcast %cst_65 : f32 to vector<16x128xf32>
    %219 = arith.cmpf oge, %217, %218 : vector<16x128xf32>
    %cst_66 = arith.constant 0.00999999977 : f32
    %220 = vector.broadcast %cst_66 : f32 to vector<16x128xf32>
    %221 = arith.mulf %220, %217 : vector<16x128xf32>
    %222 = arith.select %219, %217, %221 : vector<16x128xi1>, vector<16x128xf32>
    %223 = arith.mulf %199, %199 : vector<8x1xf32>
    %224 = arith.mulf %200, %200 : vector<8x1xf32>
    %225 = arith.addf %223, %224 : vector<8x1xf32>
    %226 = arith.mulf %201, %201 : vector<8x1xf32>
    %227 = arith.addf %225, %226 : vector<8x1xf32>
    %228 = vector.broadcast %199 : vector<8x1xf32> to vector<8x128xf32>
    %229 = vector.broadcast %30 : vector<1x128xf32> to vector<8x128xf32>
    %230 = arith.mulf %228, %229 : vector<8x128xf32>
    %231 = vector.broadcast %200 : vector<8x1xf32> to vector<8x128xf32>
    %232 = vector.broadcast %31 : vector<1x128xf32> to vector<8x128xf32>
    %233 = arith.mulf %231, %232 : vector<8x128xf32>
    %234 = arith.addf %230, %233 : vector<8x128xf32>
    %235 = vector.broadcast %201 : vector<8x1xf32> to vector<8x128xf32>
    %236 = vector.broadcast %32 : vector<1x128xf32> to vector<8x128xf32>
    %237 = arith.mulf %235, %236 : vector<8x128xf32>
    %238 = arith.addf %234, %237 : vector<8x128xf32>
    %239 = vector.broadcast %227 : vector<8x1xf32> to vector<8x128xf32>
    %240 = vector.broadcast %40 : vector<1x128xf32> to vector<8x128xf32>
    %241 = arith.addf %239, %240 : vector<8x128xf32>
    %cst_67 = arith.constant 2.000000e+00 : f32
    %242 = vector.broadcast %cst_67 : f32 to vector<8x128xf32>
    %243 = arith.mulf %242, %238 : vector<8x128xf32>
    %244 = arith.subf %241, %243 : vector<8x128xf32>
    %cst_68 = arith.constant 0.000000e+00 : f32
    %245 = vector.broadcast %cst_68 : f32 to vector<8x128xf32>
    %246 = arith.subf %245, %244 : vector<8x128xf32>
    %cst_69 = arith.constant 2.500000e+01 : f32
    %247 = vector.broadcast %cst_69 : f32 to vector<8x128xf32>
    %248 = arith.mulf %246, %247 : vector<8x128xf32>
    %cst_70 = arith.constant dense<0xFF800000> : vector<8xf32>
    %249 = vector.multi_reduction <maximumf>, %248, %cst_70 [1] : vector<8x128xf32> to vector<8xf32>
    %250 = vector.shape_cast %249 : vector<8xf32> to vector<8x1xf32>
    %251 = vector.broadcast %250 : vector<8x1xf32> to vector<8x128xf32>
    %252 = arith.subf %248, %251 : vector<8x128xf32>
    %253 = math.exp %252 : vector<8x128xf32>
    %cst_71 = arith.constant dense<0.000000e+00> : vector<8xf32>
    %254 = vector.multi_reduction <add>, %253, %cst_71 [1] : vector<8x128xf32> to vector<8xf32>
    %255 = vector.shape_cast %254 : vector<8xf32> to vector<8x1xf32>
    %256 = tpu.reciprocal %255 {approx = true} : vector<8x1xf32> -> vector<8x1xf32>
    %257 = vector.broadcast %256 : vector<8x1xf32> to vector<8x128xf32>
    %258 = arith.mulf %253, %257 : vector<8x128xf32>
    %cst_72 = arith.constant dense<0.000000e+00> : vector<16x8xf32>
    %259 = tpu.matmul %222, %258, %cst_72 {dimension_numbers = #tpu.dot_dimension_numbers<[1], [1], [0], [0], [0, 0, 1, 0], [], []>} : vector<16x128xf32>, vector<8x128xf32>, vector<16x8xf32> -> vector<16x8xf32>
    %260 = vector.extract_strided_slice %163 {offsets = [0, 1], sizes = [8, 1], strides = [1, 1]} : vector<24x4xf32> to vector<8x1xf32>
    %261 = vector.extract_strided_slice %163 {offsets = [8, 1], sizes = [8, 1], strides = [1, 1]} : vector<24x4xf32> to vector<8x1xf32>
    %262 = vector.extract_strided_slice %163 {offsets = [16, 1], sizes = [8, 1], strides = [1, 1]} : vector<24x4xf32> to vector<8x1xf32>
    %263 = vector.extract_strided_slice %7 {offsets = [0, 0], sizes = [16, 1], strides = [1, 1]} : vector<16x3xf32> to vector<16x1xf32>
    %264 = vector.broadcast %263 : vector<16x1xf32> to vector<16x128xf32>
    %265 = vector.broadcast %45 : vector<1x128xf32> to vector<16x128xf32>
    %266 = arith.mulf %264, %265 : vector<16x128xf32>
    %267 = vector.extract_strided_slice %7 {offsets = [0, 1], sizes = [16, 1], strides = [1, 1]} : vector<16x3xf32> to vector<16x1xf32>
    %268 = vector.broadcast %267 : vector<16x1xf32> to vector<16x128xf32>
    %269 = vector.broadcast %46 : vector<1x128xf32> to vector<16x128xf32>
    %270 = arith.mulf %268, %269 : vector<16x128xf32>
    %271 = arith.addf %266, %270 : vector<16x128xf32>
    %272 = vector.extract_strided_slice %7 {offsets = [0, 2], sizes = [16, 1], strides = [1, 1]} : vector<16x3xf32> to vector<16x1xf32>
    %273 = vector.broadcast %272 : vector<16x1xf32> to vector<16x128xf32>
    %274 = vector.broadcast %47 : vector<1x128xf32> to vector<16x128xf32>
    %275 = arith.mulf %273, %274 : vector<16x128xf32>
    %276 = arith.addf %271, %275 : vector<16x128xf32>
    %277 = vector.broadcast %8 : vector<16x1xf32> to vector<16x128xf32>
    %278 = arith.addf %276, %277 : vector<16x128xf32>
    %cst_73 = arith.constant 0.000000e+00 : f32
    %279 = vector.broadcast %cst_73 : f32 to vector<16x128xf32>
    %280 = arith.cmpf oge, %278, %279 : vector<16x128xf32>
    %cst_74 = arith.constant 0.00999999977 : f32
    %281 = vector.broadcast %cst_74 : f32 to vector<16x128xf32>
    %282 = arith.mulf %281, %278 : vector<16x128xf32>
    %283 = arith.select %280, %278, %282 : vector<16x128xi1>, vector<16x128xf32>
    %284 = arith.mulf %260, %260 : vector<8x1xf32>
    %285 = arith.mulf %261, %261 : vector<8x1xf32>
    %286 = arith.addf %284, %285 : vector<8x1xf32>
    %287 = arith.mulf %262, %262 : vector<8x1xf32>
    %288 = arith.addf %286, %287 : vector<8x1xf32>
    %289 = vector.broadcast %260 : vector<8x1xf32> to vector<8x128xf32>
    %290 = vector.broadcast %45 : vector<1x128xf32> to vector<8x128xf32>
    %291 = arith.mulf %289, %290 : vector<8x128xf32>
    %292 = vector.broadcast %261 : vector<8x1xf32> to vector<8x128xf32>
    %293 = vector.broadcast %46 : vector<1x128xf32> to vector<8x128xf32>
    %294 = arith.mulf %292, %293 : vector<8x128xf32>
    %295 = arith.addf %291, %294 : vector<8x128xf32>
    %296 = vector.broadcast %262 : vector<8x1xf32> to vector<8x128xf32>
    %297 = vector.broadcast %47 : vector<1x128xf32> to vector<8x128xf32>
    %298 = arith.mulf %296, %297 : vector<8x128xf32>
    %299 = arith.addf %295, %298 : vector<8x128xf32>
    %300 = vector.broadcast %288 : vector<8x1xf32> to vector<8x128xf32>
    %301 = vector.broadcast %55 : vector<1x128xf32> to vector<8x128xf32>
    %302 = arith.addf %300, %301 : vector<8x128xf32>
    %cst_75 = arith.constant 2.000000e+00 : f32
    %303 = vector.broadcast %cst_75 : f32 to vector<8x128xf32>
    %304 = arith.mulf %303, %299 : vector<8x128xf32>
    %305 = arith.subf %302, %304 : vector<8x128xf32>
    %cst_76 = arith.constant 0.000000e+00 : f32
    %306 = vector.broadcast %cst_76 : f32 to vector<8x128xf32>
    %307 = arith.subf %306, %305 : vector<8x128xf32>
    %cst_77 = arith.constant 2.500000e+01 : f32
    %308 = vector.broadcast %cst_77 : f32 to vector<8x128xf32>
    %309 = arith.mulf %307, %308 : vector<8x128xf32>
    %cst_78 = arith.constant dense<0xFF800000> : vector<8xf32>
    %310 = vector.multi_reduction <maximumf>, %309, %cst_78 [1] : vector<8x128xf32> to vector<8xf32>
    %311 = vector.shape_cast %310 : vector<8xf32> to vector<8x1xf32>
    %312 = vector.broadcast %311 : vector<8x1xf32> to vector<8x128xf32>
    %313 = arith.subf %309, %312 : vector<8x128xf32>
    %314 = math.exp %313 : vector<8x128xf32>
    %cst_79 = arith.constant dense<0.000000e+00> : vector<8xf32>
    %315 = vector.multi_reduction <add>, %314, %cst_79 [1] : vector<8x128xf32> to vector<8xf32>
    %316 = vector.shape_cast %315 : vector<8xf32> to vector<8x1xf32>
    %317 = tpu.reciprocal %316 {approx = true} : vector<8x1xf32> -> vector<8x1xf32>
    %318 = vector.broadcast %317 : vector<8x1xf32> to vector<8x128xf32>
    %319 = arith.mulf %314, %318 : vector<8x128xf32>
    %cst_80 = arith.constant dense<0.000000e+00> : vector<16x8xf32>
    %320 = tpu.matmul %283, %319, %cst_80 {dimension_numbers = #tpu.dot_dimension_numbers<[1], [1], [0], [0], [0, 0, 1, 0], [], []>} : vector<16x128xf32>, vector<8x128xf32>, vector<16x8xf32> -> vector<16x8xf32>
    %321 = tpu.concatenate %259, %320 in 1 : vector<16x8xf32>, vector<16x8xf32> -> vector<16x16xf32>
    %322 = vector.broadcast %11 : vector<42x1xf32> to vector<42x8xf32>
    %323 = arith.addf %10, %322 : vector<42x8xf32>
    %324 = tpu.concatenate %323, %323 in 1 : vector<42x8xf32>, vector<42x8xf32> -> vector<42x16xf32>
    %cst_81 = arith.constant dense<0.000000e+00> : vector<42x16xf32>
    %325 = tpu.matmul %9, %321, %cst_81 {dimension_numbers = #tpu.dot_dimension_numbers<[1], [0], [0], [1], [0, 0, 1, 1], [], []>} : vector<42x16xf32>, vector<16x16xf32>, vector<42x16xf32> -> vector<42x16xf32>
    %326 = arith.addf %325, %324 : vector<42x16xf32>
    %cst_82 = arith.constant 0.000000e+00 : f32
    %327 = vector.broadcast %cst_82 : f32 to vector<42x16xf32>
    %328 = arith.cmpf oge, %326, %327 : vector<42x16xf32>
    %cst_83 = arith.constant 0.00999999977 : f32
    %329 = vector.broadcast %cst_83 : f32 to vector<42x16xf32>
    %330 = arith.mulf %329, %326 : vector<42x16xf32>
    %331 = arith.select %328, %326, %330 : vector<42x16xi1>, vector<42x16xf32>
    %cst_84 = arith.constant dense<0.000000e+00> : vector<42x16xf32>
    %332 = tpu.matmul %12, %331, %cst_84 {dimension_numbers = #tpu.dot_dimension_numbers<[1], [0], [0], [1], [0, 0, 1, 1], [], []>} : vector<42x42xf32>, vector<42x16xf32>, vector<42x16xf32> -> vector<42x16xf32>
    %333 = vector.broadcast %13 : vector<42x1xf32> to vector<42x16xf32>
    %334 = arith.addf %332, %333 : vector<42x16xf32>
    %cst_85 = arith.constant 0.000000e+00 : f32
    %335 = vector.broadcast %cst_85 : f32 to vector<42x16xf32>
    %336 = arith.cmpf oge, %334, %335 : vector<42x16xf32>
    %cst_86 = arith.constant 0.00999999977 : f32
    %337 = vector.broadcast %cst_86 : f32 to vector<42x16xf32>
    %338 = arith.mulf %337, %334 : vector<42x16xf32>
    %339 = arith.select %336, %334, %338 : vector<42x16xi1>, vector<42x16xf32>
    %cst_87 = arith.constant dense<0.000000e+00> : vector<42x16xf32>
    %340 = tpu.matmul %14, %339, %cst_87 {dimension_numbers = #tpu.dot_dimension_numbers<[1], [0], [0], [1], [0, 0, 1, 1], [], []>} : vector<42x42xf32>, vector<42x16xf32>, vector<42x16xf32> -> vector<42x16xf32>
    %341 = vector.broadcast %15 : vector<42x1xf32> to vector<42x16xf32>
    %342 = arith.addf %340, %341 : vector<42x16xf32>
    %343 = tpu.concatenate %16, %16 in 1 : vector<42x8xf32>, vector<42x8xf32> -> vector<42x16xf32>
    %344 = arith.addf %343, %342 : vector<42x16xf32>
    %345 = vector.broadcast %18 : vector<42x1xf32> to vector<42x128xf32>
    %346 = vector.broadcast %30 : vector<1x128xf32> to vector<42x128xf32>
    %347 = arith.mulf %345, %346 : vector<42x128xf32>
    %348 = vector.broadcast %19 : vector<42x1xf32> to vector<42x128xf32>
    %349 = vector.broadcast %31 : vector<1x128xf32> to vector<42x128xf32>
    %350 = arith.mulf %348, %349 : vector<42x128xf32>
    %351 = arith.addf %347, %350 : vector<42x128xf32>
    %352 = vector.broadcast %20 : vector<42x1xf32> to vector<42x128xf32>
    %353 = vector.broadcast %32 : vector<1x128xf32> to vector<42x128xf32>
    %354 = arith.mulf %352, %353 : vector<42x128xf32>
    %355 = arith.addf %351, %354 : vector<42x128xf32>
    %356 = vector.broadcast %18 : vector<42x1xf32> to vector<42x128xf32>
    %357 = vector.broadcast %45 : vector<1x128xf32> to vector<42x128xf32>
    %358 = arith.mulf %356, %357 : vector<42x128xf32>
    %359 = vector.broadcast %19 : vector<42x1xf32> to vector<42x128xf32>
    %360 = vector.broadcast %46 : vector<1x128xf32> to vector<42x128xf32>
    %361 = arith.mulf %359, %360 : vector<42x128xf32>
    %362 = arith.addf %358, %361 : vector<42x128xf32>
    %363 = vector.broadcast %20 : vector<42x1xf32> to vector<42x128xf32>
    %364 = vector.broadcast %47 : vector<1x128xf32> to vector<42x128xf32>
    %365 = arith.mulf %363, %364 : vector<42x128xf32>
    %366 = arith.addf %362, %365 : vector<42x128xf32>
    %cst_88 = arith.constant 1.000000e+00 : f32
    %367 = vector.broadcast %cst_88 : f32 to vector<42x1xf32>
    %cst_89 = arith.constant 1.000000e+00 : f32
    %368 = vector.broadcast %cst_89 : f32 to vector<42x1xf32>
    %c0_i32 = arith.constant 0 : i32
    %c20_i32 = arith.constant 20 : i32
    %369 = arith.addi %c0_i32, %c20_i32 : i32
    %c1_i32 = arith.constant 1 : i32
    %370:2 = scf.for %arg7 = %c0_i32 to %369 step %c1_i32 iter_args(%arg8 = %367, %arg9 = %368) -> (vector<42x1xf32>, vector<42x1xf32>)  : i32 {
      %617 = arith.mulf %arg8, %arg8 : vector<42x1xf32>
      %618 = arith.mulf %617, %25 : vector<42x1xf32>
      %619 = vector.broadcast %618 : vector<42x1xf32> to vector<42x128xf32>
      %620 = vector.broadcast %40 : vector<1x128xf32> to vector<42x128xf32>
      %621 = arith.addf %619, %620 : vector<42x128xf32>
      %cst_154 = arith.constant 2.000000e+00 : f32
      %622 = vector.broadcast %cst_154 : f32 to vector<42x1xf32>
      %623 = arith.mulf %622, %arg8 : vector<42x1xf32>
      %624 = vector.broadcast %623 : vector<42x1xf32> to vector<42x128xf32>
      %625 = arith.mulf %624, %355 : vector<42x128xf32>
      %626 = arith.subf %621, %625 : vector<42x128xf32>
      %cst_155 = arith.constant dense<0x7F800000> : vector<42xf32>
      %627 = vector.multi_reduction <minimumf>, %626, %cst_155 [1] : vector<42x128xf32> to vector<42xf32>
      %628 = vector.shape_cast %627 : vector<42xf32> to vector<42x1xf32>
      %cst_156 = arith.constant 1.600000e-01 : f32
      %629 = vector.broadcast %cst_156 : f32 to vector<42x1xf32>
      %630 = arith.cmpf ogt, %628, %629 : vector<42x1xf32>
      %631 = arith.extui %630 : vector<42x1xi1> to vector<42x1xi32>
      %632 = arith.sitofp %631 : vector<42x1xi32> to vector<42x1xf32>
      %cst_157 = arith.constant 0.00999999977 : f32
      %633 = vector.broadcast %cst_157 : f32 to vector<42x1xf32>
      %634 = arith.mulf %633, %632 : vector<42x1xf32>
      %cst_158 = arith.constant 1.000000e+00 : f32
      %635 = vector.broadcast %cst_158 : f32 to vector<42x1xf32>
      %636 = arith.subf %635, %634 : vector<42x1xf32>
      %637 = arith.mulf %arg8, %636 : vector<42x1xf32>
      %638 = arith.mulf %arg9, %arg9 : vector<42x1xf32>
      %639 = arith.mulf %638, %25 : vector<42x1xf32>
      %640 = vector.broadcast %639 : vector<42x1xf32> to vector<42x128xf32>
      %641 = vector.broadcast %55 : vector<1x128xf32> to vector<42x128xf32>
      %642 = arith.addf %640, %641 : vector<42x128xf32>
      %cst_159 = arith.constant 2.000000e+00 : f32
      %643 = vector.broadcast %cst_159 : f32 to vector<42x1xf32>
      %644 = arith.mulf %643, %arg9 : vector<42x1xf32>
      %645 = vector.broadcast %644 : vector<42x1xf32> to vector<42x128xf32>
      %646 = arith.mulf %645, %366 : vector<42x128xf32>
      %647 = arith.subf %642, %646 : vector<42x128xf32>
      %cst_160 = arith.constant dense<0x7F800000> : vector<42xf32>
      %648 = vector.multi_reduction <minimumf>, %647, %cst_160 [1] : vector<42x128xf32> to vector<42xf32>
      %649 = vector.shape_cast %648 : vector<42xf32> to vector<42x1xf32>
      %cst_161 = arith.constant 1.600000e-01 : f32
      %650 = vector.broadcast %cst_161 : f32 to vector<42x1xf32>
      %651 = arith.cmpf ogt, %649, %650 : vector<42x1xf32>
      %652 = arith.extui %651 : vector<42x1xi1> to vector<42x1xi32>
      %653 = arith.sitofp %652 : vector<42x1xi32> to vector<42x1xf32>
      %cst_162 = arith.constant 0.00999999977 : f32
      %654 = vector.broadcast %cst_162 : f32 to vector<42x1xf32>
      %655 = arith.mulf %654, %653 : vector<42x1xf32>
      %cst_163 = arith.constant 1.000000e+00 : f32
      %656 = vector.broadcast %cst_163 : f32 to vector<42x1xf32>
      %657 = arith.subf %656, %655 : vector<42x1xf32>
      %658 = arith.mulf %arg9, %657 : vector<42x1xf32>
      %659 = arith.mulf %637, %637 : vector<42x1xf32>
      %660 = arith.mulf %659, %25 : vector<42x1xf32>
      %661 = vector.broadcast %660 : vector<42x1xf32> to vector<42x128xf32>
      %662 = vector.broadcast %40 : vector<1x128xf32> to vector<42x128xf32>
      %663 = arith.addf %661, %662 : vector<42x128xf32>
      %cst_164 = arith.constant 2.000000e+00 : f32
      %664 = vector.broadcast %cst_164 : f32 to vector<42x1xf32>
      %665 = arith.mulf %664, %637 : vector<42x1xf32>
      %666 = vector.broadcast %665 : vector<42x1xf32> to vector<42x128xf32>
      %667 = arith.mulf %666, %355 : vector<42x128xf32>
      %668 = arith.subf %663, %667 : vector<42x128xf32>
      %cst_165 = arith.constant dense<0x7F800000> : vector<42xf32>
      %669 = vector.multi_reduction <minimumf>, %668, %cst_165 [1] : vector<42x128xf32> to vector<42xf32>
      %670 = vector.shape_cast %669 : vector<42xf32> to vector<42x1xf32>
      %cst_166 = arith.constant 1.600000e-01 : f32
      %671 = vector.broadcast %cst_166 : f32 to vector<42x1xf32>
      %672 = arith.cmpf ogt, %670, %671 : vector<42x1xf32>
      %673 = arith.extui %672 : vector<42x1xi1> to vector<42x1xi32>
      %674 = arith.sitofp %673 : vector<42x1xi32> to vector<42x1xf32>
      %cst_167 = arith.constant 0.00999999977 : f32
      %675 = vector.broadcast %cst_167 : f32 to vector<42x1xf32>
      %676 = arith.mulf %675, %674 : vector<42x1xf32>
      %cst_168 = arith.constant 1.000000e+00 : f32
      %677 = vector.broadcast %cst_168 : f32 to vector<42x1xf32>
      %678 = arith.subf %677, %676 : vector<42x1xf32>
      %679 = arith.mulf %637, %678 : vector<42x1xf32>
      %680 = arith.mulf %658, %658 : vector<42x1xf32>
      %681 = arith.mulf %680, %25 : vector<42x1xf32>
      %682 = vector.broadcast %681 : vector<42x1xf32> to vector<42x128xf32>
      %683 = vector.broadcast %55 : vector<1x128xf32> to vector<42x128xf32>
      %684 = arith.addf %682, %683 : vector<42x128xf32>
      %cst_169 = arith.constant 2.000000e+00 : f32
      %685 = vector.broadcast %cst_169 : f32 to vector<42x1xf32>
      %686 = arith.mulf %685, %658 : vector<42x1xf32>
      %687 = vector.broadcast %686 : vector<42x1xf32> to vector<42x128xf32>
      %688 = arith.mulf %687, %366 : vector<42x128xf32>
      %689 = arith.subf %684, %688 : vector<42x128xf32>
      %cst_170 = arith.constant dense<0x7F800000> : vector<42xf32>
      %690 = vector.multi_reduction <minimumf>, %689, %cst_170 [1] : vector<42x128xf32> to vector<42xf32>
      %691 = vector.shape_cast %690 : vector<42xf32> to vector<42x1xf32>
      %cst_171 = arith.constant 1.600000e-01 : f32
      %692 = vector.broadcast %cst_171 : f32 to vector<42x1xf32>
      %693 = arith.cmpf ogt, %691, %692 : vector<42x1xf32>
      %694 = arith.extui %693 : vector<42x1xi1> to vector<42x1xi32>
      %695 = arith.sitofp %694 : vector<42x1xi32> to vector<42x1xf32>
      %cst_172 = arith.constant 0.00999999977 : f32
      %696 = vector.broadcast %cst_172 : f32 to vector<42x1xf32>
      %697 = arith.mulf %696, %695 : vector<42x1xf32>
      %cst_173 = arith.constant 1.000000e+00 : f32
      %698 = vector.broadcast %cst_173 : f32 to vector<42x1xf32>
      %699 = arith.subf %698, %697 : vector<42x1xf32>
      %700 = arith.mulf %658, %699 : vector<42x1xf32>
      %701 = arith.mulf %679, %679 : vector<42x1xf32>
      %702 = arith.mulf %701, %25 : vector<42x1xf32>
      %703 = vector.broadcast %702 : vector<42x1xf32> to vector<42x128xf32>
      %704 = vector.broadcast %40 : vector<1x128xf32> to vector<42x128xf32>
      %705 = arith.addf %703, %704 : vector<42x128xf32>
      %cst_174 = arith.constant 2.000000e+00 : f32
      %706 = vector.broadcast %cst_174 : f32 to vector<42x1xf32>
      %707 = arith.mulf %706, %679 : vector<42x1xf32>
      %708 = vector.broadcast %707 : vector<42x1xf32> to vector<42x128xf32>
      %709 = arith.mulf %708, %355 : vector<42x128xf32>
      %710 = arith.subf %705, %709 : vector<42x128xf32>
      %cst_175 = arith.constant dense<0x7F800000> : vector<42xf32>
      %711 = vector.multi_reduction <minimumf>, %710, %cst_175 [1] : vector<42x128xf32> to vector<42xf32>
      %712 = vector.shape_cast %711 : vector<42xf32> to vector<42x1xf32>
      %cst_176 = arith.constant 1.600000e-01 : f32
      %713 = vector.broadcast %cst_176 : f32 to vector<42x1xf32>
      %714 = arith.cmpf ogt, %712, %713 : vector<42x1xf32>
      %715 = arith.extui %714 : vector<42x1xi1> to vector<42x1xi32>
      %716 = arith.sitofp %715 : vector<42x1xi32> to vector<42x1xf32>
      %cst_177 = arith.constant 0.00999999977 : f32
      %717 = vector.broadcast %cst_177 : f32 to vector<42x1xf32>
      %718 = arith.mulf %717, %716 : vector<42x1xf32>
      %cst_178 = arith.constant 1.000000e+00 : f32
      %719 = vector.broadcast %cst_178 : f32 to vector<42x1xf32>
      %720 = arith.subf %719, %718 : vector<42x1xf32>
      %721 = arith.mulf %679, %720 : vector<42x1xf32>
      %722 = arith.mulf %700, %700 : vector<42x1xf32>
      %723 = arith.mulf %722, %25 : vector<42x1xf32>
      %724 = vector.broadcast %723 : vector<42x1xf32> to vector<42x128xf32>
      %725 = vector.broadcast %55 : vector<1x128xf32> to vector<42x128xf32>
      %726 = arith.addf %724, %725 : vector<42x128xf32>
      %cst_179 = arith.constant 2.000000e+00 : f32
      %727 = vector.broadcast %cst_179 : f32 to vector<42x1xf32>
      %728 = arith.mulf %727, %700 : vector<42x1xf32>
      %729 = vector.broadcast %728 : vector<42x1xf32> to vector<42x128xf32>
      %730 = arith.mulf %729, %366 : vector<42x128xf32>
      %731 = arith.subf %726, %730 : vector<42x128xf32>
      %cst_180 = arith.constant dense<0x7F800000> : vector<42xf32>
      %732 = vector.multi_reduction <minimumf>, %731, %cst_180 [1] : vector<42x128xf32> to vector<42xf32>
      %733 = vector.shape_cast %732 : vector<42xf32> to vector<42x1xf32>
      %cst_181 = arith.constant 1.600000e-01 : f32
      %734 = vector.broadcast %cst_181 : f32 to vector<42x1xf32>
      %735 = arith.cmpf ogt, %733, %734 : vector<42x1xf32>
      %736 = arith.extui %735 : vector<42x1xi1> to vector<42x1xi32>
      %737 = arith.sitofp %736 : vector<42x1xi32> to vector<42x1xf32>
      %cst_182 = arith.constant 0.00999999977 : f32
      %738 = vector.broadcast %cst_182 : f32 to vector<42x1xf32>
      %739 = arith.mulf %738, %737 : vector<42x1xf32>
      %cst_183 = arith.constant 1.000000e+00 : f32
      %740 = vector.broadcast %cst_183 : f32 to vector<42x1xf32>
      %741 = arith.subf %740, %739 : vector<42x1xf32>
      %742 = arith.mulf %700, %741 : vector<42x1xf32>
      %743 = arith.mulf %721, %721 : vector<42x1xf32>
      %744 = arith.mulf %743, %25 : vector<42x1xf32>
      %745 = vector.broadcast %744 : vector<42x1xf32> to vector<42x128xf32>
      %746 = vector.broadcast %40 : vector<1x128xf32> to vector<42x128xf32>
      %747 = arith.addf %745, %746 : vector<42x128xf32>
      %cst_184 = arith.constant 2.000000e+00 : f32
      %748 = vector.broadcast %cst_184 : f32 to vector<42x1xf32>
      %749 = arith.mulf %748, %721 : vector<42x1xf32>
      %750 = vector.broadcast %749 : vector<42x1xf32> to vector<42x128xf32>
      %751 = arith.mulf %750, %355 : vector<42x128xf32>
      %752 = arith.subf %747, %751 : vector<42x128xf32>
      %cst_185 = arith.constant dense<0x7F800000> : vector<42xf32>
      %753 = vector.multi_reduction <minimumf>, %752, %cst_185 [1] : vector<42x128xf32> to vector<42xf32>
      %754 = vector.shape_cast %753 : vector<42xf32> to vector<42x1xf32>
      %cst_186 = arith.constant 1.600000e-01 : f32
      %755 = vector.broadcast %cst_186 : f32 to vector<42x1xf32>
      %756 = arith.cmpf ogt, %754, %755 : vector<42x1xf32>
      %757 = arith.extui %756 : vector<42x1xi1> to vector<42x1xi32>
      %758 = arith.sitofp %757 : vector<42x1xi32> to vector<42x1xf32>
      %cst_187 = arith.constant 0.00999999977 : f32
      %759 = vector.broadcast %cst_187 : f32 to vector<42x1xf32>
      %760 = arith.mulf %759, %758 : vector<42x1xf32>
      %cst_188 = arith.constant 1.000000e+00 : f32
      %761 = vector.broadcast %cst_188 : f32 to vector<42x1xf32>
      %762 = arith.subf %761, %760 : vector<42x1xf32>
      %763 = arith.mulf %721, %762 : vector<42x1xf32>
      %764 = arith.mulf %742, %742 : vector<42x1xf32>
      %765 = arith.mulf %764, %25 : vector<42x1xf32>
      %766 = vector.broadcast %765 : vector<42x1xf32> to vector<42x128xf32>
      %767 = vector.broadcast %55 : vector<1x128xf32> to vector<42x128xf32>
      %768 = arith.addf %766, %767 : vector<42x128xf32>
      %cst_189 = arith.constant 2.000000e+00 : f32
      %769 = vector.broadcast %cst_189 : f32 to vector<42x1xf32>
      %770 = arith.mulf %769, %742 : vector<42x1xf32>
      %771 = vector.broadcast %770 : vector<42x1xf32> to vector<42x128xf32>
      %772 = arith.mulf %771, %366 : vector<42x128xf32>
      %773 = arith.subf %768, %772 : vector<42x128xf32>
      %cst_190 = arith.constant dense<0x7F800000> : vector<42xf32>
      %774 = vector.multi_reduction <minimumf>, %773, %cst_190 [1] : vector<42x128xf32> to vector<42xf32>
      %775 = vector.shape_cast %774 : vector<42xf32> to vector<42x1xf32>
      %cst_191 = arith.constant 1.600000e-01 : f32
      %776 = vector.broadcast %cst_191 : f32 to vector<42x1xf32>
      %777 = arith.cmpf ogt, %775, %776 : vector<42x1xf32>
      %778 = arith.extui %777 : vector<42x1xi1> to vector<42x1xi32>
      %779 = arith.sitofp %778 : vector<42x1xi32> to vector<42x1xf32>
      %cst_192 = arith.constant 0.00999999977 : f32
      %780 = vector.broadcast %cst_192 : f32 to vector<42x1xf32>
      %781 = arith.mulf %780, %779 : vector<42x1xf32>
      %cst_193 = arith.constant 1.000000e+00 : f32
      %782 = vector.broadcast %cst_193 : f32 to vector<42x1xf32>
      %783 = arith.subf %782, %781 : vector<42x1xf32>
      %784 = arith.mulf %742, %783 : vector<42x1xf32>
      %785 = arith.mulf %763, %763 : vector<42x1xf32>
      %786 = arith.mulf %785, %25 : vector<42x1xf32>
      %787 = vector.broadcast %786 : vector<42x1xf32> to vector<42x128xf32>
      %788 = vector.broadcast %40 : vector<1x128xf32> to vector<42x128xf32>
      %789 = arith.addf %787, %788 : vector<42x128xf32>
      %cst_194 = arith.constant 2.000000e+00 : f32
      %790 = vector.broadcast %cst_194 : f32 to vector<42x1xf32>
      %791 = arith.mulf %790, %763 : vector<42x1xf32>
      %792 = vector.broadcast %791 : vector<42x1xf32> to vector<42x128xf32>
      %793 = arith.mulf %792, %355 : vector<42x128xf32>
      %794 = arith.subf %789, %793 : vector<42x128xf32>
      %cst_195 = arith.constant dense<0x7F800000> : vector<42xf32>
      %795 = vector.multi_reduction <minimumf>, %794, %cst_195 [1] : vector<42x128xf32> to vector<42xf32>
      %796 = vector.shape_cast %795 : vector<42xf32> to vector<42x1xf32>
      %cst_196 = arith.constant 1.600000e-01 : f32
      %797 = vector.broadcast %cst_196 : f32 to vector<42x1xf32>
      %798 = arith.cmpf ogt, %796, %797 : vector<42x1xf32>
      %799 = arith.extui %798 : vector<42x1xi1> to vector<42x1xi32>
      %800 = arith.sitofp %799 : vector<42x1xi32> to vector<42x1xf32>
      %cst_197 = arith.constant 0.00999999977 : f32
      %801 = vector.broadcast %cst_197 : f32 to vector<42x1xf32>
      %802 = arith.mulf %801, %800 : vector<42x1xf32>
      %cst_198 = arith.constant 1.000000e+00 : f32
      %803 = vector.broadcast %cst_198 : f32 to vector<42x1xf32>
      %804 = arith.subf %803, %802 : vector<42x1xf32>
      %805 = arith.mulf %763, %804 : vector<42x1xf32>
      %806 = arith.mulf %784, %784 : vector<42x1xf32>
      %807 = arith.mulf %806, %25 : vector<42x1xf32>
      %808 = vector.broadcast %807 : vector<42x1xf32> to vector<42x128xf32>
      %809 = vector.broadcast %55 : vector<1x128xf32> to vector<42x128xf32>
      %810 = arith.addf %808, %809 : vector<42x128xf32>
      %cst_199 = arith.constant 2.000000e+00 : f32
      %811 = vector.broadcast %cst_199 : f32 to vector<42x1xf32>
      %812 = arith.mulf %811, %784 : vector<42x1xf32>
      %813 = vector.broadcast %812 : vector<42x1xf32> to vector<42x128xf32>
      %814 = arith.mulf %813, %366 : vector<42x128xf32>
      %815 = arith.subf %810, %814 : vector<42x128xf32>
      %cst_200 = arith.constant dense<0x7F800000> : vector<42xf32>
      %816 = vector.multi_reduction <minimumf>, %815, %cst_200 [1] : vector<42x128xf32> to vector<42xf32>
      %817 = vector.shape_cast %816 : vector<42xf32> to vector<42x1xf32>
      %cst_201 = arith.constant 1.600000e-01 : f32
      %818 = vector.broadcast %cst_201 : f32 to vector<42x1xf32>
      %819 = arith.cmpf ogt, %817, %818 : vector<42x1xf32>
      %820 = arith.extui %819 : vector<42x1xi1> to vector<42x1xi32>
      %821 = arith.sitofp %820 : vector<42x1xi32> to vector<42x1xf32>
      %cst_202 = arith.constant 0.00999999977 : f32
      %822 = vector.broadcast %cst_202 : f32 to vector<42x1xf32>
      %823 = arith.mulf %822, %821 : vector<42x1xf32>
      %cst_203 = arith.constant 1.000000e+00 : f32
      %824 = vector.broadcast %cst_203 : f32 to vector<42x1xf32>
      %825 = arith.subf %824, %823 : vector<42x1xf32>
      %826 = arith.mulf %784, %825 : vector<42x1xf32>
      scf.yield %805, %826 : vector<42x1xf32>, vector<42x1xf32>
    }
    %371 = arith.mulf %370#0, %18 : vector<42x1xf32>
    %372 = arith.mulf %370#0, %19 : vector<42x1xf32>
    %373 = arith.mulf %370#0, %20 : vector<42x1xf32>
    %374 = arith.mulf %370#0, %370#0 : vector<42x1xf32>
    %375 = arith.mulf %374, %25 : vector<42x1xf32>
    %376 = vector.broadcast %370#0 : vector<42x1xf32> to vector<42x3xf32>
    %377 = arith.mulf %376, %17 : vector<42x3xf32>
    %c0_90 = arith.constant 0 : index
    %c6 = arith.constant 6 : index
    %c0_91 = arith.constant 0 : index
    %378 = vector.load %arg4[%c0_90, %c6, %c0_91] : memref<2x176x128xf32, #tpu.memory_space<vmem>>, vector<1x42x3xf32>
    %379 = vector.shape_cast %378 : vector<1x42x3xf32> to vector<42x3xf32>
    %380 = vector.shape_cast %377 : vector<42x3xf32> to vector<1x42x3xf32>
    tpu.vector_store %arg4[%c0_90, %c6, %c0_91], %380 {strides = array<i32>} : memref<2x176x128xf32, #tpu.memory_space<vmem>>, vector<1x42x3xf32>,
    %381 = vector.extract_strided_slice %163 {offsets = [0, 0], sizes = [8, 1], strides = [1, 1]} : vector<24x4xf32> to vector<8x1xf32>
    %382 = vector.extract_strided_slice %163 {offsets = [8, 0], sizes = [8, 1], strides = [1, 1]} : vector<24x4xf32> to vector<8x1xf32>
    %383 = vector.extract_strided_slice %163 {offsets = [16, 0], sizes = [8, 1], strides = [1, 1]} : vector<24x4xf32> to vector<8x1xf32>
    %384 = vector.extract_strided_slice %163 {offsets = [0, 2], sizes = [8, 1], strides = [1, 1]} : vector<24x4xf32> to vector<8x1xf32>
    %385 = vector.extract_strided_slice %163 {offsets = [8, 2], sizes = [8, 1], strides = [1, 1]} : vector<24x4xf32> to vector<8x1xf32>
    %386 = vector.extract_strided_slice %163 {offsets = [16, 2], sizes = [8, 1], strides = [1, 1]} : vector<24x4xf32> to vector<8x1xf32>
    %387 = vector.extract_strided_slice %170 {offsets = [0, 0], sizes = [1, 8], strides = [1, 1]} : vector<4x24xf32> to vector<1x8xf32>
    %388 = vector.extract_strided_slice %170 {offsets = [0, 8], sizes = [1, 8], strides = [1, 1]} : vector<4x24xf32> to vector<1x8xf32>
    %389 = vector.extract_strided_slice %170 {offsets = [0, 16], sizes = [1, 8], strides = [1, 1]} : vector<4x24xf32> to vector<1x8xf32>
    %390 = vector.extract_strided_slice %342 {offsets = [0, 0], sizes = [42, 8], strides = [1, 1]} : vector<42x16xf32> to vector<42x8xf32>
    %391 = vector.extract_strided_slice %344 {offsets = [0, 0], sizes = [42, 8], strides = [1, 1]} : vector<42x16xf32> to vector<42x8xf32>
    %c0_92 = arith.constant 0 : index
    %c132 = arith.constant 132 : index
    %c0_93 = arith.constant 0 : index
    %392 = vector.load %arg4[%c0_92, %c132, %c0_93] : memref<2x176x128xf32, #tpu.memory_space<vmem>>, vector<1x42x8xf32>
    %393 = vector.shape_cast %392 : vector<1x42x8xf32> to vector<42x8xf32>
    %394 = vector.shape_cast %390 : vector<42x8xf32> to vector<1x42x8xf32>
    tpu.vector_store %arg4[%c0_92, %c132, %c0_93], %394 {strides = array<i32>} : memref<2x176x128xf32, #tpu.memory_space<vmem>>, vector<1x42x8xf32>,
    %395 = arith.mulf %387, %387 : vector<1x8xf32>
    %396 = arith.mulf %388, %388 : vector<1x8xf32>
    %397 = arith.addf %395, %396 : vector<1x8xf32>
    %398 = arith.mulf %389, %389 : vector<1x8xf32>
    %399 = arith.addf %397, %398 : vector<1x8xf32>
    %400 = vector.broadcast %375 : vector<42x1xf32> to vector<42x8xf32>
    %401 = vector.broadcast %399 : vector<1x8xf32> to vector<42x8xf32>
    %402 = arith.addf %400, %401 : vector<42x8xf32>
    %403 = vector.broadcast %371 : vector<42x1xf32> to vector<42x8xf32>
    %404 = vector.broadcast %387 : vector<1x8xf32> to vector<42x8xf32>
    %405 = arith.mulf %403, %404 : vector<42x8xf32>
    %406 = vector.broadcast %372 : vector<42x1xf32> to vector<42x8xf32>
    %407 = vector.broadcast %388 : vector<1x8xf32> to vector<42x8xf32>
    %408 = arith.mulf %406, %407 : vector<42x8xf32>
    %409 = arith.addf %405, %408 : vector<42x8xf32>
    %410 = vector.broadcast %373 : vector<42x1xf32> to vector<42x8xf32>
    %411 = vector.broadcast %389 : vector<1x8xf32> to vector<42x8xf32>
    %412 = arith.mulf %410, %411 : vector<42x8xf32>
    %413 = arith.addf %409, %412 : vector<42x8xf32>
    %cst_94 = arith.constant 2.000000e+00 : f32
    %414 = vector.broadcast %cst_94 : f32 to vector<42x8xf32>
    %415 = arith.mulf %414, %413 : vector<42x8xf32>
    %416 = arith.subf %402, %415 : vector<42x8xf32>
    %cst_95 = arith.constant dense<0x7F800000> : vector<8xf32>
    %417 = vector.multi_reduction <minimumf>, %416, %cst_95 [0] : vector<42x8xf32> to vector<8xf32>
    %418 = vector.shape_cast %417 : vector<8xf32> to vector<1x8xf32>
    %419 = vector.broadcast %418 : vector<1x8xf32> to vector<42x8xf32>
    %420 = arith.cmpf ole, %416, %419 : vector<42x8xf32>
    %cst_96 = arith.constant 0x7F800000 : f32
    %421 = vector.broadcast %cst_96 : f32 to vector<42x8xf32>
    %422 = arith.select %420, %421, %416 : vector<42x8xi1>, vector<42x8xf32>
    %cst_97 = arith.constant dense<0x7F800000> : vector<8xf32>
    %423 = vector.multi_reduction <minimumf>, %422, %cst_97 [0] : vector<42x8xf32> to vector<8xf32>
    %424 = vector.shape_cast %423 : vector<8xf32> to vector<1x8xf32>
    %425 = vector.broadcast %424 : vector<1x8xf32> to vector<42x8xf32>
    %426 = arith.cmpf ole, %422, %425 : vector<42x8xf32>
    %cst_98 = arith.constant 0x7F800000 : f32
    %427 = vector.broadcast %cst_98 : f32 to vector<42x8xf32>
    %428 = arith.select %426, %427, %422 : vector<42x8xi1>, vector<42x8xf32>
    %cst_99 = arith.constant dense<0x7F800000> : vector<8xf32>
    %429 = vector.multi_reduction <minimumf>, %428, %cst_99 [0] : vector<42x8xf32> to vector<8xf32>
    %430 = vector.shape_cast %429 : vector<8xf32> to vector<1x8xf32>
    %431 = vector.broadcast %430 : vector<1x8xf32> to vector<42x8xf32>
    %432 = arith.cmpf ole, %428, %431 : vector<42x8xf32>
    %cst_100 = arith.constant 0x7F800000 : f32
    %433 = vector.broadcast %cst_100 : f32 to vector<42x8xf32>
    %434 = arith.select %432, %433, %428 : vector<42x8xi1>, vector<42x8xf32>
    %cst_101 = arith.constant dense<0x7F800000> : vector<8xf32>
    %435 = vector.multi_reduction <minimumf>, %434, %cst_101 [0] : vector<42x8xf32> to vector<8xf32>
    %436 = vector.shape_cast %435 : vector<8xf32> to vector<1x8xf32>
    %437 = vector.broadcast %436 : vector<1x8xf32> to vector<42x8xf32>
    %438 = arith.cmpf ole, %434, %437 : vector<42x8xf32>
    %cst_102 = arith.constant 0x7F800000 : f32
    %439 = vector.broadcast %cst_102 : f32 to vector<42x8xf32>
    %440 = arith.select %438, %439, %434 : vector<42x8xi1>, vector<42x8xf32>
    %cst_103 = arith.constant dense<0x7F800000> : vector<8xf32>
    %441 = vector.multi_reduction <minimumf>, %440, %cst_103 [0] : vector<42x8xf32> to vector<8xf32>
    %442 = vector.shape_cast %441 : vector<8xf32> to vector<1x8xf32>
    %443 = vector.broadcast %442 : vector<1x8xf32> to vector<42x8xf32>
    %444 = arith.cmpf ole, %416, %443 : vector<42x8xf32>
    %445 = arith.extui %444 : vector<42x8xi1> to vector<42x8xi32>
    %446 = arith.sitofp %445 : vector<42x8xi32> to vector<42x8xf32>
    %447 = arith.mulf %391, %446 : vector<42x8xf32>
    %c0_104 = arith.constant 0 : index
    %c90 = arith.constant 90 : index
    %c0_105 = arith.constant 0 : index
    %448 = vector.load %arg4[%c0_104, %c90, %c0_105] : memref<2x176x128xf32, #tpu.memory_space<vmem>>, vector<1x42x8xf32>
    %449 = vector.shape_cast %448 : vector<1x42x8xf32> to vector<42x8xf32>
    %450 = vector.shape_cast %447 : vector<42x8xf32> to vector<1x42x8xf32>
    tpu.vector_store %arg4[%c0_104, %c90, %c0_105], %450 {strides = array<i32>} : memref<2x176x128xf32, #tpu.memory_space<vmem>>, vector<1x42x8xf32>,
    %451 = arith.subf %384, %381 : vector<8x1xf32>
    %452 = arith.subf %385, %382 : vector<8x1xf32>
    %453 = arith.subf %386, %383 : vector<8x1xf32>
    %454 = tpu.concatenate %451, %452, %453 in 1 : vector<8x1xf32>, vector<8x1xf32>, vector<8x1xf32> -> vector<8x3xf32>
    %cst_106 = arith.constant dense<0.000000e+00> : vector<42x3xf32>
    %455 = tpu.matmul %447, %454, %cst_106 {dimension_numbers = #tpu.dot_dimension_numbers<[1], [0], [0], [1], [0, 0, 1, 1], [], []>} : vector<42x8xf32>, vector<8x3xf32>, vector<42x3xf32> -> vector<42x3xf32>
    %456 = arith.addf %377, %455 : vector<42x3xf32>
    %c0_107 = arith.constant 0 : index
    %c48 = arith.constant 48 : index
    %c0_108 = arith.constant 0 : index
    %457 = vector.load %arg4[%c0_107, %c48, %c0_108] : memref<2x176x128xf32, #tpu.memory_space<vmem>>, vector<1x42x3xf32>
    %458 = vector.shape_cast %457 : vector<1x42x3xf32> to vector<42x3xf32>
    %459 = vector.shape_cast %456 : vector<42x3xf32> to vector<1x42x3xf32>
    tpu.vector_store %arg4[%c0_107, %c48, %c0_108], %459 {strides = array<i32>} : memref<2x176x128xf32, #tpu.memory_space<vmem>>, vector<1x42x3xf32>,
    %460 = vector.broadcast %375 : vector<42x1xf32> to vector<42x128xf32>
    %461 = vector.broadcast %40 : vector<1x128xf32> to vector<42x128xf32>
    %462 = arith.addf %460, %461 : vector<42x128xf32>
    %463 = vector.broadcast %371 : vector<42x1xf32> to vector<42x128xf32>
    %464 = vector.broadcast %30 : vector<1x128xf32> to vector<42x128xf32>
    %465 = arith.mulf %463, %464 : vector<42x128xf32>
    %466 = vector.broadcast %372 : vector<42x1xf32> to vector<42x128xf32>
    %467 = vector.broadcast %31 : vector<1x128xf32> to vector<42x128xf32>
    %468 = arith.mulf %466, %467 : vector<42x128xf32>
    %469 = arith.addf %465, %468 : vector<42x128xf32>
    %470 = vector.broadcast %373 : vector<42x1xf32> to vector<42x128xf32>
    %471 = vector.broadcast %32 : vector<1x128xf32> to vector<42x128xf32>
    %472 = arith.mulf %470, %471 : vector<42x128xf32>
    %473 = arith.addf %469, %472 : vector<42x128xf32>
    %cst_109 = arith.constant 2.000000e+00 : f32
    %474 = vector.broadcast %cst_109 : f32 to vector<42x128xf32>
    %475 = arith.mulf %474, %473 : vector<42x128xf32>
    %476 = arith.subf %462, %475 : vector<42x128xf32>
    %cst_110 = arith.constant 0.000000e+00 : f32
    %477 = vector.broadcast %cst_110 : f32 to vector<42x128xf32>
    %478 = arith.maximumf %476, %477 : vector<42x128xf32>
    %cst_111 = arith.constant 9.99999997E-7 : f32
    %479 = vector.broadcast %cst_111 : f32 to vector<42x128xf32>
    %480 = arith.addf %478, %479 : vector<42x128xf32>
    %481 = tpu.reciprocal %480 {approx = true} : vector<42x128xf32> -> vector<42x128xf32>
    %cst_112 = arith.constant dense<0.000000e+00> : vector<128xf32>
    %482 = vector.multi_reduction <add>, %481, %cst_112 [0] : vector<42x128xf32> to vector<128xf32>
    %483 = vector.shape_cast %482 : vector<128xf32> to vector<1x128xf32>
    %484 = tpu.reciprocal %483 : vector<1x128xf32> -> vector<1x128xf32>
    %485 = vector.broadcast %484 : vector<1x128xf32> to vector<42x128xf32>
    %486 = arith.mulf %481, %485 : vector<42x128xf32>
    %c0_113 = arith.constant 0 : index
    %c0_114 = arith.constant 0 : index
    %c0_115 = arith.constant 0 : index
    %487 = vector.load %arg6[%c0_113, %c0_114, %c0_115] : memref<2x42x128xf32, #tpu.memory_space<vmem>>, vector<1x42x128xf32>
    %488 = vector.shape_cast %487 : vector<1x42x128xf32> to vector<42x128xf32>
    %489 = vector.shape_cast %486 : vector<42x128xf32> to vector<1x42x128xf32>
    tpu.vector_store %arg6[%c0_113, %c0_114, %c0_115], %489 {strides = array<i32>} : memref<2x42x128xf32, #tpu.memory_space<vmem>>, vector<1x42x128xf32>,
    %cst_116 = arith.constant dense<0.000000e+00> : vector<3x128xf32>
    %490 = tpu.matmul %456, %486, %cst_116 {dimension_numbers = #tpu.dot_dimension_numbers<[0], [0], [1], [1], [0, 1, 1, 1], [], []>} : vector<42x3xf32>, vector<42x128xf32>, vector<3x128xf32> -> vector<3x128xf32>
    %c0_117 = arith.constant 0 : index
    %c0_118 = arith.constant 0 : index
    %c0_119 = arith.constant 0 : index
    %491 = vector.load %arg5[%c0_117, %c0_118, %c0_119] : memref<2x3x128xf32, #tpu.memory_space<vmem>>, vector<1x3x128xf32>
    %492 = vector.shape_cast %491 : vector<1x3x128xf32> to vector<3x128xf32>
    %493 = vector.shape_cast %490 : vector<3x128xf32> to vector<1x3x128xf32>
    tpu.vector_store %arg5[%c0_117, %c0_118, %c0_119], %493 {strides = array<i32>} : memref<2x3x128xf32, #tpu.memory_space<vmem>>, vector<1x3x128xf32>,
    %494 = arith.mulf %370#1, %18 : vector<42x1xf32>
    %495 = arith.mulf %370#1, %19 : vector<42x1xf32>
    %496 = arith.mulf %370#1, %20 : vector<42x1xf32>
    %497 = arith.mulf %370#1, %370#1 : vector<42x1xf32>
    %498 = arith.mulf %497, %25 : vector<42x1xf32>
    %499 = vector.broadcast %370#1 : vector<42x1xf32> to vector<42x3xf32>
    %500 = arith.mulf %499, %17 : vector<42x3xf32>
    %c1_120 = arith.constant 1 : index
    %c6_121 = arith.constant 6 : index
    %c0_122 = arith.constant 0 : index
    %501 = vector.load %arg4[%c1_120, %c6_121, %c0_122] : memref<2x176x128xf32, #tpu.memory_space<vmem>>, vector<1x42x3xf32>
    %502 = vector.shape_cast %501 : vector<1x42x3xf32> to vector<42x3xf32>
    %503 = vector.shape_cast %500 : vector<42x3xf32> to vector<1x42x3xf32>
    tpu.vector_store %arg4[%c1_120, %c6_121, %c0_122], %503 {strides = array<i32>} : memref<2x176x128xf32, #tpu.memory_space<vmem>>, vector<1x42x3xf32>,
    %504 = vector.extract_strided_slice %163 {offsets = [0, 1], sizes = [8, 1], strides = [1, 1]} : vector<24x4xf32> to vector<8x1xf32>
    %505 = vector.extract_strided_slice %163 {offsets = [8, 1], sizes = [8, 1], strides = [1, 1]} : vector<24x4xf32> to vector<8x1xf32>
    %506 = vector.extract_strided_slice %163 {offsets = [16, 1], sizes = [8, 1], strides = [1, 1]} : vector<24x4xf32> to vector<8x1xf32>
    %507 = vector.extract_strided_slice %163 {offsets = [0, 3], sizes = [8, 1], strides = [1, 1]} : vector<24x4xf32> to vector<8x1xf32>
    %508 = vector.extract_strided_slice %163 {offsets = [8, 3], sizes = [8, 1], strides = [1, 1]} : vector<24x4xf32> to vector<8x1xf32>
    %509 = vector.extract_strided_slice %163 {offsets = [16, 3], sizes = [8, 1], strides = [1, 1]} : vector<24x4xf32> to vector<8x1xf32>
    %510 = vector.extract_strided_slice %170 {offsets = [1, 0], sizes = [1, 8], strides = [1, 1]} : vector<4x24xf32> to vector<1x8xf32>
    %511 = vector.extract_strided_slice %170 {offsets = [1, 8], sizes = [1, 8], strides = [1, 1]} : vector<4x24xf32> to vector<1x8xf32>
    %512 = vector.extract_strided_slice %170 {offsets = [1, 16], sizes = [1, 8], strides = [1, 1]} : vector<4x24xf32> to vector<1x8xf32>
    %513 = vector.extract_strided_slice %342 {offsets = [0, 8], sizes = [42, 8], strides = [1, 1]} : vector<42x16xf32> to vector<42x8xf32>
    %514 = vector.extract_strided_slice %344 {offsets = [0, 8], sizes = [42, 8], strides = [1, 1]} : vector<42x16xf32> to vector<42x8xf32>
    %c1_123 = arith.constant 1 : index
    %c132_124 = arith.constant 132 : index
    %c0_125 = arith.constant 0 : index
    %515 = vector.load %arg4[%c1_123, %c132_124, %c0_125] : memref<2x176x128xf32, #tpu.memory_space<vmem>>, vector<1x42x8xf32>
    %516 = vector.shape_cast %515 : vector<1x42x8xf32> to vector<42x8xf32>
    %517 = vector.shape_cast %513 : vector<42x8xf32> to vector<1x42x8xf32>
    tpu.vector_store %arg4[%c1_123, %c132_124, %c0_125], %517 {strides = array<i32>} : memref<2x176x128xf32, #tpu.memory_space<vmem>>, vector<1x42x8xf32>,
    %518 = arith.mulf %510, %510 : vector<1x8xf32>
    %519 = arith.mulf %511, %511 : vector<1x8xf32>
    %520 = arith.addf %518, %519 : vector<1x8xf32>
    %521 = arith.mulf %512, %512 : vector<1x8xf32>
    %522 = arith.addf %520, %521 : vector<1x8xf32>
    %523 = vector.broadcast %498 : vector<42x1xf32> to vector<42x8xf32>
    %524 = vector.broadcast %522 : vector<1x8xf32> to vector<42x8xf32>
    %525 = arith.addf %523, %524 : vector<42x8xf32>
    %526 = vector.broadcast %494 : vector<42x1xf32> to vector<42x8xf32>
    %527 = vector.broadcast %510 : vector<1x8xf32> to vector<42x8xf32>
    %528 = arith.mulf %526, %527 : vector<42x8xf32>
    %529 = vector.broadcast %495 : vector<42x1xf32> to vector<42x8xf32>
    %530 = vector.broadcast %511 : vector<1x8xf32> to vector<42x8xf32>
    %531 = arith.mulf %529, %530 : vector<42x8xf32>
    %532 = arith.addf %528, %531 : vector<42x8xf32>
    %533 = vector.broadcast %496 : vector<42x1xf32> to vector<42x8xf32>
    %534 = vector.broadcast %512 : vector<1x8xf32> to vector<42x8xf32>
    %535 = arith.mulf %533, %534 : vector<42x8xf32>
    %536 = arith.addf %532, %535 : vector<42x8xf32>
    %cst_126 = arith.constant 2.000000e+00 : f32
    %537 = vector.broadcast %cst_126 : f32 to vector<42x8xf32>
    %538 = arith.mulf %537, %536 : vector<42x8xf32>
    %539 = arith.subf %525, %538 : vector<42x8xf32>
    %cst_127 = arith.constant dense<0x7F800000> : vector<8xf32>
    %540 = vector.multi_reduction <minimumf>, %539, %cst_127 [0] : vector<42x8xf32> to vector<8xf32>
    %541 = vector.shape_cast %540 : vector<8xf32> to vector<1x8xf32>
    %542 = vector.broadcast %541 : vector<1x8xf32> to vector<42x8xf32>
    %543 = arith.cmpf ole, %539, %542 : vector<42x8xf32>
    %cst_128 = arith.constant 0x7F800000 : f32
    %544 = vector.broadcast %cst_128 : f32 to vector<42x8xf32>
    %545 = arith.select %543, %544, %539 : vector<42x8xi1>, vector<42x8xf32>
    %cst_129 = arith.constant dense<0x7F800000> : vector<8xf32>
    %546 = vector.multi_reduction <minimumf>, %545, %cst_129 [0] : vector<42x8xf32> to vector<8xf32>
    %547 = vector.shape_cast %546 : vector<8xf32> to vector<1x8xf32>
    %548 = vector.broadcast %547 : vector<1x8xf32> to vector<42x8xf32>
    %549 = arith.cmpf ole, %545, %548 : vector<42x8xf32>
    %cst_130 = arith.constant 0x7F800000 : f32
    %550 = vector.broadcast %cst_130 : f32 to vector<42x8xf32>
    %551 = arith.select %549, %550, %545 : vector<42x8xi1>, vector<42x8xf32>
    %cst_131 = arith.constant dense<0x7F800000> : vector<8xf32>
    %552 = vector.multi_reduction <minimumf>, %551, %cst_131 [0] : vector<42x8xf32> to vector<8xf32>
    %553 = vector.shape_cast %552 : vector<8xf32> to vector<1x8xf32>
    %554 = vector.broadcast %553 : vector<1x8xf32> to vector<42x8xf32>
    %555 = arith.cmpf ole, %551, %554 : vector<42x8xf32>
    %cst_132 = arith.constant 0x7F800000 : f32
    %556 = vector.broadcast %cst_132 : f32 to vector<42x8xf32>
    %557 = arith.select %555, %556, %551 : vector<42x8xi1>, vector<42x8xf32>
    %cst_133 = arith.constant dense<0x7F800000> : vector<8xf32>
    %558 = vector.multi_reduction <minimumf>, %557, %cst_133 [0] : vector<42x8xf32> to vector<8xf32>
    %559 = vector.shape_cast %558 : vector<8xf32> to vector<1x8xf32>
    %560 = vector.broadcast %559 : vector<1x8xf32> to vector<42x8xf32>
    %561 = arith.cmpf ole, %557, %560 : vector<42x8xf32>
    %cst_134 = arith.constant 0x7F800000 : f32
    %562 = vector.broadcast %cst_134 : f32 to vector<42x8xf32>
    %563 = arith.select %561, %562, %557 : vector<42x8xi1>, vector<42x8xf32>
    %cst_135 = arith.constant dense<0x7F800000> : vector<8xf32>
    %564 = vector.multi_reduction <minimumf>, %563, %cst_135 [0] : vector<42x8xf32> to vector<8xf32>
    %565 = vector.shape_cast %564 : vector<8xf32> to vector<1x8xf32>
    %566 = vector.broadcast %565 : vector<1x8xf32> to vector<42x8xf32>
    %567 = arith.cmpf ole, %539, %566 : vector<42x8xf32>
    %568 = arith.extui %567 : vector<42x8xi1> to vector<42x8xi32>
    %569 = arith.sitofp %568 : vector<42x8xi32> to vector<42x8xf32>
    %570 = arith.mulf %514, %569 : vector<42x8xf32>
    %c1_136 = arith.constant 1 : index
    %c90_137 = arith.constant 90 : index
    %c0_138 = arith.constant 0 : index
    %571 = vector.load %arg4[%c1_136, %c90_137, %c0_138] : memref<2x176x128xf32, #tpu.memory_space<vmem>>, vector<1x42x8xf32>
    %572 = vector.shape_cast %571 : vector<1x42x8xf32> to vector<42x8xf32>
    %573 = vector.shape_cast %570 : vector<42x8xf32> to vector<1x42x8xf32>
    tpu.vector_store %arg4[%c1_136, %c90_137, %c0_138], %573 {strides = array<i32>} : memref<2x176x128xf32, #tpu.memory_space<vmem>>, vector<1x42x8xf32>,
    %574 = arith.subf %507, %504 : vector<8x1xf32>
    %575 = arith.subf %508, %505 : vector<8x1xf32>
    %576 = arith.subf %509, %506 : vector<8x1xf32>
    %577 = tpu.concatenate %574, %575, %576 in 1 : vector<8x1xf32>, vector<8x1xf32>, vector<8x1xf32> -> vector<8x3xf32>
    %cst_139 = arith.constant dense<0.000000e+00> : vector<42x3xf32>
    %578 = tpu.matmul %570, %577, %cst_139 {dimension_numbers = #tpu.dot_dimension_numbers<[1], [0], [0], [1], [0, 0, 1, 1], [], []>} : vector<42x8xf32>, vector<8x3xf32>, vector<42x3xf32> -> vector<42x3xf32>
    %579 = arith.addf %500, %578 : vector<42x3xf32>
    %c1_140 = arith.constant 1 : index
    %c48_141 = arith.constant 48 : index
    %c0_142 = arith.constant 0 : index
    %580 = vector.load %arg4[%c1_140, %c48_141, %c0_142] : memref<2x176x128xf32, #tpu.memory_space<vmem>>, vector<1x42x3xf32>
    %581 = vector.shape_cast %580 : vector<1x42x3xf32> to vector<42x3xf32>
    %582 = vector.shape_cast %579 : vector<42x3xf32> to vector<1x42x3xf32>
    tpu.vector_store %arg4[%c1_140, %c48_141, %c0_142], %582 {strides = array<i32>} : memref<2x176x128xf32, #tpu.memory_space<vmem>>, vector<1x42x3xf32>,
    %583 = vector.broadcast %498 : vector<42x1xf32> to vector<42x128xf32>
    %584 = vector.broadcast %55 : vector<1x128xf32> to vector<42x128xf32>
    %585 = arith.addf %583, %584 : vector<42x128xf32>
    %586 = vector.broadcast %494 : vector<42x1xf32> to vector<42x128xf32>
    %587 = vector.broadcast %45 : vector<1x128xf32> to vector<42x128xf32>
    %588 = arith.mulf %586, %587 : vector<42x128xf32>
    %589 = vector.broadcast %495 : vector<42x1xf32> to vector<42x128xf32>
    %590 = vector.broadcast %46 : vector<1x128xf32> to vector<42x128xf32>
    %591 = arith.mulf %589, %590 : vector<42x128xf32>
    %592 = arith.addf %588, %591 : vector<42x128xf32>
    %593 = vector.broadcast %496 : vector<42x1xf32> to vector<42x128xf32>
    %594 = vector.broadcast %47 : vector<1x128xf32> to vector<42x128xf32>
    %595 = arith.mulf %593, %594 : vector<42x128xf32>
    %596 = arith.addf %592, %595 : vector<42x128xf32>
    %cst_143 = arith.constant 2.000000e+00 : f32
    %597 = vector.broadcast %cst_143 : f32 to vector<42x128xf32>
    %598 = arith.mulf %597, %596 : vector<42x128xf32>
    %599 = arith.subf %585, %598 : vector<42x128xf32>
    %cst_144 = arith.constant 0.000000e+00 : f32
    %600 = vector.broadcast %cst_144 : f32 to vector<42x128xf32>
    %601 = arith.maximumf %599, %600 : vector<42x128xf32>
    %cst_145 = arith.constant 9.99999997E-7 : f32
    %602 = vector.broadcast %cst_145 : f32 to vector<42x128xf32>
    %603 = arith.addf %601, %602 : vector<42x128xf32>
    %604 = tpu.reciprocal %603 {approx = true} : vector<42x128xf32> -> vector<42x128xf32>
    %cst_146 = arith.constant dense<0.000000e+00> : vector<128xf32>
    %605 = vector.multi_reduction <add>, %604, %cst_146 [0] : vector<42x128xf32> to vector<128xf32>
    %606 = vector.shape_cast %605 : vector<128xf32> to vector<1x128xf32>
    %607 = tpu.reciprocal %606 : vector<1x128xf32> -> vector<1x128xf32>
    %608 = vector.broadcast %607 : vector<1x128xf32> to vector<42x128xf32>
    %609 = arith.mulf %604, %608 : vector<42x128xf32>
    %c1_147 = arith.constant 1 : index
    %c0_148 = arith.constant 0 : index
    %c0_149 = arith.constant 0 : index
    %610 = vector.load %arg6[%c1_147, %c0_148, %c0_149] : memref<2x42x128xf32, #tpu.memory_space<vmem>>, vector<1x42x128xf32>
    %611 = vector.shape_cast %610 : vector<1x42x128xf32> to vector<42x128xf32>
    %612 = vector.shape_cast %609 : vector<42x128xf32> to vector<1x42x128xf32>
    tpu.vector_store %arg6[%c1_147, %c0_148, %c0_149], %612 {strides = array<i32>} : memref<2x42x128xf32, #tpu.memory_space<vmem>>, vector<1x42x128xf32>,
    %cst_150 = arith.constant dense<0.000000e+00> : vector<3x128xf32>
    %613 = tpu.matmul %579, %609, %cst_150 {dimension_numbers = #tpu.dot_dimension_numbers<[0], [0], [1], [1], [0, 1, 1, 1], [], []>} : vector<42x3xf32>, vector<42x128xf32>, vector<3x128xf32> -> vector<3x128xf32>
    %c1_151 = arith.constant 1 : index
    %c0_152 = arith.constant 0 : index
    %c0_153 = arith.constant 0 : index
    %614 = vector.load %arg5[%c1_151, %c0_152, %c0_153] : memref<2x3x128xf32, #tpu.memory_space<vmem>>, vector<1x3x128xf32>
    %615 = vector.shape_cast %614 : vector<1x3x128xf32> to vector<3x128xf32>
    %616 = vector.shape_cast %613 : vector<3x128xf32> to vector<1x3x128xf32>
    tpu.vector_store %arg5[%c1_151, %c0_152, %c0_153], %616 {strides = array<i32>} : memref<2x3x128xf32, #tpu.memory_space<vmem>>, vector<1x3x128xf32>,
    return
  }
  func.func @transform_0(%arg0: i32) -> (i32, i32, i32) {
    %c0_i32 = arith.constant 0 : i32
    %c0_i32_0 = arith.constant 0 : i32
    %c0_i32_1 = arith.constant 0 : i32
    return %arg0, %c0_i32, %c0_i32_0 : i32, i32, i32
  }
  func.func @transform_1(%arg0: i32) -> (i32, i32, i32) {
    %c0_i32 = arith.constant 0 : i32
    %c0_i32_0 = arith.constant 0 : i32
    %c0_i32_1 = arith.constant 0 : i32
    return %arg0, %c0_i32, %c0_i32_0 : i32, i32, i32
  }
  func.func @transform_2(%arg0: i32) -> (i32, i32) {
    %c0_i32 = arith.constant 0 : i32
    %c0_i32_0 = arith.constant 0 : i32
    %c0_i32_1 = arith.constant 0 : i32
    return %c0_i32, %c0_i32_0 : i32, i32
  }
  func.func @transform_3(%arg0: i32) -> (i32, i32, i32) {
    %c0_i32 = arith.constant 0 : i32
    %c0_i32_0 = arith.constant 0 : i32
    %c0_i32_1 = arith.constant 0 : i32
    return %arg0, %c0_i32, %c0_i32_0 : i32, i32, i32
  }
  func.func @transform_4(%arg0: i32) -> (i32, i32, i32) {
    %c0_i32 = arith.constant 0 : i32
    %c0_i32_0 = arith.constant 0 : i32
    %c0_i32_1 = arith.constant 0 : i32
    return %arg0, %c0_i32, %c0_i32_0 : i32, i32, i32
  }
  func.func @transform_5(%arg0: i32) -> (i32, i32, i32) {
    %c0_i32 = arith.constant 0 : i32
    %c0_i32_0 = arith.constant 0 : i32
    %c0_i32_1 = arith.constant 0 : i32
    return %arg0, %c0_i32, %c0_i32_0 : i32, i32, i32
  }
}

</mosaic_0001>

<llo_original>
// kernel: custom-call.4
$region0: #{custom-call.4}
  %s0 = inlined_call_operand.vmem [shape: f32[4,128], index: 0, kind: output, shape index: {}]

// kernel: cage_skinning_forward.1
$region0: #{cage_skinning_forward.1}
  #allocation0 [shape = 'u32[]', space=smem, size = 0x4, offset = 0x4, fixed_abs, tag = 'smem constant byte address 0x4 - core index']
  #allocation1 [shape = 'u32[72,128]{1,0:T(1,128)}', space=vmem, size = 0x9000, scoped, tag = 'internal scratch']
  %s0 = inlined_call_operand.vmem [shape: f32[2,3,128], index: 0, kind: input, shape index: {}]
  %s1 = inlined_call_operand.vmem [shape: f32[2,3,128], index: 1, kind: input, shape index: {}]
  %s2 = inlined_call_operand.vmem [shape: f32[200,128], index: 2, kind: input, shape index: {}]
  %s3 = inlined_call_operand.vmem [shape: f32[2,176,128], index: 3, kind: output, shape index: {0}]
  %s4 = inlined_call_operand.vmem [shape: f32[2,3,128], index: 4, kind: output, shape index: {1}]
  %s5 = inlined_call_operand.vmem [shape: f32[2,42,128], index: 5, kind: output, shape index: {2}]
  %6 = xla_tuple %s3, %s4, %s5
  %s7 = sld [smem:[#allocation0]]
  $region45: #{cage_skinning_forward.1} parent=0
    _
  %s9 = ssub.s32 1, %s7
  %s10 = scalar_select 0, %s9, %s7
  // Predicated region
  $region2: #{cage_skinning_forward.1} parent=0 // pred_check
    _
  $region3: #{cage_skinning_forward.1} parent=0 // pred_check_branch
    %12 = sbr.rel (0) target = $region5
  $region4: #{cage_skinning_forward.1} parent=0 // pred_region
    _
  $region5: #{cage_skinning_forward.1} parent=0 // pred_fallthru
    _
  // Predicated region
  $region6: #{cage_skinning_forward.1} parent=0 // pred_check
    _
  $region7: #{cage_skinning_forward.1} parent=0 // pred_check_branch
    %14 = sbr.rel (0) target = $region9
  $region8: #{cage_skinning_forward.1} parent=0 // pred_region
    _
  $region9: #{cage_skinning_forward.1} parent=0 // pred_fallthru
    _
  // Predicated region
  $region10: #{cage_skinning_forward.1} parent=0 // pred_check
    _
  $region11: #{cage_skinning_forward.1} parent=0 // pred_check_branch
    %16 = sbr.rel (0) target = $region13
  $region12: #{cage_skinning_forward.1} parent=0 // pred_region
    _
  $region13: #{cage_skinning_forward.1} parent=0 // pred_fallthru
    _
  %v17 = vld [vmem:[%s2] sm:$0xff]
  %v18 = vld [vmem:[%s2 + $0x8] sm:$0xff]
  %v19 = vld [vmem:[%s2 + $0x10] sm:$0xff]
  %v20 = vld [vmem:[%s2 + $0x18] sm:$0xff]
  %v21 = vld [vmem:[%s2 + $0x20] sm:$0xff]
  %v22 = vld [vmem:[%s2 + $0x28] sm:$0xff]
  %v23 = vld [vmem:[%s2 + $0x30] sm:$0xff]
  %v24 = vld [vmem:[%s2 + $0x20] sm:$0x1]
  %v25 = vld [vmem:[%s2 + $0x38] sm:$0xff]
  %v26 = vld [vmem:[%s2 + $0x40] sm:$0xff]
  %v27 = vld [vmem:[%s2 + $0x48] sm:$0xff]
  %v28 = vld [vmem:[%s2 + $0x50] sm:$0xff]
  %v29 = vld [vmem:[%s2 + $0x58] sm:$0xff]
  %v30 = vld [vmem:[%s2 + $0x60] sm:$0xff]
  %v31 = vld [vmem:[%s2 + $0x68] sm:$0xff]
  %v32 = vld [vmem:[%s2 + $0x70] sm:$0x3]
  %v33 = vld [vmem:[%s2 + $0x72] sm:$0xff]
  %v34 = vld [vmem:[%s2 + $0x7a] sm:$0xff]
  %v35 = vld [vmem:[%s2 + $0x82] sm:$0xff]
  %v36 = vld [vmem:[%s2 + $0x8a] sm:$0xff]
  %v37 = vld [vmem:[%s2 + $0x92] sm:$0xff]
  %v38 = vld [vmem:[%s2 + $0x9a] sm:$0x3]
  %v39 = vld [vmem:[%s2 + $0x9c] sm:$0xff]
  %v40 = vld [vmem:[%s2 + $0xa4] sm:$0xff]
  %v41 = vld [vmem:[%s2 + $0xac] sm:$0xff]
  %v42 = vld [vmem:[%s2 + $0xb4] sm:$0xff]
  %v43 = vld [vmem:[%s2 + $0xbc] sm:$0xff]
  %v44 = vld [vmem:[%s2 + $0xc4] sm:$0x3]
  %v45 = vmul.f32 %v27, %v27
  %v46 = vmul.f32 %v28, %v28
  %v47 = vmul.f32 %v29, %v29
  %v48 = vmul.f32 %v30, %v30
  %v49 = vmul.f32 %v31, %v31
  %v50 = vmul.f32 %v32, %v32
  %57 = vrot.lane.b32.xlu0 %v45, 127
  %v58 = vpop.permute.xlu0 %57
  %59 = vrot.lane.b32.xlu0 %v46, 127
  %v60 = vpop.permute.xlu0 %59
  %61 = vrot.lane.b32.xlu0 %v47, 127
  %v62 = vpop.permute.xlu0 %61
  %63 = vrot.lane.b32.xlu0 %v48, 127
  %v64 = vpop.permute.xlu0 %63
  %65 = vrot.lane.b32.xlu0 %v49, 127
  %v66 = vpop.permute.xlu0 %65
  %67 = vrot.lane.b32.xlu0 %v50, 127
  %v68 = vpop.permute.xlu0 %67
  %v75 = vadd.f32 %v45, %v58
  %v76 = vadd.f32 %v46, %v60
  %v77 = vadd.f32 %v47, %v62
  %v78 = vadd.f32 %v48, %v64
  %v79 = vadd.f32 %v49, %v66
  %v80 = vadd.f32 %v50, %v68
  %81 = vrot.lane.b32.xlu0 %v45, 126
  %v82 = vpop.permute.xlu0 %81
  %83 = vrot.lane.b32.xlu0 %v46, 126
  %v84 = vpop.permute.xlu0 %83
  %85 = vrot.lane.b32.xlu0 %v47, 126
  %v86 = vpop.permute.xlu0 %85
  %87 = vrot.lane.b32.xlu0 %v48, 126
  %v88 = vpop.permute.xlu0 %87
  %89 = vrot.lane.b32.xlu0 %v49, 126
  %v90 = vpop.permute.xlu0 %89
  %91 = vrot.lane.b32.xlu0 %v50, 126
  %v92 = vpop.permute.xlu0 %91
  %v99 = vadd.f32 %v75, %v82
  %v100 = vadd.f32 %v76, %v84
  %v101 = vadd.f32 %v77, %v86
  %v102 = vadd.f32 %v78, %v88
  %v103 = vadd.f32 %v79, %v90
  %v104 = vadd.f32 %v80, %v92
  %v105 = vld [vmem:[%s0] sm:$0x7]
  %v106 = vld [vmem:[%s1] sm:$0x7]
  %v107 = vmul.f32 %v105, %v105
  %v109 = vrot.slane %v107, 1
  %v111 = vadd.f32 %v107, %v109
  %v112 = vrot.slane %v107, 2
  %v114 = vadd.f32 %v111, %v112
  %s115 = scalar_lea.vmem %s0, 4
  %v116 = vld [vmem:[%s115] sm:$0x7]
  %s117 = scalar_lea.vmem %s1, 4
  %v118 = vld [vmem:[%s117] sm:$0x7]
  %v119 = vmul.f32 %v116, %v116
  %v121 = vrot.slane %v119, 1
  %v123 = vadd.f32 %v119, %v121
  %v124 = vrot.slane %v119, 2
  %v126 = vadd.f32 %v123, %v124
  %128 = vset.pattern.permute.xlu0 0
  %129 = vperm.xlu0 %128, %v17
  %v130 = vpop.permute.xlu0 %129
  %133 = vset.pattern.permute.xlu0 0
  %134 = vperm.xlu0 %133, %v18
  %v135 = vpop.permute.xlu0 %134
  %138 = vset.pattern.permute.xlu0 0
  %139 = vperm.xlu0 %138, %v19
  %v140 = vpop.permute.xlu0 %139
  %143 = vset.pattern.permute.xlu0 0
  %144 = vperm.xlu0 %143, %v20
  %v145 = vpop.permute.xlu0 %144
  %v147 = vperm.slane %v105, 0
  %v148 = vmul.f32 %v130, %v147
  %v149 = vmul.f32 %v135, %v147
  %v150 = vmul.f32 %v140, %v147
  %v151 = vmul.f32 %v145, %v147
  %152 = vset.pattern.permute.xlu0 1
  %153 = vperm.xlu0 %152, %v17
  %v154 = vpop.permute.xlu0 %153
  %156 = vset.pattern.permute.xlu0 1
  %157 = vperm.xlu0 %156, %v18
  %v158 = vpop.permute.xlu0 %157
  %160 = vset.pattern.permute.xlu0 1
  %161 = vperm.xlu0 %160, %v19
  %v162 = vpop.permute.xlu0 %161
  %164 = vset.pattern.permute.xlu0 1
  %165 = vperm.xlu0 %164, %v20
  %v166 = vpop.permute.xlu0 %165
  %v168 = vperm.slane %v105, 1
  %v169 = vmul.f32 %v154, %v168
  %v170 = vmul.f32 %v158, %v168
  %v171 = vmul.f32 %v162, %v168
  %v172 = vmul.f32 %v166, %v168
  %v173 = vadd.f32 %v148, %v169
  %v174 = vadd.f32 %v149, %v170
  %v175 = vadd.f32 %v150, %v171
  %v176 = vadd.f32 %v151, %v172
  %177 = vset.pattern.permute.xlu0 2
  %178 = vperm.xlu0 %177, %v17
  %v179 = vpop.permute.xlu0 %178
  %181 = vset.pattern.permute.xlu0 2
  %182 = vperm.xlu0 %181, %v18
  %v183 = vpop.permute.xlu0 %182
  %185 = vset.pattern.permute.xlu0 2
  %186 = vperm.xlu0 %185, %v19
  %v187 = vpop.permute.xlu0 %186
  %189 = vset.pattern.permute.xlu0 2
  %190 = vperm.xlu0 %189, %v20
  %v191 = vpop.permute.xlu0 %190
  %v193 = vperm.slane %v105, 2
  %v194 = vmul.f32 %v179, %v193
  %v195 = vmul.f32 %v183, %v193
  %v196 = vmul.f32 %v187, %v193
  %v197 = vmul.f32 %v191, %v193
  %v198 = vadd.f32 %v173, %v194
  %v199 = vadd.f32 %v174, %v195
  %v200 = vadd.f32 %v175, %v196
  %v201 = vadd.f32 %v176, %v197
  %202 = vset.pattern.permute.xlu0 3
  %203 = vperm.xlu0 %202, %v17
  %v204 = vpop.permute.xlu0 %203
  %206 = vset.pattern.permute.xlu0 3
  %207 = vperm.xlu0 %206, %v18
  %v208 = vpop.permute.xlu0 %207
  %210 = vset.pattern.permute.xlu0 3
  %211 = vperm.xlu0 %210, %v19
  %v212 = vpop.permute.xlu0 %211
  %214 = vset.pattern.permute.xlu0 3
  %215 = vperm.xlu0 %214, %v20
  %v216 = vpop.permute.xlu0 %215
  %v218 = vadd.f32 %v198, %v204
  %v219 = vadd.f32 %v199, %v208
  %v220 = vadd.f32 %v200, %v212
  %v221 = vadd.f32 %v201, %v216
  %vm222 = vcmp.ge.f32.partialorder %v218, 0.0
  %vm223 = vcmp.ge.f32.partialorder %v219, 0.0
  %vm224 = vcmp.ge.f32.partialorder %v220, 0.0
  %vm225 = vcmp.ge.f32.partialorder %v221, 0.0
  %v226 = vmul.f32 %v218, 0.01
  %v227 = vmul.f32 %v219, 0.01
  %v228 = vmul.f32 %v220, 0.01
  %v229 = vmul.f32 %v221, 0.01
  %v230 = vsel %vm222, %v218, %v226
  %v231 = vsel %vm223, %v219, %v227
  %v232 = vsel %vm224, %v220, %v228
  %v233 = vsel %vm225, %v221, %v229
  %234 = vmax.xlane.f32.xlu0 %v230
  %v235 = vpop.xlane.xlu0 %234
  %236 = vmax.xlane.f32.xlu0 %v231
  %v237 = vpop.xlane.xlu0 %236
  %238 = vmax.xlane.f32.xlu0 %v232
  %v239 = vpop.xlane.xlu0 %238
  %240 = vmax.xlane.f32.xlu0 %v233
  %v241 = vpop.xlane.xlu0 %240
  %v242 = vperm.slane %v116, 0
  %v243 = vmul.f32 %v130, %v242
  %v244 = vmul.f32 %v135, %v242
  %v245 = vmul.f32 %v140, %v242
  %v246 = vmul.f32 %v145, %v242
  %v247 = vperm.slane %v116, 1
  %v248 = vmul.f32 %v154, %v247
  %v249 = vmul.f32 %v158, %v247
  %v250 = vmul.f32 %v162, %v247
  %v251 = vmul.f32 %v166, %v247
  %v252 = vadd.f32 %v243, %v248
  %v253 = vadd.f32 %v244, %v249
  %v254 = vadd.f32 %v245, %v250
  %v255 = vadd.f32 %v246, %v251
  %v256 = vperm.slane %v116, 2
  %v257 = vmul.f32 %v179, %v256
  %v258 = vmul.f32 %v183, %v256
  %v259 = vmul.f32 %v187, %v256
  %v260 = vmul.f32 %v191, %v256
  %v261 = vadd.f32 %v252, %v257
  %v262 = vadd.f32 %v253, %v258
  %v263 = vadd.f32 %v254, %v259
  %v264 = vadd.f32 %v255, %v260
  %v265 = vadd.f32 %v261, %v204
  %v266 = vadd.f32 %v262, %v208
  %v267 = vadd.f32 %v263, %v212
  %v268 = vadd.f32 %v264, %v216
  %vm269 = vcmp.ge.f32.partialorder %v265, 0.0
  %vm270 = vcmp.ge.f32.partialorder %v266, 0.0
  %vm271 = vcmp.ge.f32.partialorder %v267, 0.0
  %vm272 = vcmp.ge.f32.partialorder %v268, 0.0
  %v273 = vmul.f32 %v265, 0.01
  %v274 = vmul.f32 %v266, 0.01
  %v275 = vmul.f32 %v267, 0.01
  %v276 = vmul.f32 %v268, 0.01
  %v277 = vsel %vm269, %v265, %v273
  %v278 = vsel %vm270, %v266, %v274
  %v279 = vsel %vm271, %v267, %v275
  %v280 = vsel %vm272, %v268, %v276
  %281 = vmax.xlane.f32.xlu0 %v277
  %v282 = vpop.xlane.xlu0 %281
  %283 = vmax.xlane.f32.xlu0 %v278
  %v284 = vpop.xlane.xlu0 %283
  %285 = vmax.xlane.f32.xlu0 %v279
  %v286 = vpop.xlane.xlu0 %285
  %287 = vmax.xlane.f32.xlu0 %v280
  %v288 = vpop.xlane.xlu0 %287
  %v289 = vperm.slane %v106, 0
  %v290 = vmul.f32 %v130, %v289
  %v291 = vmul.f32 %v135, %v289
  %v292 = vmul.f32 %v140, %v289
  %v293 = vmul.f32 %v145, %v289
  %v294 = vperm.slane %v106, 1
  %v295 = vmul.f32 %v154, %v294
  %v296 = vmul.f32 %v158, %v294
  %v297 = vmul.f32 %v162, %v294
  %v298 = vmul.f32 %v166, %v294
  %v299 = vadd.f32 %v290, %v295
  %v300 = vadd.f32 %v291, %v296
  %v301 = vadd.f32 %v292, %v297
  %v302 = vadd.f32 %v293, %v298
  %v303 = vperm.slane %v106, 2
  %v304 = vmul.f32 %v179, %v303
  %v305 = vmul.f32 %v183, %v303
  %v306 = vmul.f32 %v187, %v303
  %v307 = vmul.f32 %v191, %v303
  %v308 = vadd.f32 %v299, %v304
  %v309 = vadd.f32 %v300, %v305
  %v310 = vadd.f32 %v301, %v306
  %v311 = vadd.f32 %v302, %v307
  %v312 = vadd.f32 %v308, %v204
  %v313 = vadd.f32 %v309, %v208
  %v314 = vadd.f32 %v310, %v212
  %v315 = vadd.f32 %v311, %v216
  %vm316 = vcmp.ge.f32.partialorder %v312, 0.0
  %vm317 = vcmp.ge.f32.partialorder %v313, 0.0
  %vm318 = vcmp.ge.f32.partialorder %v314, 0.0
  %vm319 = vcmp.ge.f32.partialorder %v315, 0.0
  %v320 = vmul.f32 %v312, 0.01
  %v321 = vmul.f32 %v313, 0.01
  %v322 = vmul.f32 %v314, 0.01
  %v323 = vmul.f32 %v315, 0.01
  %v324 = vsel %vm316, %v312, %v320
  %v325 = vsel %vm317, %v313, %v321
  %v326 = vsel %vm318, %v314, %v322
  %v327 = vsel %vm319, %v315, %v323
  %328 = vmax.xlane.f32.xlu0 %v324
  %v329 = vpop.xlane.xlu0 %328
  %330 = vmax.xlane.f32.xlu0 %v325
  %v331 = vpop.xlane.xlu0 %330
  %332 = vmax.xlane.f32.xlu0 %v326
  %v333 = vpop.xlane.xlu0 %332
  %334 = vmax.xlane.f32.xlu0 %v327
  %v335 = vpop.xlane.xlu0 %334
  %v336 = vperm.slane %v118, 0
  %v337 = vmul.f32 %v130, %v336
  %v338 = vmul.f32 %v135, %v336
  %v339 = vmul.f32 %v140, %v336
  %v340 = vmul.f32 %v145, %v336
  %v341 = vperm.slane %v118, 1
  %v342 = vmul.f32 %v154, %v341
  %v343 = vmul.f32 %v158, %v341
  %v344 = vmul.f32 %v162, %v341
  %v345 = vmul.f32 %v166, %v341
  %v346 = vadd.f32 %v337, %v342
  %v347 = vadd.f32 %v338, %v343
  %v348 = vadd.f32 %v339, %v344
  %v349 = vadd.f32 %v340, %v345
  %v350 = vperm.slane %v118, 2
  %v351 = vmul.f32 %v179, %v350
  %v352 = vmul.f32 %v183, %v350
  %v353 = vmul.f32 %v187, %v350
  %v354 = vmul.f32 %v191, %v350
  %v355 = vadd.f32 %v346, %v351
  %v356 = vadd.f32 %v347, %v352
  %v357 = vadd.f32 %v348, %v353
  %v358 = vadd.f32 %v349, %v354
  %v359 = vadd.f32 %v355, %v204
  %v360 = vadd.f32 %v356, %v208
  %v361 = vadd.f32 %v357, %v212
  %v362 = vadd.f32 %v358, %v216
  %vm363 = vcmp.ge.f32.partialorder %v359, 0.0
  %vm364 = vcmp.ge.f32.partialorder %v360, 0.0
  %vm365 = vcmp.ge.f32.partialorder %v361, 0.0
  %vm366 = vcmp.ge.f32.partialorder %v362, 0.0
  %v367 = vmul.f32 %v359, 0.01
  %v368 = vmul.f32 %v360, 0.01
  %v369 = vmul.f32 %v361, 0.01
  %v370 = vmul.f32 %v362, 0.01
  %v371 = vsel %vm363, %v359, %v367
  %v372 = vsel %vm364, %v360, %v368
  %v373 = vsel %vm365, %v361, %v369
  %v374 = vsel %vm366, %v362, %v370
  %375 = vmax.xlane.f32.xlu0 %v371
  %v376 = vpop.xlane.xlu0 %375
  %377 = vmax.xlane.f32.xlu0 %v372
  %v378 = vpop.xlane.xlu0 %377
  %379 = vmax.xlane.f32.xlu0 %v373
  %v380 = vpop.xlane.xlu0 %379
  %381 = vmax.xlane.f32.xlu0 %v374
  %v382 = vpop.xlane.xlu0 %381
  %vm383 = vcmask 7168
  %v384 = vsel %vm383, %v235, %v282
  %v385 = vsel %vm383, %v237, %v284
  %v386 = vsel %vm383, %v239, %v286
  %v387 = vsel %vm383, %v241, %v288
  %vm388 = vcmask 15360
  %v389 = vsel %vm388, %v384, %v329
  %v390 = vsel %vm388, %v385, %v331
  %v391 = vsel %vm388, %v386, %v333
  %v392 = vsel %vm388, %v387, %v335
  %vm393 = vcmask 23552
  %v394 = vsel %vm393, %v389, %v376
  %v395 = vsel %vm393, %v390, %v378
  %v396 = vsel %vm393, %v391, %v380
  %v397 = vsel %vm393, %v392, %v382
  %398 = vset.pattern.permute.xlu0 36
  %399 = vperm.xlu0 %398, %v17
  %v400 = vpop.permute.xlu0 %399
  %402 = vset.pattern.permute.xlu0 36
  %403 = vperm.xlu0 %402, %v18
  %v404 = vpop.permute.xlu0 %403
  %406 = vset.pattern.permute.xlu0 36
  %407 = vperm.xlu0 %406, %v19
  %v408 = vpop.permute.xlu0 %407
  %410 = vset.pattern.permute.xlu0 36
  %411 = vperm.xlu0 %410, %v20
  %v412 = vpop.permute.xlu0 %411
  %414 = vrot.lane.b32.xlu0 %v17, 124
  %v415 = vpop.permute.xlu0 %414
  %416 = vrot.lane.b32.xlu0 %v18, 124
  %v417 = vpop.permute.xlu0 %416
  %418 = vrot.lane.b32.xlu0 %v19, 124
  %v419 = vpop.permute.xlu0 %418
  %420 = vrot.lane.b32.xlu0 %v20, 124
  %v421 = vpop.permute.xlu0 %420
  %vm422 = vcmask 261120
  %v423 = vsel %vm422, %v415, 0
  %v425 = vsel %vm422, %v417, 0
  %v427 = vsel %vm422, %v419, 0
  %v429 = vsel %vm422, %v421, 0
  %431 = vmatpush.msra.mxu0 0.0
  %432 = vmatpush.msra.mxu0 0.0
  %433 = vmatpush.msra.mxu0 0.0
  %434 = vmatpush.msra.mxu0 0.0
  %435 = vmatpush.msra.mxu0 0.0
  %436 = vmatpush.msra.mxu0 0.0
  %437 = vmatpush.msra.mxu0 0.0
  %438 = vmatpush.msra.mxu0 0.0
  %439 = vmatpush.msra.mxu0 0.0
  %440 = vmatpush.msra.mxu0 0.0
  %441 = vmatpush.msra.mxu0 0.0
  %442 = vmatpush.msra.mxu0 0.0
  %443 = vmatpush.msra.mxu0 %v397
  %444 = vmatpush.msra.mxu0 %v396
  %445 = vmatpush.msra.mxu0 %v395
  %446 = vmatpush.msra.mxu0 %v394
  %447 = vmatmul.f32.gmra.mxu0 %v423
  %v448 = vpop.f32.mrf.mxu0
  %v449 = vadd.f32 %v400, %v448
  %450 = vmatmul.f32.gmra.mxu0 %v425
  %v451 = vpop.f32.mrf.mxu0
  %v452 = vadd.f32 %v404, %v451
  %453 = vmatmul.f32.gmra.mxu0 %v427
  %v454 = vpop.f32.mrf.mxu0
  %v455 = vadd.f32 %v408, %v454
  %456 = vmatmul.f32.gmra.mxu0 %v429
  %v457 = vpop.f32.mrf.mxu0
  %v458 = vadd.f32 %v412, %v457
  %459 = vdwg.mxu0
  %vm460 = vcmp.ge.f32.partialorder %v449, 0.0
  %vm461 = vcmp.ge.f32.partialorder %v452, 0.0
  %vm462 = vcmp.ge.f32.partialorder %v455, 0.0
  %vm463 = vcmp.ge.f32.partialorder %v458, 0.0
  %v464 = vmul.f32 %v449, 0.01
  %v465 = vmul.f32 %v452, 0.01
  %v466 = vmul.f32 %v455, 0.01
  %v467 = vmul.f32 %v458, 0.01
  %v468 = vsel %vm460, %v449, %v464
  %v469 = vsel %vm461, %v452, %v465
  %v470 = vsel %vm462, %v455, %v466
  %v471 = vsel %vm463, %v458, %v467
  %473 = vset.pattern.permute.xlu0 32
  %474 = vperm.xlu0 %473, %v21
  %v475 = vpop.permute.xlu0 %474
  %478 = vset.pattern.permute.xlu0 32
  %479 = vperm.xlu0 %478, %v22
  %v480 = vpop.permute.xlu0 %479
  %483 = vset.pattern.permute.xlu0 32
  %484 = vperm.xlu0 %483, %v23
  %v485 = vpop.permute.xlu0 %484
  %v487 = vsel %vm422, %v21, 0
  %v489 = vsel %vm422, %v22, 0
  %v491 = vsel %vm422, %v23, 0
  %493 = vmatpush.msra.mxu0 0.0
  %494 = vmatpush.msra.mxu0 0.0
  %495 = vmatpush.msra.mxu0 0.0
  %496 = vmatpush.msra.mxu0 0.0
  %497 = vmatpush.msra.mxu0 0.0
  %498 = vmatpush.msra.mxu0 0.0
  %499 = vmatpush.msra.mxu0 0.0
  %500 = vmatpush.msra.mxu0 0.0
  %501 = vmatpush.msra.mxu0 0.0
  %502 = vmatpush.msra.mxu0 0.0
  %503 = vmatpush.msra.mxu0 0.0
  %504 = vmatpush.msra.mxu0 0.0
  %505 = vmatpush.msra.mxu0 %v471
  %506 = vmatpush.msra.mxu0 %v470
  %507 = vmatpush.msra.mxu0 %v469
  %508 = vmatpush.msra.mxu0 %v468
  %509 = vmatmul.f32.gmra.mxu0 %v487
  %v510 = vpop.f32.mrf.mxu0
  %v511 = vadd.f32 %v475, %v510
  %512 = vmatmul.f32.gmra.mxu0 %v489
  %v513 = vpop.f32.mrf.mxu0
  %v514 = vadd.f32 %v480, %v513
  %515 = vmatmul.f32.gmra.mxu0 %v491
  %v516 = vpop.f32.mrf.mxu0
  %v517 = vadd.f32 %v485, %v516
  %518 = vdwg.mxu0
  %v519 = vmax.f32 %v511, -1.0
  %v520 = vmax.f32 %v514, -1.0
  %v521 = vmax.f32 %v517, -1.0
  %v522 = vmin.f32 %v519, 1.0
  %v523 = vmin.f32 %v520, 1.0
  %v524 = vmin.f32 %v521, 1.0
  %v525 = vperm.slane %v24, 0
  %526 = vxpose.xlu0.b32.start [1/16] %v468, 128
  %527 = vxpose.xlu0.b32.cont [2/16] %v469, 128
  %528 = vxpose.xlu0.b32.cont [3/16] %v470, 128
  %529 = vxpose.xlu0.b32.cont [4/16] %v471, 128
  %530 = vxpose.xlu0.b32.cont [5/16] 0.0, 128
  %531 = vxpose.xlu0.b32.cont [6/16] 0.0, 128
  %532 = vxpose.xlu0.b32.cont [7/16] 0.0, 128
  %533 = vxpose.xlu0.b32.cont [8/16] 0.0, 128
  %534 = vxpose.xlu0.b32.cont [9/16] 0.0, 128
  %535 = vxpose.xlu0.b32.cont [10/16] 0.0, 128
  %536 = vxpose.xlu0.b32.cont [11/16] 0.0, 128
  %537 = vxpose.xlu0.b32.cont [12/16] 0.0, 128
  %538 = vxpose.xlu0.b32.cont [13/16] 0.0, 128
  %539 = vxpose.xlu0.b32.cont [14/16] 0.0, 128
  %540 = vxpose.xlu0.b32.cont [15/16] 0.0, 128
  %541 = vxpose.xlu0.b32.end [16/16] 0.0, 128
  %v542 = vpop.trf.xlu0
  %v543 = vpop.trf.xlu0
  %v544 = vpop.trf.xlu0
  %v545 = vpop.trf.xlu0
  %v546 = vpop.trf.xlu0
  %v547 = vpop.trf.xlu0
  %v548 = vpop.trf.xlu0
  %v549 = vpop.trf.xlu0
  %v550 = vpop.trf.xlu0
  %v551 = vpop.trf.xlu0
  %v552 = vpop.trf.xlu0
  %v553 = vpop.trf.xlu0
  %v554 = vpop.trf.xlu0
  %v555 = vpop.trf.xlu0
  %v556 = vpop.trf.xlu0
  %v557 = vpop.trf.xlu0
  %559 = vrot.lane.b32.xlu0 %v525, 95
  %v560 = vpop.permute.xlu0 %559
  %v563 = vsel %vm422, %v542, 0
  %565 = vmatpush.xpose.msra.mxu0 0.0
  %566 = vmatpush.xpose.msra.mxu0 0.0
  %567 = vmatpush.xpose.msra.mxu0 0.0
  %568 = vmatpush.xpose.msra.mxu0 0.0
  %569 = vmatpush.xpose.msra.mxu0 0.0
  %570 = vmatpush.xpose.msra.mxu0 0.0
  %571 = vmatpush.xpose.msra.mxu0 0.0
  %572 = vmatpush.xpose.msra.mxu0 0.0
  %573 = vmatpush.xpose.msra.mxu0 0.0
  %574 = vmatpush.xpose.msra.mxu0 0.0
  %575 = vmatpush.xpose.msra.mxu0 0.0
  %576 = vmatpush.xpose.msra.mxu0 0.0
  %577 = vmatpush.xpose.msra.mxu0 0.0
  %578 = vmatpush.xpose.msra.mxu0 %v491
  %579 = vmatpush.xpose.msra.mxu0 %v489
  %580 = vmatpush.xpose.msra.mxu0 %v487
  %581 = vmatmul.f32.gmra.mxu0 %v563
  %v582 = vpop.f32.mrf.mxu0
  %v583 = vadd.f32 %v560, %v582
  %584 = vdwg.mxu0
  %v585 = vmax.f32 %v583, -1.0
  %v586 = vmin.f32 %v585, 1.0
  %v588 = vrot.slane %v586, 7
  %589 = vrot.lane.b32.xlu0 %v588, 120
  %v590 = vpop.permute.xlu0 %589
  %v592 = vrot.slane %v586, 6
  %593 = vrot.lane.b32.xlu0 %v592, 112
  %v594 = vpop.permute.xlu0 %593
  %vm596 = vcmask 1040384
  %v597 = vsel %vm596, %v586, %v590
  %vm598 = vcmask 1041408
  %v599 = vsel %vm598, %v597, %v594
  %vm600 = vcmask 59392
  %601 = vst.msk [vmem:[%s3] sm:$0x7] %vm600, %v599
  %v602 = vrot.slane %v586, 2
  %v604 = vrot.slane %v586, 1
  %605 = vrot.lane.b32.xlu0 %v604, 120
  %v606 = vpop.permute.xlu0 %605
  %608 = vrot.lane.b32.xlu0 %v586, 112
  %v609 = vpop.permute.xlu0 %608
  %v611 = vsel %vm596, %v602, %v606
  %v612 = vsel %vm598, %v611, %v609
  %613 = vst.msk [vmem:[%s3 + $0x3] sm:$0x7] %vm600, %v612
  %615 = vrot.lane.b32.xlu0 %v586, 120
  %v616 = vpop.permute.xlu0 %615
  %618 = vrot.lane.b32.xlu0 %v588, 112
  %v619 = vpop.permute.xlu0 %618
  %v621 = vsel %vm596, %v604, %v616
  %v622 = vsel %vm598, %v621, %v619
  %s623 = scalar_lea.vmem %s3, 176
  %624 = vst.msk [vmem:[%s623] sm:$0x7] %vm600, %v622
  %v625 = vrot.slane %v586, 3
  %627 = vrot.lane.b32.xlu0 %v602, 120
  %v628 = vpop.permute.xlu0 %627
  %630 = vrot.lane.b32.xlu0 %v604, 112
  %v631 = vpop.permute.xlu0 %630
  %v633 = vsel %vm596, %v625, %v628
  %v634 = vsel %vm598, %v633, %v631
  %635 = vst.msk [vmem:[%s623 + $0x3] sm:$0x7] %vm600, %v634
  %637 = vset.pattern.permute.xlu0 0
  %638 = vperm.xlu0 %637, %v25
  %v639 = vpop.permute.xlu0 %638
  %642 = vset.pattern.permute.xlu0 0
  %643 = vperm.xlu0 %642, %v26
  %v644 = vpop.permute.xlu0 %643
  %v646 = vmul.f32 %v639, %v147
  %v647 = vmul.f32 %v644, %v147
  %648 = vset.pattern.permute.xlu0 1
  %649 = vperm.xlu0 %648, %v25
  %v650 = vpop.permute.xlu0 %649
  %652 = vset.pattern.permute.xlu0 1
  %653 = vperm.xlu0 %652, %v26
  %v654 = vpop.permute.xlu0 %653
  %v656 = vmul.f32 %v650, %v168
  %v657 = vmul.f32 %v654, %v168
  %v658 = vadd.f32 %v646, %v656
  %v659 = vadd.f32 %v647, %v657
  %660 = vset.pattern.permute.xlu0 2
  %661 = vperm.xlu0 %660, %v25
  %v662 = vpop.permute.xlu0 %661
  %664 = vset.pattern.permute.xlu0 2
  %665 = vperm.xlu0 %664, %v26
  %v666 = vpop.permute.xlu0 %665
  %v668 = vmul.f32 %v662, %v193
  %v669 = vmul.f32 %v666, %v193
  %v670 = vadd.f32 %v658, %v668
  %v671 = vadd.f32 %v659, %v669
  %672 = vset.pattern.permute.xlu0 3
  %673 = vperm.xlu0 %672, %v25
  %v674 = vpop.permute.xlu0 %673
  %676 = vset.pattern.permute.xlu0 3
  %677 = vperm.xlu0 %676, %v26
  %v678 = vpop.permute.xlu0 %677
  %v680 = vadd.f32 %v670, %v674
  %v681 = vadd.f32 %v671, %v678
  %vm682 = vcmp.ge.f32.partialorder %v680, 0.0
  %vm683 = vcmp.ge.f32.partialorder %v681, 0.0
  %v684 = vmul.f32 %v680, 0.01
  %v685 = vmul.f32 %v681, 0.01
  %v686 = vsel %vm682, %v680, %v684
  %v687 = vsel %vm683, %v681, %v685
  %v688 = vmul.f32 %v522, %v522
  %v689 = vmul.f32 %v523, %v523
  %v690 = vadd.f32 %v688, %v689
  %v691 = vmul.f32 %v524, %v524
  %v692 = vadd.f32 %v690, %v691
  %694 = vset.pattern.permute.xlu0 0
  %695 = vperm.xlu0 %694, %v522
  %v696 = vpop.permute.xlu0 %695
  %v698 = vmul.f32 %v696, %v147
  %700 = vset.pattern.permute.xlu0 0
  %701 = vperm.xlu0 %700, %v523
  %v702 = vpop.permute.xlu0 %701
  %v704 = vmul.f32 %v702, %v168
  %v705 = vadd.f32 %v698, %v704
  %707 = vset.pattern.permute.xlu0 0
  %708 = vperm.xlu0 %707, %v524
  %v709 = vpop.permute.xlu0 %708
  %v711 = vmul.f32 %v709, %v193
  %v712 = vadd.f32 %v705, %v711
  %714 = vset.pattern.permute.xlu0 0
  %715 = vperm.xlu0 %714, %v692
  %v716 = vpop.permute.xlu0 %715
  %v718 = vperm.slane %v114, 0
  %v719 = vadd.f32 %v716, %v718
  %v720 = vmul.f32 %v712, 2.0
  %v721 = vsub.f32 %v719, %v720
  %v722 = vsub.f32 0.0, %v721
  %v723 = vmul.f32 %v722, 25.0
  %724 = vmax.xlane.f32.xlu0 %v723
  %v725 = vpop.xlane.xlu0 %724
  %v726 = vsub.f32 %v723, %v725
  %v727 = vmul.f32 %v726, 1.442695
  %v728 = vpow.pop %v727
  %729 = vadd.xlane.f32.xlu0 %v728
  %v730 = vpop.xlane.xlu0 %729
  %v731 = vrcp.pop %v730
  %v732 = vmul.f32 %v728, %v731
  %733 = vmatpush.xpose.msra.mxu0 0.0
  %734 = vmatpush.xpose.msra.mxu0 0.0
  %735 = vmatpush.xpose.msra.mxu0 0.0
  %736 = vmatpush.xpose.msra.mxu0 0.0
  %737 = vmatpush.xpose.msra.mxu0 0.0
  %738 = vmatpush.xpose.msra.mxu0 0.0
  %739 = vmatpush.xpose.msra.mxu0 0.0
  %740 = vmatpush.xpose.msra.mxu0 0.0
  %741 = vmatpush.xpose.msra.mxu0 0.0
  %742 = vmatpush.xpose.msra.mxu0 0.0
  %743 = vmatpush.xpose.msra.mxu0 0.0
  %744 = vmatpush.xpose.msra.mxu0 0.0
  %745 = vmatpush.xpose.msra.mxu0 0.0
  %746 = vmatpush.xpose.msra.mxu0 0.0
  %747 = vmatpush.xpose.msra.mxu0 0.0
  %748 = vmatpush.xpose.msra.mxu0 %v732
  %749 = vmatmul.f32.gmra.mxu0 %v686
  %v750 = vpop.f32.mrf.mxu0
  %v751 = vadd.f32 0.0, %v750
  %752 = vmatmul.f32.gmra.mxu0 %v687
  %v753 = vpop.f32.mrf.mxu0
  %v754 = vadd.f32 0.0, %v753
  %755 = vdwg.mxu0
  %v756 = vmul.f32 %v639, %v242
  %v757 = vmul.f32 %v644, %v242
  %v758 = vmul.f32 %v650, %v247
  %v759 = vmul.f32 %v654, %v247
  %v760 = vadd.f32 %v756, %v758
  %v761 = vadd.f32 %v757, %v759
  %v762 = vmul.f32 %v662, %v256
  %v763 = vmul.f32 %v666, %v256
  %v764 = vadd.f32 %v760, %v762
  %v765 = vadd.f32 %v761, %v763
  %v766 = vadd.f32 %v764, %v674
  %v767 = vadd.f32 %v765, %v678
  %vm768 = vcmp.ge.f32.partialorder %v766, 0.0
  %vm769 = vcmp.ge.f32.partialorder %v767, 0.0
  %v770 = vmul.f32 %v766, 0.01
  %v771 = vmul.f32 %v767, 0.01
  %v772 = vsel %vm768, %v766, %v770
  %v773 = vsel %vm769, %v767, %v771
  %774 = vset.pattern.permute.xlu0 1
  %775 = vperm.xlu0 %774, %v522
  %v776 = vpop.permute.xlu0 %775
  %v778 = vmul.f32 %v776, %v242
  %779 = vset.pattern.permute.xlu0 1
  %780 = vperm.xlu0 %779, %v523
  %v781 = vpop.permute.xlu0 %780
  %v783 = vmul.f32 %v781, %v247
  %v784 = vadd.f32 %v778, %v783
  %785 = vset.pattern.permute.xlu0 1
  %786 = vperm.xlu0 %785, %v524
  %v787 = vpop.permute.xlu0 %786
  %v789 = vmul.f32 %v787, %v256
  %v790 = vadd.f32 %v784, %v789
  %791 = vset.pattern.permute.xlu0 1
  %792 = vperm.xlu0 %791, %v692
  %v793 = vpop.permute.xlu0 %792
  %v795 = vperm.slane %v126, 0
  %v796 = vadd.f32 %v793, %v795
  %v797 = vmul.f32 %v790, 2.0
  %v798 = vsub.f32 %v796, %v797
  %v799 = vsub.f32 0.0, %v798
  %v800 = vmul.f32 %v799, 25.0
  %801 = vmax.xlane.f32.xlu0 %v800
  %v802 = vpop.xlane.xlu0 %801
  %v803 = vsub.f32 %v800, %v802
  %v804 = vmul.f32 %v803, 1.442695
  %v805 = vpow.pop %v804
  %806 = vadd.xlane.f32.xlu0 %v805
  %v807 = vpop.xlane.xlu0 %806
  %v808 = vrcp.pop %v807
  %v809 = vmul.f32 %v805, %v808
  %810 = vmatpush.xpose.msra.mxu0 0.0
  %811 = vmatpush.xpose.msra.mxu0 0.0
  %812 = vmatpush.xpose.msra.mxu0 0.0
  %813 = vmatpush.xpose.msra.mxu0 0.0
  %814 = vmatpush.xpose.msra.mxu0 0.0
  %815 = vmatpush.xpose.msra.mxu0 0.0
  %816 = vmatpush.xpose.msra.mxu0 0.0
  %817 = vmatpush.xpose.msra.mxu0 0.0
  %818 = vmatpush.xpose.msra.mxu0 0.0
  %819 = vmatpush.xpose.msra.mxu0 0.0
  %820 = vmatpush.xpose.msra.mxu0 0.0
  %821 = vmatpush.xpose.msra.mxu0 0.0
  %822 = vmatpush.xpose.msra.mxu0 0.0
  %823 = vmatpush.xpose.msra.mxu0 0.0
  %824 = vmatpush.xpose.msra.mxu0 0.0
  %825 = vmatpush.xpose.msra.mxu0 %v809
  %826 = vmatmul.f32.gmra.mxu0 %v772
  %v827 = vpop.f32.mrf.mxu0
  %v828 = vadd.f32 0.0, %v827
  %829 = vmatmul.f32.gmra.mxu0 %v773
  %v830 = vpop.f32.mrf.mxu0
  %v831 = vadd.f32 0.0, %v830
  %832 = vdwg.mxu0
  %835 = vrot.lane.b32.xlu0 %v828, 8
  %v836 = vpop.permute.xlu0 %835
  %837 = vrot.lane.b32.xlu0 %v831, 8
  %v838 = vpop.permute.xlu0 %837
  %vm841 = vcmask 64512
  %v842 = vsel %vm841, %v751, %v836
  %v843 = vsel %vm841, %v754, %v838
  %845 = vset.pattern.permute.xlu0 24
  %846 = vperm.xlu0 %845, %v27
  %v847 = vpop.permute.xlu0 %846
  %850 = vset.pattern.permute.xlu0 24
  %851 = vperm.xlu0 %850, %v28
  %v852 = vpop.permute.xlu0 %851
  %855 = vset.pattern.permute.xlu0 24
  %856 = vperm.xlu0 %855, %v29
  %v857 = vpop.permute.xlu0 %856
  %860 = vset.pattern.permute.xlu0 24
  %861 = vperm.xlu0 %860, %v30
  %v862 = vpop.permute.xlu0 %861
  %865 = vset.pattern.permute.xlu0 24
  %866 = vperm.xlu0 %865, %v31
  %v867 = vpop.permute.xlu0 %866
  %870 = vset.pattern.permute.xlu0 24
  %871 = vperm.xlu0 %870, %v32
  %v872 = vpop.permute.xlu0 %871
  %v874 = vadd.f32 %v27, %v847
  %v875 = vadd.f32 %v28, %v852
  %v876 = vadd.f32 %v29, %v857
  %v877 = vadd.f32 %v30, %v862
  %v878 = vadd.f32 %v31, %v867
  %v879 = vadd.f32 %v32, %v872
  %886 = vrot.lane.b32.xlu0 %v874, 112
  %v887 = vpop.permute.xlu0 %886
  %888 = vrot.lane.b32.xlu0 %v875, 112
  %v889 = vpop.permute.xlu0 %888
  %890 = vrot.lane.b32.xlu0 %v876, 112
  %v891 = vpop.permute.xlu0 %890
  %892 = vrot.lane.b32.xlu0 %v877, 112
  %v893 = vpop.permute.xlu0 %892
  %894 = vrot.lane.b32.xlu0 %v878, 112
  %v895 = vpop.permute.xlu0 %894
  %896 = vrot.lane.b32.xlu0 %v879, 112
  %v897 = vpop.permute.xlu0 %896
  %904 = vrot.lane.b32.xlu0 %v874, 120
  %v905 = vpop.permute.xlu0 %904
  %906 = vrot.lane.b32.xlu0 %v875, 120
  %v907 = vpop.permute.xlu0 %906
  %908 = vrot.lane.b32.xlu0 %v876, 120
  %v909 = vpop.permute.xlu0 %908
  %910 = vrot.lane.b32.xlu0 %v877, 120
  %v911 = vpop.permute.xlu0 %910
  %912 = vrot.lane.b32.xlu0 %v878, 120
  %v913 = vpop.permute.xlu0 %912
  %914 = vrot.lane.b32.xlu0 %v879, 120
  %v915 = vpop.permute.xlu0 %914
  %v922 = vsel %vm841, %v887, %v905
  %v923 = vsel %vm841, %v889, %v907
  %v924 = vsel %vm841, %v891, %v909
  %v925 = vsel %vm841, %v893, %v911
  %v926 = vsel %vm841, %v895, %v913
  %v927 = vsel %vm841, %v897, %v915
  %vm928 = vcmask 130048
  %v929 = vsel %vm928, %v27, 0
  %v931 = vsel %vm928, %v28, 0
  %v933 = vsel %vm928, %v29, 0
  %v935 = vsel %vm928, %v30, 0
  %v937 = vsel %vm928, %v31, 0
  %v939 = vsel %vm928, %v32, 0
  %941 = vmatpush.msra.mxu0 0.0
  %942 = vmatpush.msra.mxu0 0.0
  %943 = vmatpush.msra.mxu0 0.0
  %944 = vmatpush.msra.mxu0 0.0
  %945 = vmatpush.msra.mxu0 0.0
  %946 = vmatpush.msra.mxu0 0.0
  %947 = vmatpush.msra.mxu0 0.0
  %948 = vmatpush.msra.mxu0 0.0
  %949 = vmatpush.msra.mxu0 0.0
  %950 = vmatpush.msra.mxu0 0.0
  %951 = vmatpush.msra.mxu0 0.0
  %952 = vmatpush.msra.mxu0 0.0
  %953 = vmatpush.msra.mxu0 0.0
  %954 = vmatpush.msra.mxu0 0.0
  %955 = vmatpush.msra.mxu0 %v843
  %956 = vmatpush.msra.mxu0 %v842
  %957 = vmatmul.f32.gmra.mxu0 %v929
  %v958 = vpop.f32.mrf.mxu0
  %v959 = vadd.f32 %v922, %v958
  %960 = vmatmul.f32.gmra.mxu0 %v931
  %v961 = vpop.f32.mrf.mxu0
  %v962 = vadd.f32 %v923, %v961
  %963 = vmatmul.f32.gmra.mxu0 %v933
  %v964 = vpop.f32.mrf.mxu0
  %v965 = vadd.f32 %v924, %v964
  %966 = vmatmul.f32.gmra.mxu0 %v935
  %v967 = vpop.f32.mrf.mxu0
  %v968 = vadd.f32 %v925, %v967
  %969 = vmatmul.f32.gmra.mxu0 %v937
  %v970 = vpop.f32.mrf.mxu0
  %v971 = vadd.f32 %v926, %v970
  %972 = vmatmul.f32.gmra.mxu0 %v939
  %v973 = vpop.f32.mrf.mxu0
  %v974 = vadd.f32 %v927, %v973
  %975 = vdwg.mxu0
  %vm976 = vcmp.ge.f32.partialorder %v959, 0.0
  %vm977 = vcmp.ge.f32.partialorder %v962, 0.0
  %vm978 = vcmp.ge.f32.partialorder %v965, 0.0
  %vm979 = vcmp.ge.f32.partialorder %v968, 0.0
  %vm980 = vcmp.ge.f32.partialorder %v971, 0.0
  %vm981 = vcmp.ge.f32.partialorder %v974, 0.0
  %v982 = vmul.f32 %v959, 0.01
  %v983 = vmul.f32 %v962, 0.01
  %v984 = vmul.f32 %v965, 0.01
  %v985 = vmul.f32 %v968, 0.01
  %v986 = vmul.f32 %v971, 0.01
  %v987 = vmul.f32 %v974, 0.01
  %v988 = vsel %vm976, %v959, %v982
  %v989 = vsel %vm977, %v962, %v983
  %v990 = vsel %vm978, %v965, %v984
  %v991 = vsel %vm979, %v968, %v985
  %v992 = vsel %vm980, %v971, %v986
  %v993 = vsel %vm981, %v974, %v987
  %995 = vset.pattern.permute.xlu0 42
  %996 = vperm.xlu0 %995, %v33
  %v997 = vpop.permute.xlu0 %996
  %1000 = vset.pattern.permute.xlu0 42
  %1001 = vperm.xlu0 %1000, %v34
  %v1002 = vpop.permute.xlu0 %1001
  %1005 = vset.pattern.permute.xlu0 42
  %1006 = vperm.xlu0 %1005, %v35
  %v1007 = vpop.permute.xlu0 %1006
  %1010 = vset.pattern.permute.xlu0 42
  %1011 = vperm.xlu0 %1010, %v36
  %v1012 = vpop.permute.xlu0 %1011
  %1015 = vset.pattern.permute.xlu0 42
  %1016 = vperm.xlu0 %1015, %v37
  %v1017 = vpop.permute.xlu0 %1016
  %1020 = vset.pattern.permute.xlu0 42
  %1021 = vperm.xlu0 %1020, %v38
  %v1022 = vpop.permute.xlu0 %1021
  %vm1024 = vcmask 343040
  %v1025 = vsel %vm1024, %v33, 0
  %v1027 = vsel %vm1024, %v34, 0
  %v1029 = vsel %vm1024, %v35, 0
  %v1031 = vsel %vm1024, %v36, 0
  %v1033 = vsel %vm1024, %v37, 0
  %v1035 = vsel %vm1024, %v38, 0
  %v1038 = vsel %vm598, %v993, 0
  %1040 = vmatpush.msra.mxu0 0.0
  %1041 = vmatpush.msra.mxu0 0.0
  %1042 = vmatpush.msra.mxu0 0.0
  %1043 = vmatpush.msra.mxu0 0.0
  %1044 = vmatpush.msra.mxu0 0.0
  %1045 = vmatpush.msra.mxu0 0.0
  %1046 = vmatpush.msra.mxu0 0.0
  %1047 = vmatpush.msra.mxu0 0.0
  %1048 = vmatpush.msra.mxu0 0.0
  %1049 = vmatpush.msra.mxu0 0.0
  %1050 = vmatpush.msra.mxu0 %v1038
  %1051 = vmatpush.msra.mxu0 %v992
  %1052 = vmatpush.msra.mxu0 %v991
  %1053 = vmatpush.msra.mxu0 %v990
  %1054 = vmatpush.msra.mxu0 %v989
  %1055 = vmatpush.msra.mxu0 %v988
  %1056 = vmatmul.f32.gmra.mxu0 %v1025
  %v1057 = vpop.f32.mrf.mxu0
  %v1058 = vadd.f32 %v997, %v1057
  %1059 = vmatmul.f32.gmra.mxu0 %v1027
  %v1060 = vpop.f32.mrf.mxu0
  %v1061 = vadd.f32 %v1002, %v1060
  %1062 = vmatmul.f32.gmra.mxu0 %v1029
  %v1063 = vpop.f32.mrf.mxu0
  %v1064 = vadd.f32 %v1007, %v1063
  %1065 = vmatmul.f32.gmra.mxu0 %v1031
  %v1066 = vpop.f32.mrf.mxu0
  %v1067 = vadd.f32 %v1012, %v1066
  %1068 = vmatmul.f32.gmra.mxu0 %v1033
  %v1069 = vpop.f32.mrf.mxu0
  %v1070 = vadd.f32 %v1017, %v1069
  %1071 = vmatmul.f32.gmra.mxu0 %v1035
  %v1072 = vpop.f32.mrf.mxu0
  %v1073 = vadd.f32 %v1022, %v1072
  %1074 = vdwg.mxu0
  %vm1075 = vcmp.ge.f32.partialorder %v1058, 0.0
  %vm1076 = vcmp.ge.f32.partialorder %v1061, 0.0
  %vm1077 = vcmp.ge.f32.partialorder %v1064, 0.0
  %vm1078 = vcmp.ge.f32.partialorder %v1067, 0.0
  %vm1079 = vcmp.ge.f32.partialorder %v1070, 0.0
  %vm1080 = vcmp.ge.f32.partialorder %v1073, 0.0
  %v1081 = vmul.f32 %v1058, 0.01
  %v1082 = vmul.f32 %v1061, 0.01
  %v1083 = vmul.f32 %v1064, 0.01
  %v1084 = vmul.f32 %v1067, 0.01
  %v1085 = vmul.f32 %v1070, 0.01
  %v1086 = vmul.f32 %v1073, 0.01
  %v1087 = vsel %vm1075, %v1058, %v1081
  %v1088 = vsel %vm1076, %v1061, %v1082
  %v1089 = vsel %vm1077, %v1064, %v1083
  %v1090 = vsel %vm1078, %v1067, %v1084
  %v1091 = vsel %vm1079, %v1070, %v1085
  %v1092 = vsel %vm1080, %v1073, %v1086
  %1094 = vset.pattern.permute.xlu0 42
  %1095 = vperm.xlu0 %1094, %v39
  %v1096 = vpop.permute.xlu0 %1095
  %1099 = vset.pattern.permute.xlu0 42
  %1100 = vperm.xlu0 %1099, %v40
  %v1101 = vpop.permute.xlu0 %1100
  %1104 = vset.pattern.permute.xlu0 42
  %1105 = vperm.xlu0 %1104, %v41
  %v1106 = vpop.permute.xlu0 %1105
  %1109 = vset.pattern.permute.xlu0 42
  %1110 = vperm.xlu0 %1109, %v42
  %v1111 = vpop.permute.xlu0 %1110
  %1114 = vset.pattern.permute.xlu0 42
  %1115 = vperm.xlu0 %1114, %v43
  %v1116 = vpop.permute.xlu0 %1115
  %1119 = vset.pattern.permute.xlu0 42
  %1120 = vperm.xlu0 %1119, %v44
  %v1121 = vpop.permute.xlu0 %1120
  %v1123 = vsel %vm1024, %v39, 0
  %v1125 = vsel %vm1024, %v40, 0
  %v1127 = vsel %vm1024, %v41, 0
  %v1129 = vsel %vm1024, %v42, 0
  %v1131 = vsel %vm1024, %v43, 0
  %v1133 = vsel %vm1024, %v44, 0
  %v1136 = vsel %vm598, %v1092, 0
  %1138 = vmatpush.msra.mxu0 0.0
  %1139 = vmatpush.msra.mxu0 0.0
  %1140 = vmatpush.msra.mxu0 0.0
  %1141 = vmatpush.msra.mxu0 0.0
  %1142 = vmatpush.msra.mxu0 0.0
  %1143 = vmatpush.msra.mxu0 0.0
  %1144 = vmatpush.msra.mxu0 0.0
  %1145 = vmatpush.msra.mxu0 0.0
  %1146 = vmatpush.msra.mxu0 0.0
  %1147 = vmatpush.msra.mxu0 0.0
  %1148 = vmatpush.msra.mxu0 %v1136
  %1149 = vmatpush.msra.mxu0 %v1091
  %1150 = vmatpush.msra.mxu0 %v1090
  %1151 = vmatpush.msra.mxu0 %v1089
  %1152 = vmatpush.msra.mxu0 %v1088
  %1153 = vmatpush.msra.mxu0 %v1087
  %1154 = vmatmul.f32.gmra.mxu0 %v1123
  %v1155 = vpop.f32.mrf.mxu0
  %v1156 = vadd.f32 %v1096, %v1155
  %1157 = vmatmul.f32.gmra.mxu0 %v1125
  %v1158 = vpop.f32.mrf.mxu0
  %v1159 = vadd.f32 %v1101, %v1158
  %1160 = vmatmul.f32.gmra.mxu0 %v1127
  %v1161 = vpop.f32.mrf.mxu0
  %v1162 = vadd.f32 %v1106, %v1161
  %1163 = vmatmul.f32.gmra.mxu0 %v1129
  %v1164 = vpop.f32.mrf.mxu0
  %v1165 = vadd.f32 %v1111, %v1164
  %1166 = vmatmul.f32.gmra.mxu0 %v1131
  %v1167 = vpop.f32.mrf.mxu0
  %v1168 = vadd.f32 %v1116, %v1167
  %1169 = vmatmul.f32.gmra.mxu0 %v1133
  %v1170 = vpop.f32.mrf.mxu0
  %v1171 = vadd.f32 %v1121, %v1170
  %1172 = vdwg.mxu0
  %1173 = vrot.lane.b32.xlu0 %v27, 103
  %v1174 = vpop.permute.xlu0 %1173
  %1175 = vrot.lane.b32.xlu0 %v28, 103
  %v1176 = vpop.permute.xlu0 %1175
  %1177 = vrot.lane.b32.xlu0 %v29, 103
  %v1178 = vpop.permute.xlu0 %1177
  %1179 = vrot.lane.b32.xlu0 %v30, 103
  %v1180 = vpop.permute.xlu0 %1179
  %1181 = vrot.lane.b32.xlu0 %v31, 103
  %v1182 = vpop.permute.xlu0 %1181
  %1183 = vrot.lane.b32.xlu0 %v32, 103
  %v1184 = vpop.permute.xlu0 %1183
  %1191 = vrot.lane.b32.xlu0 %v27, 111
  %v1192 = vpop.permute.xlu0 %1191
  %1193 = vrot.lane.b32.xlu0 %v28, 111
  %v1194 = vpop.permute.xlu0 %1193
  %1195 = vrot.lane.b32.xlu0 %v29, 111
  %v1196 = vpop.permute.xlu0 %1195
  %1197 = vrot.lane.b32.xlu0 %v30, 111
  %v1198 = vpop.permute.xlu0 %1197
  %1199 = vrot.lane.b32.xlu0 %v31, 111
  %v1200 = vpop.permute.xlu0 %1199
  %1201 = vrot.lane.b32.xlu0 %v32, 111
  %v1202 = vpop.permute.xlu0 %1201
  %v1209 = vsel %vm841, %v1174, %v1192
  %v1210 = vsel %vm841, %v1176, %v1194
  %v1211 = vsel %vm841, %v1178, %v1196
  %v1212 = vsel %vm841, %v1180, %v1198
  %v1213 = vsel %vm841, %v1182, %v1200
  %v1214 = vsel %vm841, %v1184, %v1202
  %v1215 = vadd.f32 %v1209, %v1156
  %v1216 = vadd.f32 %v1210, %v1159
  %v1217 = vadd.f32 %v1211, %v1162
  %v1218 = vadd.f32 %v1212, %v1165
  %v1219 = vadd.f32 %v1213, %v1168
  %v1220 = vadd.f32 %v1214, %v1171
  %1221 = vset.pattern.permute.xlu0 33
  %1222 = vperm.xlu0 %1221, %v27
  %v1223 = vpop.permute.xlu0 %1222
  %1225 = vset.pattern.permute.xlu0 33
  %1226 = vperm.xlu0 %1225, %v28
  %v1227 = vpop.permute.xlu0 %1226
  %1229 = vset.pattern.permute.xlu0 33
  %1230 = vperm.xlu0 %1229, %v29
  %v1231 = vpop.permute.xlu0 %1230
  %1233 = vset.pattern.permute.xlu0 33
  %1234 = vperm.xlu0 %1233, %v30
  %v1235 = vpop.permute.xlu0 %1234
  %1237 = vset.pattern.permute.xlu0 33
  %1238 = vperm.xlu0 %1237, %v31
  %v1239 = vpop.permute.xlu0 %1238
  %1241 = vset.pattern.permute.xlu0 33
  %1242 = vperm.xlu0 %1241, %v32
  %v1243 = vpop.permute.xlu0 %1242
  %v1245 = vmul.f32 %v1223, %v147
  %v1246 = vmul.f32 %v1227, %v147
  %v1247 = vmul.f32 %v1231, %v147
  %v1248 = vmul.f32 %v1235, %v147
  %v1249 = vmul.f32 %v1239, %v147
  %v1250 = vmul.f32 %v1243, %v147
  %1251 = vset.pattern.permute.xlu0 34
  %1252 = vperm.xlu0 %1251, %v27
  %v1253 = vpop.permute.xlu0 %1252
  %1255 = vset.pattern.permute.xlu0 34
  %1256 = vperm.xlu0 %1255, %v28
  %v1257 = vpop.permute.xlu0 %1256
  %1259 = vset.pattern.permute.xlu0 34
  %1260 = vperm.xlu0 %1259, %v29
  %v1261 = vpop.permute.xlu0 %1260
  %1263 = vset.pattern.permute.xlu0 34
  %1264 = vperm.xlu0 %1263, %v30
  %v1265 = vpop.permute.xlu0 %1264
  %1267 = vset.pattern.permute.xlu0 34
  %1268 = vperm.xlu0 %1267, %v31
  %v1269 = vpop.permute.xlu0 %1268
  %1271 = vset.pattern.permute.xlu0 34
  %1272 = vperm.xlu0 %1271, %v32
  %v1273 = vpop.permute.xlu0 %1272
  %v1275 = vmul.f32 %v1253, %v168
  %v1276 = vmul.f32 %v1257, %v168
  %v1277 = vmul.f32 %v1261, %v168
  %v1278 = vmul.f32 %v1265, %v168
  %v1279 = vmul.f32 %v1269, %v168
  %v1280 = vmul.f32 %v1273, %v168
  %v1281 = vadd.f32 %v1245, %v1275
  %v1282 = vadd.f32 %v1246, %v1276
  %v1283 = vadd.f32 %v1247, %v1277
  %v1284 = vadd.f32 %v1248, %v1278
  %v1285 = vadd.f32 %v1249, %v1279
  %v1286 = vadd.f32 %v1250, %v1280
  %1287 = vset.pattern.permute.xlu0 35
  %1288 = vperm.xlu0 %1287, %v27
  %v1289 = vpop.permute.xlu0 %1288
  %1291 = vset.pattern.permute.xlu0 35
  %1292 = vperm.xlu0 %1291, %v28
  %v1293 = vpop.permute.xlu0 %1292
  %1295 = vset.pattern.permute.xlu0 35
  %1296 = vperm.xlu0 %1295, %v29
  %v1297 = vpop.permute.xlu0 %1296
  %1299 = vset.pattern.permute.xlu0 35
  %1300 = vperm.xlu0 %1299, %v30
  %v1301 = vpop.permute.xlu0 %1300
  %1303 = vset.pattern.permute.xlu0 35
  %1304 = vperm.xlu0 %1303, %v31
  %v1305 = vpop.permute.xlu0 %1304
  %1307 = vset.pattern.permute.xlu0 35
  %1308 = vperm.xlu0 %1307, %v32
  %v1309 = vpop.permute.xlu0 %1308
  %v1311 = vmul.f32 %v1289, %v193
  %v1312 = vmul.f32 %v1293, %v193
  %v1313 = vmul.f32 %v1297, %v193
  %v1314 = vmul.f32 %v1301, %v193
  %v1315 = vmul.f32 %v1305, %v193
  %v1316 = vmul.f32 %v1309, %v193
  %v1317 = vadd.f32 %v1281, %v1311
  %v1318 = vadd.f32 %v1282, %v1312
  %v1319 = vadd.f32 %v1283, %v1313
  %v1320 = vadd.f32 %v1284, %v1314
  %v1321 = vadd.f32 %v1285, %v1315
  %v1322 = vadd.f32 %v1286, %v1316
  %v1323 = vmul.f32 %v1223, %v242
  %v1324 = vmul.f32 %v1227, %v242
  %v1325 = vmul.f32 %v1231, %v242
  %v1326 = vmul.f32 %v1235, %v242
  %v1327 = vmul.f32 %v1239, %v242
  %v1328 = vmul.f32 %v1243, %v242
  %v1329 = vmul.f32 %v1253, %v247
  %v1330 = vmul.f32 %v1257, %v247
  %v1331 = vmul.f32 %v1261, %v247
  %v1332 = vmul.f32 %v1265, %v247
  %v1333 = vmul.f32 %v1269, %v247
  %v1334 = vmul.f32 %v1273, %v247
  %v1335 = vadd.f32 %v1323, %v1329
  %v1336 = vadd.f32 %v1324, %v1330
  %v1337 = vadd.f32 %v1325, %v1331
  %v1338 = vadd.f32 %v1326, %v1332
  %v1339 = vadd.f32 %v1327, %v1333
  %v1340 = vadd.f32 %v1328, %v1334
  %v1341 = vmul.f32 %v1289, %v256
  %v1342 = vmul.f32 %v1293, %v256
  %v1343 = vmul.f32 %v1297, %v256
  %v1344 = vmul.f32 %v1301, %v256
  %v1345 = vmul.f32 %v1305, %v256
  %v1346 = vmul.f32 %v1309, %v256
  %v1347 = vadd.f32 %v1335, %v1341
  %v1348 = vadd.f32 %v1336, %v1342
  %v1349 = vadd.f32 %v1337, %v1343
  %v1350 = vadd.f32 %v1338, %v1344
  %v1351 = vadd.f32 %v1339, %v1345
  %v1352 = vadd.f32 %v1340, %v1346
  loop: start=0, step=1, limit=20
  $region14: #{cage_skinning_forward.1} parent=0 // loop_pre_header
    _
  $region15: #{cage_skinning_forward.1} parent=0 // loop_header
    %s1354 = sphi 0, %s1358
    %p1355 = scmp.ge.s32.totalorder %s1354, 20
    %v1359 = vphi 1.0, %v2400
    %v1360 = vphi 1.0, %v2401
    %v1361 = vphi 1.0, %v2402
    %v1362 = vphi 1.0, %v2403
    %v1363 = vphi 1.0, %v2404
    %v1364 = vphi 1.0, %v2405
    %v1365 = vphi 1.0, %v2515
    %v1366 = vphi 1.0, %v2516
    %v1367 = vphi 1.0, %v2517
    %v1368 = vphi 1.0, %v2518
    %v1369 = vphi 1.0, %v2519
    %v1370 = vphi 1.0, %v2520
  $region16: #{cage_skinning_forward.1} parent=0 // loop_header_branch
    %1357 = sbr.rel (%p1355) target = $region20
  $region17: #{cage_skinning_forward.1} parent=0 // loop_body
    %v1371 = vmul.f32 %v1359, %v1359
    %v1372 = vmul.f32 %v1360, %v1360
    %v1373 = vmul.f32 %v1361, %v1361
    %v1374 = vmul.f32 %v1362, %v1362
    %v1375 = vmul.f32 %v1363, %v1363
    %v1376 = vmul.f32 %v1364, %v1364
    %v1377 = vmul.f32 %v1371, %v99
    %v1378 = vmul.f32 %v1372, %v100
    %v1379 = vmul.f32 %v1373, %v101
    %v1380 = vmul.f32 %v1374, %v102
    %v1381 = vmul.f32 %v1375, %v103
    %v1382 = vmul.f32 %v1376, %v104
    %1384 = vset.pattern.permute.xlu0 33
    %1385 = vperm.xlu0 %1384, %v1377
    %v1386 = vpop.permute.xlu0 %1385
    %1389 = vset.pattern.permute.xlu0 33
    %1390 = vperm.xlu0 %1389, %v1378
    %v1391 = vpop.permute.xlu0 %1390
    %1394 = vset.pattern.permute.xlu0 33
    %1395 = vperm.xlu0 %1394, %v1379
    %v1396 = vpop.permute.xlu0 %1395
    %1399 = vset.pattern.permute.xlu0 33
    %1400 = vperm.xlu0 %1399, %v1380
    %v1401 = vpop.permute.xlu0 %1400
    %1404 = vset.pattern.permute.xlu0 33
    %1405 = vperm.xlu0 %1404, %v1381
    %v1406 = vpop.permute.xlu0 %1405
    %1409 = vset.pattern.permute.xlu0 33
    %1410 = vperm.xlu0 %1409, %v1382
    %v1411 = vpop.permute.xlu0 %1410
    %v1413 = vadd.f32 %v1386, %v718
    %v1414 = vadd.f32 %v1391, %v718
    %v1415 = vadd.f32 %v1396, %v718
    %v1416 = vadd.f32 %v1401, %v718
    %v1417 = vadd.f32 %v1406, %v718
    %v1418 = vadd.f32 %v1411, %v718
    %v1419 = vmul.f32 %v1359, 2.0
    %v1420 = vmul.f32 %v1360, 2.0
    %v1421 = vmul.f32 %v1361, 2.0
    %v1422 = vmul.f32 %v1362, 2.0
    %v1423 = vmul.f32 %v1363, 2.0
    %v1424 = vmul.f32 %v1364, 2.0
    %v1425 = vmul.f32 %v1419, %v1317
    %v1426 = vmul.f32 %v1420, %v1318
    %v1427 = vmul.f32 %v1421, %v1319
    %v1428 = vmul.f32 %v1422, %v1320
    %v1429 = vmul.f32 %v1423, %v1321
    %v1430 = vmul.f32 %v1424, %v1322
    %v1431 = vsub.f32 %v1413, %v1425
    %v1432 = vsub.f32 %v1414, %v1426
    %v1433 = vsub.f32 %v1415, %v1427
    %v1434 = vsub.f32 %v1416, %v1428
    %v1435 = vsub.f32 %v1417, %v1429
    %v1436 = vsub.f32 %v1418, %v1430
    %1437 = vmin.xlane.f32.xlu0 %v1431
    %v1438 = vpop.xlane.xlu0 %1437
    %1439 = vmin.xlane.f32.xlu0 %v1432
    %v1440 = vpop.xlane.xlu0 %1439
    %1441 = vmin.xlane.f32.xlu0 %v1433
    %v1442 = vpop.xlane.xlu0 %1441
    %1443 = vmin.xlane.f32.xlu0 %v1434
    %v1444 = vpop.xlane.xlu0 %1443
    %1445 = vmin.xlane.f32.xlu0 %v1435
    %v1446 = vpop.xlane.xlu0 %1445
    %v1447 = vsel %vm598, %v1436, inf
    %1448 = vmin.xlane.f32.xlu0 %v1447
    %v1449 = vpop.xlane.xlu0 %1448
    %vm1450 = vcmp.gt.f32.partialorder %v1438, 0.16
    %vm1451 = vcmp.gt.f32.partialorder %v1440, 0.16
    %vm1452 = vcmp.gt.f32.partialorder %v1442, 0.16
    %vm1453 = vcmp.gt.f32.partialorder %v1444, 0.16
    %vm1454 = vcmp.gt.f32.partialorder %v1446, 0.16
    %vm1455 = vcmp.gt.f32.partialorder %v1449, 0.16
    %v1456 = vsel %vm1450, 1, 0
    %v1457 = vsel %vm1451, 1, 0
    %v1458 = vsel %vm1452, 1, 0
    %v1459 = vsel %vm1453, 1, 0
    %v1460 = vsel %vm1454, 1, 0
    %v1461 = vsel %vm1455, 1, 0
    %v1462 = vcvt.s32.f32 %v1456
    %v1463 = vcvt.s32.f32 %v1457
    %v1464 = vcvt.s32.f32 %v1458
    %v1465 = vcvt.s32.f32 %v1459
    %v1466 = vcvt.s32.f32 %v1460
    %v1467 = vcvt.s32.f32 %v1461
    %v1468 = vmul.f32 %v1462, 0.01
    %v1469 = vmul.f32 %v1463, 0.01
    %v1470 = vmul.f32 %v1464, 0.01
    %v1471 = vmul.f32 %v1465, 0.01
    %v1472 = vmul.f32 %v1466, 0.01
    %v1473 = vmul.f32 %v1467, 0.01
    %v1474 = vsub.f32 1.0, %v1468
    %v1475 = vsub.f32 1.0, %v1469
    %v1476 = vsub.f32 1.0, %v1470
    %v1477 = vsub.f32 1.0, %v1471
    %v1478 = vsub.f32 1.0, %v1472
    %v1479 = vsub.f32 1.0, %v1473
    %v1480 = vmul.f32 %v1359, %v1474
    %v1481 = vmul.f32 %v1360, %v1475
    %v1482 = vmul.f32 %v1361, %v1476
    %v1483 = vmul.f32 %v1362, %v1477
    %v1484 = vmul.f32 %v1363, %v1478
    %v1485 = vmul.f32 %v1364, %v1479
    %v1486 = vmul.f32 %v1365, %v1365
    %v1487 = vmul.f32 %v1366, %v1366
    %v1488 = vmul.f32 %v1367, %v1367
    %v1489 = vmul.f32 %v1368, %v1368
    %v1490 = vmul.f32 %v1369, %v1369
    %v1491 = vmul.f32 %v1370, %v1370
    %v1492 = vmul.f32 %v1486, %v99
    %v1493 = vmul.f32 %v1487, %v100
    %v1494 = vmul.f32 %v1488, %v101
    %v1495 = vmul.f32 %v1489, %v102
    %v1496 = vmul.f32 %v1490, %v103
    %v1497 = vmul.f32 %v1491, %v104
    %1499 = vset.pattern.permute.xlu0 33
    %1500 = vperm.xlu0 %1499, %v1492
    %v1501 = vpop.permute.xlu0 %1500
    %1504 = vset.pattern.permute.xlu0 33
    %1505 = vperm.xlu0 %1504, %v1493
    %v1506 = vpop.permute.xlu0 %1505
    %1509 = vset.pattern.permute.xlu0 33
    %1510 = vperm.xlu0 %1509, %v1494
    %v1511 = vpop.permute.xlu0 %1510
    %1514 = vset.pattern.permute.xlu0 33
    %1515 = vperm.xlu0 %1514, %v1495
    %v1516 = vpop.permute.xlu0 %1515
    %1519 = vset.pattern.permute.xlu0 33
    %1520 = vperm.xlu0 %1519, %v1496
    %v1521 = vpop.permute.xlu0 %1520
    %1524 = vset.pattern.permute.xlu0 33
    %1525 = vperm.xlu0 %1524, %v1497
    %v1526 = vpop.permute.xlu0 %1525
    %v1528 = vadd.f32 %v1501, %v795
    %v1529 = vadd.f32 %v1506, %v795
    %v1530 = vadd.f32 %v1511, %v795
    %v1531 = vadd.f32 %v1516, %v795
    %v1532 = vadd.f32 %v1521, %v795
    %v1533 = vadd.f32 %v1526, %v795
    %v1534 = vmul.f32 %v1365, 2.0
    %v1535 = vmul.f32 %v1366, 2.0
    %v1536 = vmul.f32 %v1367, 2.0
    %v1537 = vmul.f32 %v1368, 2.0
    %v1538 = vmul.f32 %v1369, 2.0
    %v1539 = vmul.f32 %v1370, 2.0
    %v1540 = vmul.f32 %v1534, %v1347
    %v1541 = vmul.f32 %v1535, %v1348
    %v1542 = vmul.f32 %v1536, %v1349
    %v1543 = vmul.f32 %v1537, %v1350
    %v1544 = vmul.f32 %v1538, %v1351
    %v1545 = vmul.f32 %v1539, %v1352
    %v1546 = vsub.f32 %v1528, %v1540
    %v1547 = vsub.f32 %v1529, %v1541
    %v1548 = vsub.f32 %v1530, %v1542
    %v1549 = vsub.f32 %v1531, %v1543
    %v1550 = vsub.f32 %v1532, %v1544
    %v1551 = vsub.f32 %v1533, %v1545
    %1552 = vmin.xlane.f32.xlu0 %v1546
    %v1553 = vpop.xlane.xlu0 %1552
    %1554 = vmin.xlane.f32.xlu0 %v1547
    %v1555 = vpop.xlane.xlu0 %1554
    %1556 = vmin.xlane.f32.xlu0 %v1548
    %v1557 = vpop.xlane.xlu0 %1556
    %1558 = vmin.xlane.f32.xlu0 %v1549
    %v1559 = vpop.xlane.xlu0 %1558
    %1560 = vmin.xlane.f32.xlu0 %v1550
    %v1561 = vpop.xlane.xlu0 %1560
    %v1562 = vsel %vm598, %v1551, inf
    %1563 = vmin.xlane.f32.xlu0 %v1562
    %v1564 = vpop.xlane.xlu0 %1563
    %vm1565 = vcmp.gt.f32.partialorder %v1553, 0.16
    %vm1566 = vcmp.gt.f32.partialorder %v1555, 0.16
    %vm1567 = vcmp.gt.f32.partialorder %v1557, 0.16
    %vm1568 = vcmp.gt.f32.partialorder %v1559, 0.16
    %vm1569 = vcmp.gt.f32.partialorder %v1561, 0.16
    %vm1570 = vcmp.gt.f32.partialorder %v1564, 0.16
    %v1571 = vsel %vm1565, 1, 0
    %v1572 = vsel %vm1566, 1, 0
    %v1573 = vsel %vm1567, 1, 0
    %v1574 = vsel %vm1568, 1, 0
    %v1575 = vsel %vm1569, 1, 0
    %v1576 = vsel %vm1570, 1, 0
    %v1577 = vcvt.s32.f32 %v1571
    %v1578 = vcvt.s32.f32 %v1572
    %v1579 = vcvt.s32.f32 %v1573
    %v1580 = vcvt.s32.f32 %v1574
    %v1581 = vcvt.s32.f32 %v1575
    %v1582 = vcvt.s32.f32 %v1576
    %v1583 = vmul.f32 %v1577, 0.01
    %v1584 = vmul.f32 %v1578, 0.01
    %v1585 = vmul.f32 %v1579, 0.01
    %v1586 = vmul.f32 %v1580, 0.01
    %v1587 = vmul.f32 %v1581, 0.01
    %v1588 = vmul.f32 %v1582, 0.01
    %v1589 = vsub.f32 1.0, %v1583
    %v1590 = vsub.f32 1.0, %v1584
    %v1591 = vsub.f32 1.0, %v1585
    %v1592 = vsub.f32 1.0, %v1586
    %v1593 = vsub.f32 1.0, %v1587
    %v1594 = vsub.f32 1.0, %v1588
    %v1595 = vmul.f32 %v1365, %v1589
    %v1596 = vmul.f32 %v1366, %v1590
    %v1597 = vmul.f32 %v1367, %v1591
    %v1598 = vmul.f32 %v1368, %v1592
    %v1599 = vmul.f32 %v1369, %v1593
    %v1600 = vmul.f32 %v1370, %v1594
    %v1601 = vmul.f32 %v1480, %v1480
    %v1602 = vmul.f32 %v1481, %v1481
    %v1603 = vmul.f32 %v1482, %v1482
    %v1604 = vmul.f32 %v1483, %v1483
    %v1605 = vmul.f32 %v1484, %v1484
    %v1606 = vmul.f32 %v1485, %v1485
    %v1607 = vmul.f32 %v1601, %v99
    %v1608 = vmul.f32 %v1602, %v100
    %v1609 = vmul.f32 %v1603, %v101
    %v1610 = vmul.f32 %v1604, %v102
    %v1611 = vmul.f32 %v1605, %v103
    %v1612 = vmul.f32 %v1606, %v104
    %1614 = vset.pattern.permute.xlu0 33
    %1615 = vperm.xlu0 %1614, %v1607
    %v1616 = vpop.permute.xlu0 %1615
    %1619 = vset.pattern.permute.xlu0 33
    %1620 = vperm.xlu0 %1619, %v1608
    %v1621 = vpop.permute.xlu0 %1620
    %1624 = vset.pattern.permute.xlu0 33
    %1625 = vperm.xlu0 %1624, %v1609
    %v1626 = vpop.permute.xlu0 %1625
    %1629 = vset.pattern.permute.xlu0 33
    %1630 = vperm.xlu0 %1629, %v1610
    %v1631 = vpop.permute.xlu0 %1630
    %1634 = vset.pattern.permute.xlu0 33
    %1635 = vperm.xlu0 %1634, %v1611
    %v1636 = vpop.permute.xlu0 %1635
    %1639 = vset.pattern.permute.xlu0 33
    %1640 = vperm.xlu0 %1639, %v1612
    %v1641 = vpop.permute.xlu0 %1640
    %v1643 = vadd.f32 %v1616, %v718
    %v1644 = vadd.f32 %v1621, %v718
    %v1645 = vadd.f32 %v1626, %v718
    %v1646 = vadd.f32 %v1631, %v718
    %v1647 = vadd.f32 %v1636, %v718
    %v1648 = vadd.f32 %v1641, %v718
    %v1649 = vmul.f32 %v1480, 2.0
    %v1650 = vmul.f32 %v1481, 2.0
    %v1651 = vmul.f32 %v1482, 2.0
    %v1652 = vmul.f32 %v1483, 2.0
    %v1653 = vmul.f32 %v1484, 2.0
    %v1654 = vmul.f32 %v1485, 2.0
    %v1655 = vmul.f32 %v1649, %v1317
    %v1656 = vmul.f32 %v1650, %v1318
    %v1657 = vmul.f32 %v1651, %v1319
    %v1658 = vmul.f32 %v1652, %v1320
    %v1659 = vmul.f32 %v1653, %v1321
    %v1660 = vmul.f32 %v1654, %v1322
    %v1661 = vsub.f32 %v1643, %v1655
    %v1662 = vsub.f32 %v1644, %v1656
    %v1663 = vsub.f32 %v1645, %v1657
    %v1664 = vsub.f32 %v1646, %v1658
    %v1665 = vsub.f32 %v1647, %v1659
    %v1666 = vsub.f32 %v1648, %v1660
    %1667 = vmin.xlane.f32.xlu0 %v1661
    %v1668 = vpop.xlane.xlu0 %1667
    %1669 = vmin.xlane.f32.xlu0 %v1662
    %v1670 = vpop.xlane.xlu0 %1669
    %1671 = vmin.xlane.f32.xlu0 %v1663
    %v1672 = vpop.xlane.xlu0 %1671
    %1673 = vmin.xlane.f32.xlu0 %v1664
    %v1674 = vpop.xlane.xlu0 %1673
    %1675 = vmin.xlane.f32.xlu0 %v1665
    %v1676 = vpop.xlane.xlu0 %1675
    %v1677 = vsel %vm598, %v1666, inf
    %1678 = vmin.xlane.f32.xlu0 %v1677
    %v1679 = vpop.xlane.xlu0 %1678
    %vm1680 = vcmp.gt.f32.partialorder %v1668, 0.16
    %vm1681 = vcmp.gt.f32.partialorder %v1670, 0.16
    %vm1682 = vcmp.gt.f32.partialorder %v1672, 0.16
    %vm1683 = vcmp.gt.f32.partialorder %v1674, 0.16
    %vm1684 = vcmp.gt.f32.partialorder %v1676, 0.16
    %vm1685 = vcmp.gt.f32.partialorder %v1679, 0.16
    %v1686 = vsel %vm1680, 1, 0
    %v1687 = vsel %vm1681, 1, 0
    %v1688 = vsel %vm1682, 1, 0
    %v1689 = vsel %vm1683, 1, 0
    %v1690 = vsel %vm1684, 1, 0
    %v1691 = vsel %vm1685, 1, 0
    %v1692 = vcvt.s32.f32 %v1686
    %v1693 = vcvt.s32.f32 %v1687
    %v1694 = vcvt.s32.f32 %v1688
    %v1695 = vcvt.s32.f32 %v1689
    %v1696 = vcvt.s32.f32 %v1690
    %v1697 = vcvt.s32.f32 %v1691
    %v1698 = vmul.f32 %v1692, 0.01
    %v1699 = vmul.f32 %v1693, 0.01
    %v1700 = vmul.f32 %v1694, 0.01
    %v1701 = vmul.f32 %v1695, 0.01
    %v1702 = vmul.f32 %v1696, 0.01
    %v1703 = vmul.f32 %v1697, 0.01
    %v1704 = vsub.f32 1.0, %v1698
    %v1705 = vsub.f32 1.0, %v1699
    %v1706 = vsub.f32 1.0, %v1700
    %v1707 = vsub.f32 1.0, %v1701
    %v1708 = vsub.f32 1.0, %v1702
    %v1709 = vsub.f32 1.0, %v1703
    %v1710 = vmul.f32 %v1480, %v1704
    %v1711 = vmul.f32 %v1481, %v1705
    %v1712 = vmul.f32 %v1482, %v1706
    %v1713 = vmul.f32 %v1483, %v1707
    %v1714 = vmul.f32 %v1484, %v1708
    %v1715 = vmul.f32 %v1485, %v1709
    %v1716 = vmul.f32 %v1595, %v1595
    %v1717 = vmul.f32 %v1596, %v1596
    %v1718 = vmul.f32 %v1597, %v1597
    %v1719 = vmul.f32 %v1598, %v1598
    %v1720 = vmul.f32 %v1599, %v1599
    %v1721 = vmul.f32 %v1600, %v1600
    %v1722 = vmul.f32 %v1716, %v99
    %v1723 = vmul.f32 %v1717, %v100
    %v1724 = vmul.f32 %v1718, %v101
    %v1725 = vmul.f32 %v1719, %v102
    %v1726 = vmul.f32 %v1720, %v103
    %v1727 = vmul.f32 %v1721, %v104
    %1729 = vset.pattern.permute.xlu0 33
    %1730 = vperm.xlu0 %1729, %v1722
    %v1731 = vpop.permute.xlu0 %1730
    %1734 = vset.pattern.permute.xlu0 33
    %1735 = vperm.xlu0 %1734, %v1723
    %v1736 = vpop.permute.xlu0 %1735
    %1739 = vset.pattern.permute.xlu0 33
    %1740 = vperm.xlu0 %1739, %v1724
    %v1741 = vpop.permute.xlu0 %1740
    %1744 = vset.pattern.permute.xlu0 33
    %1745 = vperm.xlu0 %1744, %v1725
    %v1746 = vpop.permute.xlu0 %1745
    %1749 = vset.pattern.permute.xlu0 33
    %1750 = vperm.xlu0 %1749, %v1726
    %v1751 = vpop.permute.xlu0 %1750
    %1754 = vset.pattern.permute.xlu0 33
    %1755 = vperm.xlu0 %1754, %v1727
    %v1756 = vpop.permute.xlu0 %1755
    %v1758 = vadd.f32 %v1731, %v795
    %v1759 = vadd.f32 %v1736, %v795
    %v1760 = vadd.f32 %v1741, %v795
    %v1761 = vadd.f32 %v1746, %v795
    %v1762 = vadd.f32 %v1751, %v795
    %v1763 = vadd.f32 %v1756, %v795
    %v1764 = vmul.f32 %v1595, 2.0
    %v1765 = vmul.f32 %v1596, 2.0
    %v1766 = vmul.f32 %v1597, 2.0
    %v1767 = vmul.f32 %v1598, 2.0
    %v1768 = vmul.f32 %v1599, 2.0
    %v1769 = vmul.f32 %v1600, 2.0
    %v1770 = vmul.f32 %v1764, %v1347
    %v1771 = vmul.f32 %v1765, %v1348
    %v1772 = vmul.f32 %v1766, %v1349
    %v1773 = vmul.f32 %v1767, %v1350
    %v1774 = vmul.f32 %v1768, %v1351
    %v1775 = vmul.f32 %v1769, %v1352
    %v1776 = vsub.f32 %v1758, %v1770
    %v1777 = vsub.f32 %v1759, %v1771
    %v1778 = vsub.f32 %v1760, %v1772
    %v1779 = vsub.f32 %v1761, %v1773
    %v1780 = vsub.f32 %v1762, %v1774
    %v1781 = vsub.f32 %v1763, %v1775
    %1782 = vmin.xlane.f32.xlu0 %v1776
    %v1783 = vpop.xlane.xlu0 %1782
    %1784 = vmin.xlane.f32.xlu0 %v1777
    %v1785 = vpop.xlane.xlu0 %1784
    %1786 = vmin.xlane.f32.xlu0 %v1778
    %v1787 = vpop.xlane.xlu0 %1786
    %1788 = vmin.xlane.f32.xlu0 %v1779
    %v1789 = vpop.xlane.xlu0 %1788
    %1790 = vmin.xlane.f32.xlu0 %v1780
    %v1791 = vpop.xlane.xlu0 %1790
    %v1792 = vsel %vm598, %v1781, inf
    %1793 = vmin.xlane.f32.xlu0 %v1792
    %v1794 = vpop.xlane.xlu0 %1793
    %vm1795 = vcmp.gt.f32.partialorder %v1783, 0.16
    %vm1796 = vcmp.gt.f32.partialorder %v1785, 0.16
    %vm1797 = vcmp.gt.f32.partialorder %v1787, 0.16
    %vm1798 = vcmp.gt.f32.partialorder %v1789, 0.16
    %vm1799 = vcmp.gt.f32.partialorder %v1791, 0.16
    %vm1800 = vcmp.gt.f32.partialorder %v1794, 0.16
    %v1801 = vsel %vm1795, 1, 0
    %v1802 = vsel %vm1796, 1, 0
    %v1803 = vsel %vm1797, 1, 0
    %v1804 = vsel %vm1798, 1, 0
    %v1805 = vsel %vm1799, 1, 0
    %v1806 = vsel %vm1800, 1, 0
    %v1807 = vcvt.s32.f32 %v1801
    %v1808 = vcvt.s32.f32 %v1802
    %v1809 = vcvt.s32.f32 %v1803
    %v1810 = vcvt.s32.f32 %v1804
    %v1811 = vcvt.s32.f32 %v1805
    %v1812 = vcvt.s32.f32 %v1806
    %v1813 = vmul.f32 %v1807, 0.01
    %v1814 = vmul.f32 %v1808, 0.01
    %v1815 = vmul.f32 %v1809, 0.01
    %v1816 = vmul.f32 %v1810, 0.01
    %v1817 = vmul.f32 %v1811, 0.01
    %v1818 = vmul.f32 %v1812, 0.01
    %v1819 = vsub.f32 1.0, %v1813
    %v1820 = vsub.f32 1.0, %v1814
    %v1821 = vsub.f32 1.0, %v1815
    %v1822 = vsub.f32 1.0, %v1816
    %v1823 = vsub.f32 1.0, %v1817
    %v1824 = vsub.f32 1.0, %v1818
    %v1825 = vmul.f32 %v1595, %v1819
    %v1826 = vmul.f32 %v1596, %v1820
    %v1827 = vmul.f32 %v1597, %v1821
    %v1828 = vmul.f32 %v1598, %v1822
    %v1829 = vmul.f32 %v1599, %v1823
    %v1830 = vmul.f32 %v1600, %v1824
    %v1831 = vmul.f32 %v1710, %v1710
    %v1832 = vmul.f32 %v1711, %v1711
    %v1833 = vmul.f32 %v1712, %v1712
    %v1834 = vmul.f32 %v1713, %v1713
    %v1835 = vmul.f32 %v1714, %v1714
    %v1836 = vmul.f32 %v1715, %v1715
    %v1837 = vmul.f32 %v1831, %v99
    %v1838 = vmul.f32 %v1832, %v100
    %v1839 = vmul.f32 %v1833, %v101
    %v1840 = vmul.f32 %v1834, %v102
    %v1841 = vmul.f32 %v1835, %v103
    %v1842 = vmul.f32 %v1836, %v104
    %1844 = vset.pattern.permute.xlu0 33
    %1845 = vperm.xlu0 %1844, %v1837
    %v1846 = vpop.permute.xlu0 %1845
    %1849 = vset.pattern.permute.xlu0 33
    %1850 = vperm.xlu0 %1849, %v1838
    %v1851 = vpop.permute.xlu0 %1850
    %1854 = vset.pattern.permute.xlu0 33
    %1855 = vperm.xlu0 %1854, %v1839
    %v1856 = vpop.permute.xlu0 %1855
    %1859 = vset.pattern.permute.xlu0 33
    %1860 = vperm.xlu0 %1859, %v1840
    %v1861 = vpop.permute.xlu0 %1860
    %1864 = vset.pattern.permute.xlu0 33
    %1865 = vperm.xlu0 %1864, %v1841
    %v1866 = vpop.permute.xlu0 %1865
    %1869 = vset.pattern.permute.xlu0 33
    %1870 = vperm.xlu0 %1869, %v1842
    %v1871 = vpop.permute.xlu0 %1870
    %v1873 = vadd.f32 %v1846, %v718
    %v1874 = vadd.f32 %v1851, %v718
    %v1875 = vadd.f32 %v1856, %v718
    %v1876 = vadd.f32 %v1861, %v718
    %v1877 = vadd.f32 %v1866, %v718
    %v1878 = vadd.f32 %v1871, %v718
    %v1879 = vmul.f32 %v1710, 2.0
    %v1880 = vmul.f32 %v1711, 2.0
    %v1881 = vmul.f32 %v1712, 2.0
    %v1882 = vmul.f32 %v1713, 2.0
    %v1883 = vmul.f32 %v1714, 2.0
    %v1884 = vmul.f32 %v1715, 2.0
    %v1885 = vmul.f32 %v1879, %v1317
    %v1886 = vmul.f32 %v1880, %v1318
    %v1887 = vmul.f32 %v1881, %v1319
    %v1888 = vmul.f32 %v1882, %v1320
    %v1889 = vmul.f32 %v1883, %v1321
    %v1890 = vmul.f32 %v1884, %v1322
    %v1891 = vsub.f32 %v1873, %v1885
    %v1892 = vsub.f32 %v1874, %v1886
    %v1893 = vsub.f32 %v1875, %v1887
    %v1894 = vsub.f32 %v1876, %v1888
    %v1895 = vsub.f32 %v1877, %v1889
    %v1896 = vsub.f32 %v1878, %v1890
    %1897 = vmin.xlane.f32.xlu0 %v1891
    %v1898 = vpop.xlane.xlu0 %1897
    %1899 = vmin.xlane.f32.xlu0 %v1892
    %v1900 = vpop.xlane.xlu0 %1899
    %1901 = vmin.xlane.f32.xlu0 %v1893
    %v1902 = vpop.xlane.xlu0 %1901
    %1903 = vmin.xlane.f32.xlu0 %v1894
    %v1904 = vpop.xlane.xlu0 %1903
    %1905 = vmin.xlane.f32.xlu0 %v1895
    %v1906 = vpop.xlane.xlu0 %1905
    %v1907 = vsel %vm598, %v1896, inf
    %1908 = vmin.xlane.f32.xlu0 %v1907
    %v1909 = vpop.xlane.xlu0 %1908
    %vm1910 = vcmp.gt.f32.partialorder %v1898, 0.16
    %vm1911 = vcmp.gt.f32.partialorder %v1900, 0.16
    %vm1912 = vcmp.gt.f32.partialorder %v1902, 0.16
    %vm1913 = vcmp.gt.f32.partialorder %v1904, 0.16
    %vm1914 = vcmp.gt.f32.partialorder %v1906, 0.16
    %vm1915 = vcmp.gt.f32.partialorder %v1909, 0.16
    %v1916 = vsel %vm1910, 1, 0
    %v1917 = vsel %vm1911, 1, 0
    %v1918 = vsel %vm1912, 1, 0
    %v1919 = vsel %vm1913, 1, 0
    %v1920 = vsel %vm1914, 1, 0
    %v1921 = vsel %vm1915, 1, 0
    %v1922 = vcvt.s32.f32 %v1916
    %v1923 = vcvt.s32.f32 %v1917
    %v1924 = vcvt.s32.f32 %v1918
    %v1925 = vcvt.s32.f32 %v1919
    %v1926 = vcvt.s32.f32 %v1920
    %v1927 = vcvt.s32.f32 %v1921
    %v1928 = vmul.f32 %v1922, 0.01
    %v1929 = vmul.f32 %v1923, 0.01
    %v1930 = vmul.f32 %v1924, 0.01
    %v1931 = vmul.f32 %v1925, 0.01
    %v1932 = vmul.f32 %v1926, 0.01
    %v1933 = vmul.f32 %v1927, 0.01
    %v1934 = vsub.f32 1.0, %v1928
    %v1935 = vsub.f32 1.0, %v1929
    %v1936 = vsub.f32 1.0, %v1930
    %v1937 = vsub.f32 1.0, %v1931
    %v1938 = vsub.f32 1.0, %v1932
    %v1939 = vsub.f32 1.0, %v1933
    %v1940 = vmul.f32 %v1710, %v1934
    %v1941 = vmul.f32 %v1711, %v1935
    %v1942 = vmul.f32 %v1712, %v1936
    %v1943 = vmul.f32 %v1713, %v1937
    %v1944 = vmul.f32 %v1714, %v1938
    %v1945 = vmul.f32 %v1715, %v1939
    %v1946 = vmul.f32 %v1825, %v1825
    %v1947 = vmul.f32 %v1826, %v1826
    %v1948 = vmul.f32 %v1827, %v1827
    %v1949 = vmul.f32 %v1828, %v1828
    %v1950 = vmul.f32 %v1829, %v1829
    %v1951 = vmul.f32 %v1830, %v1830
    %v1952 = vmul.f32 %v1946, %v99
    %v1953 = vmul.f32 %v1947, %v100
    %v1954 = vmul.f32 %v1948, %v101
    %v1955 = vmul.f32 %v1949, %v102
    %v1956 = vmul.f32 %v1950, %v103
    %v1957 = vmul.f32 %v1951, %v104
    %1959 = vset.pattern.permute.xlu0 33
    %1960 = vperm.xlu0 %1959, %v1952
    %v1961 = vpop.permute.xlu0 %1960
    %1964 = vset.pattern.permute.xlu0 33
    %1965 = vperm.xlu0 %1964, %v1953
    %v1966 = vpop.permute.xlu0 %1965
    %1969 = vset.pattern.permute.xlu0 33
    %1970 = vperm.xlu0 %1969, %v1954
    %v1971 = vpop.permute.xlu0 %1970
    %1974 = vset.pattern.permute.xlu0 33
    %1975 = vperm.xlu0 %1974, %v1955
    %v1976 = vpop.permute.xlu0 %1975
    %1979 = vset.pattern.permute.xlu0 33
    %1980 = vperm.xlu0 %1979, %v1956
    %v1981 = vpop.permute.xlu0 %1980
    %1984 = vset.pattern.permute.xlu0 33
    %1985 = vperm.xlu0 %1984, %v1957
    %v1986 = vpop.permute.xlu0 %1985
    %v1988 = vadd.f32 %v1961, %v795
    %v1989 = vadd.f32 %v1966, %v795
    %v1990 = vadd.f32 %v1971, %v795
    %v1991 = vadd.f32 %v1976, %v795
    %v1992 = vadd.f32 %v1981, %v795
    %v1993 = vadd.f32 %v1986, %v795
    %v1994 = vmul.f32 %v1825, 2.0
    %v1995 = vmul.f32 %v1826, 2.0
    %v1996 = vmul.f32 %v1827, 2.0
    %v1997 = vmul.f32 %v1828, 2.0
    %v1998 = vmul.f32 %v1829, 2.0
    %v1999 = vmul.f32 %v1830, 2.0
    %v2000 = vmul.f32 %v1994, %v1347
    %v2001 = vmul.f32 %v1995, %v1348
    %v2002 = vmul.f32 %v1996, %v1349
    %v2003 = vmul.f32 %v1997, %v1350
    %v2004 = vmul.f32 %v1998, %v1351
    %v2005 = vmul.f32 %v1999, %v1352
    %v2006 = vsub.f32 %v1988, %v2000
    %v2007 = vsub.f32 %v1989, %v2001
    %v2008 = vsub.f32 %v1990, %v2002
    %v2009 = vsub.f32 %v1991, %v2003
    %v2010 = vsub.f32 %v1992, %v2004
    %v2011 = vsub.f32 %v1993, %v2005
    %2012 = vmin.xlane.f32.xlu0 %v2006
    %v2013 = vpop.xlane.xlu0 %2012
    %2014 = vmin.xlane.f32.xlu0 %v2007
    %v2015 = vpop.xlane.xlu0 %2014
    %2016 = vmin.xlane.f32.xlu0 %v2008
    %v2017 = vpop.xlane.xlu0 %2016
    %2018 = vmin.xlane.f32.xlu0 %v2009
    %v2019 = vpop.xlane.xlu0 %2018
    %2020 = vmin.xlane.f32.xlu0 %v2010
    %v2021 = vpop.xlane.xlu0 %2020
    %v2022 = vsel %vm598, %v2011, inf
    %2023 = vmin.xlane.f32.xlu0 %v2022
    %v2024 = vpop.xlane.xlu0 %2023
    %vm2025 = vcmp.gt.f32.partialorder %v2013, 0.16
    %vm2026 = vcmp.gt.f32.partialorder %v2015, 0.16
    %vm2027 = vcmp.gt.f32.partialorder %v2017, 0.16
    %vm2028 = vcmp.gt.f32.partialorder %v2019, 0.16
    %vm2029 = vcmp.gt.f32.partialorder %v2021, 0.16
    %vm2030 = vcmp.gt.f32.partialorder %v2024, 0.16
    %v2031 = vsel %vm2025, 1, 0
    %v2032 = vsel %vm2026, 1, 0
    %v2033 = vsel %vm2027, 1, 0
    %v2034 = vsel %vm2028, 1, 0
    %v2035 = vsel %vm2029, 1, 0
    %v2036 = vsel %vm2030, 1, 0
    %v2037 = vcvt.s32.f32 %v2031
    %v2038 = vcvt.s32.f32 %v2032
    %v2039 = vcvt.s32.f32 %v2033
    %v2040 = vcvt.s32.f32 %v2034
    %v2041 = vcvt.s32.f32 %v2035
    %v2042 = vcvt.s32.f32 %v2036
    %v2043 = vmul.f32 %v2037, 0.01
    %v2044 = vmul.f32 %v2038, 0.01
    %v2045 = vmul.f32 %v2039, 0.01
    %v2046 = vmul.f32 %v2040, 0.01
    %v2047 = vmul.f32 %v2041, 0.01
    %v2048 = vmul.f32 %v2042, 0.01
    %v2049 = vsub.f32 1.0, %v2043
    %v2050 = vsub.f32 1.0, %v2044
    %v2051 = vsub.f32 1.0, %v2045
    %v2052 = vsub.f32 1.0, %v2046
    %v2053 = vsub.f32 1.0, %v2047
    %v2054 = vsub.f32 1.0, %v2048
    %v2055 = vmul.f32 %v1825, %v2049
    %v2056 = vmul.f32 %v1826, %v2050
    %v2057 = vmul.f32 %v1827, %v2051
    %v2058 = vmul.f32 %v1828, %v2052
    %v2059 = vmul.f32 %v1829, %v2053
    %v2060 = vmul.f32 %v1830, %v2054
    %v2061 = vmul.f32 %v1940, %v1940
    %v2062 = vmul.f32 %v1941, %v1941
    %v2063 = vmul.f32 %v1942, %v1942
    %v2064 = vmul.f32 %v1943, %v1943
    %v2065 = vmul.f32 %v1944, %v1944
    %v2066 = vmul.f32 %v1945, %v1945
    %v2067 = vmul.f32 %v2061, %v99
    %v2068 = vmul.f32 %v2062, %v100
    %v2069 = vmul.f32 %v2063, %v101
    %v2070 = vmul.f32 %v2064, %v102
    %v2071 = vmul.f32 %v2065, %v103
    %v2072 = vmul.f32 %v2066, %v104
    %2074 = vset.pattern.permute.xlu0 33
    %2075 = vperm.xlu0 %2074, %v2067
    %v2076 = vpop.permute.xlu0 %2075
    %2079 = vset.pattern.permute.xlu0 33
    %2080 = vperm.xlu0 %2079, %v2068
    %v2081 = vpop.permute.xlu0 %2080
    %2084 = vset.pattern.permute.xlu0 33
    %2085 = vperm.xlu0 %2084, %v2069
    %v2086 = vpop.permute.xlu0 %2085
    %2089 = vset.pattern.permute.xlu0 33
    %2090 = vperm.xlu0 %2089, %v2070
    %v2091 = vpop.permute.xlu0 %2090
    %2094 = vset.pattern.permute.xlu0 33
    %2095 = vperm.xlu0 %2094, %v2071
    %v2096 = vpop.permute.xlu0 %2095
    %2099 = vset.pattern.permute.xlu0 33
    %2100 = vperm.xlu0 %2099, %v2072
    %v2101 = vpop.permute.xlu0 %2100
    %v2103 = vadd.f32 %v2076, %v718
    %v2104 = vadd.f32 %v2081, %v718
    %v2105 = vadd.f32 %v2086, %v718
    %v2106 = vadd.f32 %v2091, %v718
    %v2107 = vadd.f32 %v2096, %v718
    %v2108 = vadd.f32 %v2101, %v718
    %v2109 = vmul.f32 %v1940, 2.0
    %v2110 = vmul.f32 %v1941, 2.0
    %v2111 = vmul.f32 %v1942, 2.0
    %v2112 = vmul.f32 %v1943, 2.0
    %v2113 = vmul.f32 %v1944, 2.0
    %v2114 = vmul.f32 %v1945, 2.0
    %v2115 = vmul.f32 %v2109, %v1317
    %v2116 = vmul.f32 %v2110, %v1318
    %v2117 = vmul.f32 %v2111, %v1319
    %v2118 = vmul.f32 %v2112, %v1320
    %v2119 = vmul.f32 %v2113, %v1321
    %v2120 = vmul.f32 %v2114, %v1322
    %v2121 = vsub.f32 %v2103, %v2115
    %v2122 = vsub.f32 %v2104, %v2116
    %v2123 = vsub.f32 %v2105, %v2117
    %v2124 = vsub.f32 %v2106, %v2118
    %v2125 = vsub.f32 %v2107, %v2119
    %v2126 = vsub.f32 %v2108, %v2120
    %2127 = vmin.xlane.f32.xlu0 %v2121
    %v2128 = vpop.xlane.xlu0 %2127
    %2129 = vmin.xlane.f32.xlu0 %v2122
    %v2130 = vpop.xlane.xlu0 %2129
    %2131 = vmin.xlane.f32.xlu0 %v2123
    %v2132 = vpop.xlane.xlu0 %2131
    %2133 = vmin.xlane.f32.xlu0 %v2124
    %v2134 = vpop.xlane.xlu0 %2133
    %2135 = vmin.xlane.f32.xlu0 %v2125
    %v2136 = vpop.xlane.xlu0 %2135
    %v2137 = vsel %vm598, %v2126, inf
    %2138 = vmin.xlane.f32.xlu0 %v2137
    %v2139 = vpop.xlane.xlu0 %2138
    %vm2140 = vcmp.gt.f32.partialorder %v2128, 0.16
    %vm2141 = vcmp.gt.f32.partialorder %v2130, 0.16
    %vm2142 = vcmp.gt.f32.partialorder %v2132, 0.16
    %vm2143 = vcmp.gt.f32.partialorder %v2134, 0.16
    %vm2144 = vcmp.gt.f32.partialorder %v2136, 0.16
    %vm2145 = vcmp.gt.f32.partialorder %v2139, 0.16
    %v2146 = vsel %vm2140, 1, 0
    %v2147 = vsel %vm2141, 1, 0
    %v2148 = vsel %vm2142, 1, 0
    %v2149 = vsel %vm2143, 1, 0
    %v2150 = vsel %vm2144, 1, 0
    %v2151 = vsel %vm2145, 1, 0
    %v2152 = vcvt.s32.f32 %v2146
    %v2153 = vcvt.s32.f32 %v2147
    %v2154 = vcvt.s32.f32 %v2148
    %v2155 = vcvt.s32.f32 %v2149
    %v2156 = vcvt.s32.f32 %v2150
    %v2157 = vcvt.s32.f32 %v2151
    %v2158 = vmul.f32 %v2152, 0.01
    %v2159 = vmul.f32 %v2153, 0.01
    %v2160 = vmul.f32 %v2154, 0.01
    %v2161 = vmul.f32 %v2155, 0.01
    %v2162 = vmul.f32 %v2156, 0.01
    %v2163 = vmul.f32 %v2157, 0.01
    %v2164 = vsub.f32 1.0, %v2158
    %v2165 = vsub.f32 1.0, %v2159
    %v2166 = vsub.f32 1.0, %v2160
    %v2167 = vsub.f32 1.0, %v2161
    %v2168 = vsub.f32 1.0, %v2162
    %v2169 = vsub.f32 1.0, %v2163
    %v2170 = vmul.f32 %v1940, %v2164
    %v2171 = vmul.f32 %v1941, %v2165
    %v2172 = vmul.f32 %v1942, %v2166
    %v2173 = vmul.f32 %v1943, %v2167
    %v2174 = vmul.f32 %v1944, %v2168
    %v2175 = vmul.f32 %v1945, %v2169
    %v2176 = vmul.f32 %v2055, %v2055
    %v2177 = vmul.f32 %v2056, %v2056
    %v2178 = vmul.f32 %v2057, %v2057
    %v2179 = vmul.f32 %v2058, %v2058
    %v2180 = vmul.f32 %v2059, %v2059
    %v2181 = vmul.f32 %v2060, %v2060
    %v2182 = vmul.f32 %v2176, %v99
    %v2183 = vmul.f32 %v2177, %v100
    %v2184 = vmul.f32 %v2178, %v101
    %v2185 = vmul.f32 %v2179, %v102
    %v2186 = vmul.f32 %v2180, %v103
    %v2187 = vmul.f32 %v2181, %v104
    %2189 = vset.pattern.permute.xlu0 33
    %2190 = vperm.xlu0 %2189, %v2182
    %v2191 = vpop.permute.xlu0 %2190
    %2194 = vset.pattern.permute.xlu0 33
    %2195 = vperm.xlu0 %2194, %v2183
    %v2196 = vpop.permute.xlu0 %2195
    %2199 = vset.pattern.permute.xlu0 33
    %2200 = vperm.xlu0 %2199, %v2184
    %v2201 = vpop.permute.xlu0 %2200
    %2204 = vset.pattern.permute.xlu0 33
    %2205 = vperm.xlu0 %2204, %v2185
    %v2206 = vpop.permute.xlu0 %2205
    %2209 = vset.pattern.permute.xlu0 33
    %2210 = vperm.xlu0 %2209, %v2186
    %v2211 = vpop.permute.xlu0 %2210
    %2214 = vset.pattern.permute.xlu0 33
    %2215 = vperm.xlu0 %2214, %v2187
    %v2216 = vpop.permute.xlu0 %2215
    %v2218 = vadd.f32 %v2191, %v795
    %v2219 = vadd.f32 %v2196, %v795
    %v2220 = vadd.f32 %v2201, %v795
    %v2221 = vadd.f32 %v2206, %v795
    %v2222 = vadd.f32 %v2211, %v795
    %v2223 = vadd.f32 %v2216, %v795
    %v2224 = vmul.f32 %v2055, 2.0
    %v2225 = vmul.f32 %v2056, 2.0
    %v2226 = vmul.f32 %v2057, 2.0
    %v2227 = vmul.f32 %v2058, 2.0
    %v2228 = vmul.f32 %v2059, 2.0
    %v2229 = vmul.f32 %v2060, 2.0
    %v2230 = vmul.f32 %v2224, %v1347
    %v2231 = vmul.f32 %v2225, %v1348
    %v2232 = vmul.f32 %v2226, %v1349
    %v2233 = vmul.f32 %v2227, %v1350
    %v2234 = vmul.f32 %v2228, %v1351
    %v2235 = vmul.f32 %v2229, %v1352
    %v2236 = vsub.f32 %v2218, %v2230
    %v2237 = vsub.f32 %v2219, %v2231
    %v2238 = vsub.f32 %v2220, %v2232
    %v2239 = vsub.f32 %v2221, %v2233
    %v2240 = vsub.f32 %v2222, %v2234
    %v2241 = vsub.f32 %v2223, %v2235
    %2242 = vmin.xlane.f32.xlu0 %v2236
    %v2243 = vpop.xlane.xlu0 %2242
    %2244 = vmin.xlane.f32.xlu0 %v2237
    %v2245 = vpop.xlane.xlu0 %2244
    %2246 = vmin.xlane.f32.xlu0 %v2238
    %v2247 = vpop.xlane.xlu0 %2246
    %2248 = vmin.xlane.f32.xlu0 %v2239
    %v2249 = vpop.xlane.xlu0 %2248
    %2250 = vmin.xlane.f32.xlu0 %v2240
    %v2251 = vpop.xlane.xlu0 %2250
    %v2252 = vsel %vm598, %v2241, inf
    %2253 = vmin.xlane.f32.xlu0 %v2252
    %v2254 = vpop.xlane.xlu0 %2253
    %vm2255 = vcmp.gt.f32.partialorder %v2243, 0.16
    %vm2256 = vcmp.gt.f32.partialorder %v2245, 0.16
    %vm2257 = vcmp.gt.f32.partialorder %v2247, 0.16
    %vm2258 = vcmp.gt.f32.partialorder %v2249, 0.16
    %vm2259 = vcmp.gt.f32.partialorder %v2251, 0.16
    %vm2260 = vcmp.gt.f32.partialorder %v2254, 0.16
    %v2261 = vsel %vm2255, 1, 0
    %v2262 = vsel %vm2256, 1, 0
    %v2263 = vsel %vm2257, 1, 0
    %v2264 = vsel %vm2258, 1, 0
    %v2265 = vsel %vm2259, 1, 0
    %v2266 = vsel %vm2260, 1, 0
    %v2267 = vcvt.s32.f32 %v2261
    %v2268 = vcvt.s32.f32 %v2262
    %v2269 = vcvt.s32.f32 %v2263
    %v2270 = vcvt.s32.f32 %v2264
    %v2271 = vcvt.s32.f32 %v2265
    %v2272 = vcvt.s32.f32 %v2266
    %v2273 = vmul.f32 %v2267, 0.01
    %v2274 = vmul.f32 %v2268, 0.01
    %v2275 = vmul.f32 %v2269, 0.01
    %v2276 = vmul.f32 %v2270, 0.01
    %v2277 = vmul.f32 %v2271, 0.01
    %v2278 = vmul.f32 %v2272, 0.01
    %v2279 = vsub.f32 1.0, %v2273
    %v2280 = vsub.f32 1.0, %v2274
    %v2281 = vsub.f32 1.0, %v2275
    %v2282 = vsub.f32 1.0, %v2276
    %v2283 = vsub.f32 1.0, %v2277
    %v2284 = vsub.f32 1.0, %v2278
    %v2285 = vmul.f32 %v2055, %v2279
    %v2286 = vmul.f32 %v2056, %v2280
    %v2287 = vmul.f32 %v2057, %v2281
    %v2288 = vmul.f32 %v2058, %v2282
    %v2289 = vmul.f32 %v2059, %v2283
    %v2290 = vmul.f32 %v2060, %v2284
    %v2291 = vmul.f32 %v2170, %v2170
    %v2292 = vmul.f32 %v2171, %v2171
    %v2293 = vmul.f32 %v2172, %v2172
    %v2294 = vmul.f32 %v2173, %v2173
    %v2295 = vmul.f32 %v2174, %v2174
    %v2296 = vmul.f32 %v2175, %v2175
    %v2297 = vmul.f32 %v2291, %v99
    %v2298 = vmul.f32 %v2292, %v100
    %v2299 = vmul.f32 %v2293, %v101
    %v2300 = vmul.f32 %v2294, %v102
    %v2301 = vmul.f32 %v2295, %v103
    %v2302 = vmul.f32 %v2296, %v104
    %2304 = vset.pattern.permute.xlu0 33
    %2305 = vperm.xlu0 %2304, %v2297
    %v2306 = vpop.permute.xlu0 %2305
    %2309 = vset.pattern.permute.xlu0 33
    %2310 = vperm.xlu0 %2309, %v2298
    %v2311 = vpop.permute.xlu0 %2310
    %2314 = vset.pattern.permute.xlu0 33
    %2315 = vperm.xlu0 %2314, %v2299
    %v2316 = vpop.permute.xlu0 %2315
    %2319 = vset.pattern.permute.xlu0 33
    %2320 = vperm.xlu0 %2319, %v2300
    %v2321 = vpop.permute.xlu0 %2320
    %2324 = vset.pattern.permute.xlu0 33
    %2325 = vperm.xlu0 %2324, %v2301
    %v2326 = vpop.permute.xlu0 %2325
    %2329 = vset.pattern.permute.xlu0 33
    %2330 = vperm.xlu0 %2329, %v2302
    %v2331 = vpop.permute.xlu0 %2330
    %v2333 = vadd.f32 %v2306, %v718
    %v2334 = vadd.f32 %v2311, %v718
    %v2335 = vadd.f32 %v2316, %v718
    %v2336 = vadd.f32 %v2321, %v718
    %v2337 = vadd.f32 %v2326, %v718
    %v2338 = vadd.f32 %v2331, %v718
    %v2339 = vmul.f32 %v2170, 2.0
    %v2340 = vmul.f32 %v2171, 2.0
    %v2341 = vmul.f32 %v2172, 2.0
    %v2342 = vmul.f32 %v2173, 2.0
    %v2343 = vmul.f32 %v2174, 2.0
    %v2344 = vmul.f32 %v2175, 2.0
    %v2345 = vmul.f32 %v2339, %v1317
    %v2346 = vmul.f32 %v2340, %v1318
    %v2347 = vmul.f32 %v2341, %v1319
    %v2348 = vmul.f32 %v2342, %v1320
    %v2349 = vmul.f32 %v2343, %v1321
    %v2350 = vmul.f32 %v2344, %v1322
    %v2351 = vsub.f32 %v2333, %v2345
    %v2352 = vsub.f32 %v2334, %v2346
    %v2353 = vsub.f32 %v2335, %v2347
    %v2354 = vsub.f32 %v2336, %v2348
    %v2355 = vsub.f32 %v2337, %v2349
    %v2356 = vsub.f32 %v2338, %v2350
    %2357 = vmin.xlane.f32.xlu0 %v2351
    %v2358 = vpop.xlane.xlu0 %2357
    %2359 = vmin.xlane.f32.xlu0 %v2352
    %v2360 = vpop.xlane.xlu0 %2359
    %2361 = vmin.xlane.f32.xlu0 %v2353
    %v2362 = vpop.xlane.xlu0 %2361
    %2363 = vmin.xlane.f32.xlu0 %v2354
    %v2364 = vpop.xlane.xlu0 %2363
    %2365 = vmin.xlane.f32.xlu0 %v2355
    %v2366 = vpop.xlane.xlu0 %2365
    %v2367 = vsel %vm598, %v2356, inf
    %2368 = vmin.xlane.f32.xlu0 %v2367
    %v2369 = vpop.xlane.xlu0 %2368
    %vm2370 = vcmp.gt.f32.partialorder %v2358, 0.16
    %vm2371 = vcmp.gt.f32.partialorder %v2360, 0.16
    %vm2372 = vcmp.gt.f32.partialorder %v2362, 0.16
    %vm2373 = vcmp.gt.f32.partialorder %v2364, 0.16
    %vm2374 = vcmp.gt.f32.partialorder %v2366, 0.16
    %vm2375 = vcmp.gt.f32.partialorder %v2369, 0.16
    %v2376 = vsel %vm2370, 1, 0
    %v2377 = vsel %vm2371, 1, 0
    %v2378 = vsel %vm2372, 1, 0
    %v2379 = vsel %vm2373, 1, 0
    %v2380 = vsel %vm2374, 1, 0
    %v2381 = vsel %vm2375, 1, 0
    %v2382 = vcvt.s32.f32 %v2376
    %v2383 = vcvt.s32.f32 %v2377
    %v2384 = vcvt.s32.f32 %v2378
    %v2385 = vcvt.s32.f32 %v2379
    %v2386 = vcvt.s32.f32 %v2380
    %v2387 = vcvt.s32.f32 %v2381
    %v2388 = vmul.f32 %v2382, 0.01
    %v2389 = vmul.f32 %v2383, 0.01
    %v2390 = vmul.f32 %v2384, 0.01
    %v2391 = vmul.f32 %v2385, 0.01
    %v2392 = vmul.f32 %v2386, 0.01
    %v2393 = vmul.f32 %v2387, 0.01
    %v2394 = vsub.f32 1.0, %v2388
    %v2395 = vsub.f32 1.0, %v2389
    %v2396 = vsub.f32 1.0, %v2390
    %v2397 = vsub.f32 1.0, %v2391
    %v2398 = vsub.f32 1.0, %v2392
    %v2399 = vsub.f32 1.0, %v2393
    %v2400 = vmul.f32 %v2170, %v2394
    %v2401 = vmul.f32 %v2171, %v2395
    %v2402 = vmul.f32 %v2172, %v2396
    %v2403 = vmul.f32 %v2173, %v2397
    %v2404 = vmul.f32 %v2174, %v2398
    %v2405 = vmul.f32 %v2175, %v2399
    %v2406 = vmul.f32 %v2285, %v2285
    %v2407 = vmul.f32 %v2286, %v2286
    %v2408 = vmul.f32 %v2287, %v2287
    %v2409 = vmul.f32 %v2288, %v2288
    %v2410 = vmul.f32 %v2289, %v2289
    %v2411 = vmul.f32 %v2290, %v2290
    %v2412 = vmul.f32 %v2406, %v99
    %v2413 = vmul.f32 %v2407, %v100
    %v2414 = vmul.f32 %v2408, %v101
    %v2415 = vmul.f32 %v2409, %v102
    %v2416 = vmul.f32 %v2410, %v103
    %v2417 = vmul.f32 %v2411, %v104
    %2419 = vset.pattern.permute.xlu0 33
    %2420 = vperm.xlu0 %2419, %v2412
    %v2421 = vpop.permute.xlu0 %2420
    %2424 = vset.pattern.permute.xlu0 33
    %2425 = vperm.xlu0 %2424, %v2413
    %v2426 = vpop.permute.xlu0 %2425
    %2429 = vset.pattern.permute.xlu0 33
    %2430 = vperm.xlu0 %2429, %v2414
    %v2431 = vpop.permute.xlu0 %2430
    %2434 = vset.pattern.permute.xlu0 33
    %2435 = vperm.xlu0 %2434, %v2415
    %v2436 = vpop.permute.xlu0 %2435
    %2439 = vset.pattern.permute.xlu0 33
    %2440 = vperm.xlu0 %2439, %v2416
    %v2441 = vpop.permute.xlu0 %2440
    %2444 = vset.pattern.permute.xlu0 33
    %2445 = vperm.xlu0 %2444, %v2417
    %v2446 = vpop.permute.xlu0 %2445
    %v2448 = vadd.f32 %v2421, %v795
    %v2449 = vadd.f32 %v2426, %v795
    %v2450 = vadd.f32 %v2431, %v795
    %v2451 = vadd.f32 %v2436, %v795
    %v2452 = vadd.f32 %v2441, %v795
    %v2453 = vadd.f32 %v2446, %v795
    %v2454 = vmul.f32 %v2285, 2.0
    %v2455 = vmul.f32 %v2286, 2.0
    %v2456 = vmul.f32 %v2287, 2.0
    %v2457 = vmul.f32 %v2288, 2.0
    %v2458 = vmul.f32 %v2289, 2.0
    %v2459 = vmul.f32 %v2290, 2.0
    %v2460 = vmul.f32 %v2454, %v1347
    %v2461 = vmul.f32 %v2455, %v1348
    %v2462 = vmul.f32 %v2456, %v1349
    %v2463 = vmul.f32 %v2457, %v1350
    %v2464 = vmul.f32 %v2458, %v1351
    %v2465 = vmul.f32 %v2459, %v1352
    %v2466 = vsub.f32 %v2448, %v2460
    %v2467 = vsub.f32 %v2449, %v2461
    %v2468 = vsub.f32 %v2450, %v2462
    %v2469 = vsub.f32 %v2451, %v2463
    %v2470 = vsub.f32 %v2452, %v2464
    %v2471 = vsub.f32 %v2453, %v2465
    %2472 = vmin.xlane.f32.xlu0 %v2466
    %v2473 = vpop.xlane.xlu0 %2472
    %2474 = vmin.xlane.f32.xlu0 %v2467
    %v2475 = vpop.xlane.xlu0 %2474
    %2476 = vmin.xlane.f32.xlu0 %v2468
    %v2477 = vpop.xlane.xlu0 %2476
    %2478 = vmin.xlane.f32.xlu0 %v2469
    %v2479 = vpop.xlane.xlu0 %2478
    %2480 = vmin.xlane.f32.xlu0 %v2470
    %v2481 = vpop.xlane.xlu0 %2480
    %v2482 = vsel %vm598, %v2471, inf
    %2483 = vmin.xlane.f32.xlu0 %v2482
    %v2484 = vpop.xlane.xlu0 %2483
    %vm2485 = vcmp.gt.f32.partialorder %v2473, 0.16
    %vm2486 = vcmp.gt.f32.partialorder %v2475, 0.16
    %vm2487 = vcmp.gt.f32.partialorder %v2477, 0.16
    %vm2488 = vcmp.gt.f32.partialorder %v2479, 0.16
    %vm2489 = vcmp.gt.f32.partialorder %v2481, 0.16
    %vm2490 = vcmp.gt.f32.partialorder %v2484, 0.16
    %v2491 = vsel %vm2485, 1, 0
    %v2492 = vsel %vm2486, 1, 0
    %v2493 = vsel %vm2487, 1, 0
    %v2494 = vsel %vm2488, 1, 0
    %v2495 = vsel %vm2489, 1, 0
    %v2496 = vsel %vm2490, 1, 0
    %v2497 = vcvt.s32.f32 %v2491
    %v2498 = vcvt.s32.f32 %v2492
    %v2499 = vcvt.s32.f32 %v2493
    %v2500 = vcvt.s32.f32 %v2494
    %v2501 = vcvt.s32.f32 %v2495
    %v2502 = vcvt.s32.f32 %v2496
    %v2503 = vmul.f32 %v2497, 0.01
    %v2504 = vmul.f32 %v2498, 0.01
    %v2505 = vmul.f32 %v2499, 0.01
    %v2506 = vmul.f32 %v2500, 0.01
    %v2507 = vmul.f32 %v2501, 0.01
    %v2508 = vmul.f32 %v2502, 0.01
    %v2509 = vsub.f32 1.0, %v2503
    %v2510 = vsub.f32 1.0, %v2504
    %v2511 = vsub.f32 1.0, %v2505
    %v2512 = vsub.f32 1.0, %v2506
    %v2513 = vsub.f32 1.0, %v2507
    %v2514 = vsub.f32 1.0, %v2508
    %v2515 = vmul.f32 %v2285, %v2509
    %v2516 = vmul.f32 %v2286, %v2510
    %v2517 = vmul.f32 %v2287, %v2511
    %v2518 = vmul.f32 %v2288, %v2512
    %v2519 = vmul.f32 %v2289, %v2513
    %v2520 = vmul.f32 %v2290, %v2514
  $region18: #{cage_skinning_forward.1} parent=0 // loop_footer
    %s1358 = sadd.s32 1, %s1354
  $region19: #{cage_skinning_forward.1} parent=0 // loop_footer_branch
    %1353 = sbr.rel target = $region15
  $region20: #{cage_skinning_forward.1} parent=0 // loop_exit
    _
  %v2521 = vmul.f32 %v1359, %v27
  %v2522 = vmul.f32 %v1360, %v28
  %v2523 = vmul.f32 %v1361, %v29
  %v2524 = vmul.f32 %v1362, %v30
  %v2525 = vmul.f32 %v1363, %v31
  %v2526 = vmul.f32 %v1364, %v32
  %v2527 = vmul.f32 %v1359, %v1359
  %v2528 = vmul.f32 %v1360, %v1360
  %v2529 = vmul.f32 %v1361, %v1361
  %v2530 = vmul.f32 %v1362, %v1362
  %v2531 = vmul.f32 %v1363, %v1363
  %v2532 = vmul.f32 %v1364, %v1364
  %v2533 = vmul.f32 %v2527, %v99
  %v2534 = vmul.f32 %v2528, %v100
  %v2535 = vmul.f32 %v2529, %v101
  %v2536 = vmul.f32 %v2530, %v102
  %v2537 = vmul.f32 %v2531, %v103
  %v2538 = vmul.f32 %v2532, %v104
  %2545 = vrot.lane.b32.xlu0 %v2521, 95
  %v2546 = vpop.permute.xlu0 %2545
  %2547 = vrot.lane.b32.xlu0 %v2522, 95
  %v2548 = vpop.permute.xlu0 %2547
  %2549 = vrot.lane.b32.xlu0 %v2523, 95
  %v2550 = vpop.permute.xlu0 %2549
  %2551 = vrot.lane.b32.xlu0 %v2524, 95
  %v2552 = vpop.permute.xlu0 %2551
  %2553 = vrot.lane.b32.xlu0 %v2525, 95
  %v2554 = vpop.permute.xlu0 %2553
  %2555 = vrot.lane.b32.xlu0 %v2526, 95
  %v2556 = vpop.permute.xlu0 %2555
  %2563 = vst.msk [vmem:[%s3 + $0x6] sm:$0xff] %vm393, %v2546
  %2564 = vst.msk [vmem:[%s3 + $0xe] sm:$0xff] %vm393, %v2548
  %2565 = vst.msk [vmem:[%s3 + $0x16] sm:$0xff] %vm393, %v2550
  %2566 = vst.msk [vmem:[%s3 + $0x1e] sm:$0xff] %vm393, %v2552
  %2567 = vst.msk [vmem:[%s3 + $0x26] sm:$0xff] %vm393, %v2554
  %vm2568 = vcmask 17408
  %2569 = vst.msk [vmem:[%s3 + $0x2e] sm:$0x3] %vm2568, %v2556
  %2570 = vst.msk [vmem:[%s3 + $0x84] sm:$0xff] %vm841, %v1156
  %2571 = vst.msk [vmem:[%s3 + $0x8c] sm:$0xff] %vm841, %v1159
  %2572 = vst.msk [vmem:[%s3 + $0x94] sm:$0xff] %vm841, %v1162
  %2573 = vst.msk [vmem:[%s3 + $0x9c] sm:$0xff] %vm841, %v1165
  %2574 = vst.msk [vmem:[%s3 + $0xa4] sm:$0xff] %vm841, %v1168
  %vm2575 = vcmask 58368
  %2576 = vst.msk [vmem:[%s3 + $0xac] sm:$0x3] %vm2575, %v1171
  %v2577 = vmul.f32 %v586, %v586
  %2579 = vrot.lane.b32.xlu0 %v2577, 120
  %v2580 = vpop.permute.xlu0 %2579
  %v2582 = vadd.f32 %v2577, %v2580
  %2583 = vrot.lane.b32.xlu0 %v2577, 112
  %v2584 = vpop.permute.xlu0 %2583
  %v2586 = vadd.f32 %v2582, %v2584
  %2588 = vset.pattern.permute.xlu0 33
  %2589 = vperm.xlu0 %2588, %v2533
  %v2590 = vpop.permute.xlu0 %2589
  %2593 = vset.pattern.permute.xlu0 33
  %2594 = vperm.xlu0 %2593, %v2534
  %v2595 = vpop.permute.xlu0 %2594
  %2598 = vset.pattern.permute.xlu0 33
  %2599 = vperm.xlu0 %2598, %v2535
  %v2600 = vpop.permute.xlu0 %2599
  %2603 = vset.pattern.permute.xlu0 33
  %2604 = vperm.xlu0 %2603, %v2536
  %v2605 = vpop.permute.xlu0 %2604
  %2608 = vset.pattern.permute.xlu0 33
  %2609 = vperm.xlu0 %2608, %v2537
  %v2610 = vpop.permute.xlu0 %2609
  %2613 = vset.pattern.permute.xlu0 33
  %2614 = vperm.xlu0 %2613, %v2538
  %v2615 = vpop.permute.xlu0 %2614
  %v2617 = vperm.slane %v2586, 0
  %v2618 = vadd.f32 %v2590, %v2617
  %v2619 = vadd.f32 %v2595, %v2617
  %v2620 = vadd.f32 %v2600, %v2617
  %v2621 = vadd.f32 %v2605, %v2617
  %v2622 = vadd.f32 %v2610, %v2617
  %v2623 = vadd.f32 %v2615, %v2617
  %2624 = vset.pattern.permute.xlu0 33
  %2625 = vperm.xlu0 %2624, %v2521
  %v2626 = vpop.permute.xlu0 %2625
  %2628 = vset.pattern.permute.xlu0 33
  %2629 = vperm.xlu0 %2628, %v2522
  %v2630 = vpop.permute.xlu0 %2629
  %2632 = vset.pattern.permute.xlu0 33
  %2633 = vperm.xlu0 %2632, %v2523
  %v2634 = vpop.permute.xlu0 %2633
  %2636 = vset.pattern.permute.xlu0 33
  %2637 = vperm.xlu0 %2636, %v2524
  %v2638 = vpop.permute.xlu0 %2637
  %2640 = vset.pattern.permute.xlu0 33
  %2641 = vperm.xlu0 %2640, %v2525
  %v2642 = vpop.permute.xlu0 %2641
  %2644 = vset.pattern.permute.xlu0 33
  %2645 = vperm.xlu0 %2644, %v2526
  %v2646 = vpop.permute.xlu0 %2645
  %v2648 = vperm.slane %v586, 0
  %v2649 = vmul.f32 %v2626, %v2648
  %v2650 = vmul.f32 %v2630, %v2648
  %v2651 = vmul.f32 %v2634, %v2648
  %v2652 = vmul.f32 %v2638, %v2648
  %v2653 = vmul.f32 %v2642, %v2648
  %v2654 = vmul.f32 %v2646, %v2648
  %2655 = vset.pattern.permute.xlu0 34
  %2656 = vperm.xlu0 %2655, %v2521
  %v2657 = vpop.permute.xlu0 %2656
  %2659 = vset.pattern.permute.xlu0 34
  %2660 = vperm.xlu0 %2659, %v2522
  %v2661 = vpop.permute.xlu0 %2660
  %2663 = vset.pattern.permute.xlu0 34
  %2664 = vperm.xlu0 %2663, %v2523
  %v2665 = vpop.permute.xlu0 %2664
  %2667 = vset.pattern.permute.xlu0 34
  %2668 = vperm.xlu0 %2667, %v2524
  %v2669 = vpop.permute.xlu0 %2668
  %2671 = vset.pattern.permute.xlu0 34
  %2672 = vperm.xlu0 %2671, %v2525
  %v2673 = vpop.permute.xlu0 %2672
  %2675 = vset.pattern.permute.xlu0 34
  %2676 = vperm.xlu0 %2675, %v2526
  %v2677 = vpop.permute.xlu0 %2676
  %v2679 = vmul.f32 %v2657, %v2648
  %v2680 = vmul.f32 %v2661, %v2648
  %v2681 = vmul.f32 %v2665, %v2648
  %v2682 = vmul.f32 %v2669, %v2648
  %v2683 = vmul.f32 %v2673, %v2648
  %v2684 = vmul.f32 %v2677, %v2648
  %2691 = vrot.lane.b32.xlu0 %v2679, 120
  %v2692 = vpop.permute.xlu0 %2691
  %2693 = vrot.lane.b32.xlu0 %v2680, 120
  %v2694 = vpop.permute.xlu0 %2693
  %2695 = vrot.lane.b32.xlu0 %v2681, 120
  %v2696 = vpop.permute.xlu0 %2695
  %2697 = vrot.lane.b32.xlu0 %v2682, 120
  %v2698 = vpop.permute.xlu0 %2697
  %2699 = vrot.lane.b32.xlu0 %v2683, 120
  %v2700 = vpop.permute.xlu0 %2699
  %2701 = vrot.lane.b32.xlu0 %v2684, 120
  %v2702 = vpop.permute.xlu0 %2701
  %v2709 = vadd.f32 %v2649, %v2692
  %v2710 = vadd.f32 %v2650, %v2694
  %v2711 = vadd.f32 %v2651, %v2696
  %v2712 = vadd.f32 %v2652, %v2698
  %v2713 = vadd.f32 %v2653, %v2700
  %v2714 = vadd.f32 %v2654, %v2702
  %2715 = vset.pattern.permute.xlu0 35
  %2716 = vperm.xlu0 %2715, %v2521
  %v2717 = vpop.permute.xlu0 %2716
  %2719 = vset.pattern.permute.xlu0 35
  %2720 = vperm.xlu0 %2719, %v2522
  %v2721 = vpop.permute.xlu0 %2720
  %2723 = vset.pattern.permute.xlu0 35
  %2724 = vperm.xlu0 %2723, %v2523
  %v2725 = vpop.permute.xlu0 %2724
  %2727 = vset.pattern.permute.xlu0 35
  %2728 = vperm.xlu0 %2727, %v2524
  %v2729 = vpop.permute.xlu0 %2728
  %2731 = vset.pattern.permute.xlu0 35
  %2732 = vperm.xlu0 %2731, %v2525
  %v2733 = vpop.permute.xlu0 %2732
  %2735 = vset.pattern.permute.xlu0 35
  %2736 = vperm.xlu0 %2735, %v2526
  %v2737 = vpop.permute.xlu0 %2736
  %v2739 = vmul.f32 %v2717, %v2648
  %v2740 = vmul.f32 %v2721, %v2648
  %v2741 = vmul.f32 %v2725, %v2648
  %v2742 = vmul.f32 %v2729, %v2648
  %v2743 = vmul.f32 %v2733, %v2648
  %v2744 = vmul.f32 %v2737, %v2648
  %2751 = vrot.lane.b32.xlu0 %v2739, 112
  %v2752 = vpop.permute.xlu0 %2751
  %2753 = vrot.lane.b32.xlu0 %v2740, 112
  %v2754 = vpop.permute.xlu0 %2753
  %2755 = vrot.lane.b32.xlu0 %v2741, 112
  %v2756 = vpop.permute.xlu0 %2755
  %2757 = vrot.lane.b32.xlu0 %v2742, 112
  %v2758 = vpop.permute.xlu0 %2757
  %2759 = vrot.lane.b32.xlu0 %v2743, 112
  %v2760 = vpop.permute.xlu0 %2759
  %2761 = vrot.lane.b32.xlu0 %v2744, 112
  %v2762 = vpop.permute.xlu0 %2761
  %v2769 = vadd.f32 %v2709, %v2752
  %v2770 = vadd.f32 %v2710, %v2754
  %v2771 = vadd.f32 %v2711, %v2756
  %v2772 = vadd.f32 %v2712, %v2758
  %v2773 = vadd.f32 %v2713, %v2760
  %v2774 = vadd.f32 %v2714, %v2762
  %v2775 = vmul.f32 %v2769, 2.0
  %v2776 = vmul.f32 %v2770, 2.0
  %v2777 = vmul.f32 %v2771, 2.0
  %v2778 = vmul.f32 %v2772, 2.0
  %v2779 = vmul.f32 %v2773, 2.0
  %v2780 = vmul.f32 %v2774, 2.0
  %v2781 = vsub.f32 %v2618, %v2775
  %v2782 = vsub.f32 %v2619, %v2776
  %v2783 = vsub.f32 %v2620, %v2777
  %v2784 = vsub.f32 %v2621, %v2778
  %v2785 = vsub.f32 %v2622, %v2779
  %v2786 = vsub.f32 %v2623, %v2780
  %v2787 = vsel %vm841, %v2781, inf
  %v2788 = vsel %vm841, %v2782, inf
  %v2789 = vsel %vm841, %v2783, inf
  %v2790 = vsel %vm841, %v2784, inf
  %v2791 = vsel %vm841, %v2785, inf
  %v2792 = vmin.f32 %v2787, %v2791
  %v2793 = vsel %vm2575, %v2786, inf
  %v2794 = vmin.f32 %v2788, %v2793
  %v2795 = vmin.f32 %v2792, %v2794
  %v2796 = vmin.f32 %v2789, %v2790
  %v2797 = vmin.f32 %v2795, %v2796
  %v2798 = vrot.slane %v2797, 4
  %v2799 = vmin.f32 %v2797, %v2798
  %v2800 = vrot.slane %v2799, 2
  %v2801 = vmin.f32 %v2799, %v2800
  %v2802 = vrot.slane %v2801, 1
  %v2803 = vmin.f32 %v2801, %v2802
  %vm2804 = vcmp.le.f32.partialorder %v2781, %v2803
  %vm2805 = vcmp.le.f32.partialorder %v2782, %v2803
  %vm2806 = vcmp.le.f32.partialorder %v2783, %v2803
  %vm2807 = vcmp.le.f32.partialorder %v2784, %v2803
  %vm2808 = vcmp.le.f32.partialorder %v2785, %v2803
  %vm2809 = vcmp.le.f32.partialorder %v2786, %v2803
  %v2810 = vsel %vm2804, inf, %v2781
  %v2811 = vsel %vm2805, inf, %v2782
  %v2812 = vsel %vm2806, inf, %v2783
  %v2813 = vsel %vm2807, inf, %v2784
  %v2814 = vsel %vm2808, inf, %v2785
  %v2815 = vsel %vm2809, inf, %v2786
  %v2816 = vsel %vm841, %v2810, inf
  %v2817 = vsel %vm841, %v2811, inf
  %v2818 = vsel %vm841, %v2812, inf
  %v2819 = vsel %vm841, %v2813, inf
  %v2820 = vsel %vm841, %v2814, inf
  %v2821 = vmin.f32 %v2816, %v2820
  %v2822 = vsel %vm2575, %v2815, inf
  %v2823 = vmin.f32 %v2817, %v2822
  %v2824 = vmin.f32 %v2821, %v2823
  %v2825 = vmin.f32 %v2818, %v2819
  %v2826 = vmin.f32 %v2824, %v2825
  %v2827 = vrot.slane %v2826, 4
  %v2828 = vmin.f32 %v2826, %v2827
  %v2829 = vrot.slane %v2828, 2
  %v2830 = vmin.f32 %v2828, %v2829
  %v2831 = vrot.slane %v2830, 1
  %v2832 = vmin.f32 %v2830, %v2831
  %vm2833 = vcmp.le.f32.partialorder %v2810, %v2832
  %vm2834 = vcmp.le.f32.partialorder %v2811, %v2832
  %vm2835 = vcmp.le.f32.partialorder %v2812, %v2832
  %vm2836 = vcmp.le.f32.partialorder %v2813, %v2832
  %vm2837 = vcmp.le.f32.partialorder %v2814, %v2832
  %vm2838 = vcmp.le.f32.partialorder %v2815, %v2832
  %v2839 = vsel %vm2833, inf, %v2810
  %v2840 = vsel %vm2834, inf, %v2811
  %v2841 = vsel %vm2835, inf, %v2812
  %v2842 = vsel %vm2836, inf, %v2813
  %v2843 = vsel %vm2837, inf, %v2814
  %v2844 = vsel %vm2838, inf, %v2815
  %v2845 = vsel %vm841, %v2839, inf
  %v2846 = vsel %vm841, %v2840, inf
  %v2847 = vsel %vm841, %v2841, inf
  %v2848 = vsel %vm841, %v2842, inf
  %v2849 = vsel %vm841, %v2843, inf
  %v2850 = vmin.f32 %v2845, %v2849
  %v2851 = vsel %vm2575, %v2844, inf
  %v2852 = vmin.f32 %v2846, %v2851
  %v2853 = vmin.f32 %v2850, %v2852
  %v2854 = vmin.f32 %v2847, %v2848
  %v2855 = vmin.f32 %v2853, %v2854
  %v2856 = vrot.slane %v2855, 4
  %v2857 = vmin.f32 %v2855, %v2856
  %v2858 = vrot.slane %v2857, 2
  %v2859 = vmin.f32 %v2857, %v2858
  %v2860 = vrot.slane %v2859, 1
  %v2861 = vmin.f32 %v2859, %v2860
  %vm2862 = vcmp.le.f32.partialorder %v2839, %v2861
  %vm2863 = vcmp.le.f32.partialorder %v2840, %v2861
  %vm2864 = vcmp.le.f32.partialorder %v2841, %v2861
  %vm2865 = vcmp.le.f32.partialorder %v2842, %v2861
  %vm2866 = vcmp.le.f32.partialorder %v2843, %v2861
  %vm2867 = vcmp.le.f32.partialorder %v2844, %v2861
  %v2868 = vsel %vm2862, inf, %v2839
  %v2869 = vsel %vm2863, inf, %v2840
  %v2870 = vsel %vm2864, inf, %v2841
  %v2871 = vsel %vm2865, inf, %v2842
  %v2872 = vsel %vm2866, inf, %v2843
  %v2873 = vsel %vm2867, inf, %v2844
  %v2874 = vsel %vm841, %v2868, inf
  %v2875 = vsel %vm841, %v2869, inf
  %v2876 = vsel %vm841, %v2870, inf
  %v2877 = vsel %vm841, %v2871, inf
  %v2878 = vsel %vm841, %v2872, inf
  %v2879 = vmin.f32 %v2874, %v2878
  %v2880 = vsel %vm2575, %v2873, inf
  %v2881 = vmin.f32 %v2875, %v2880
  %v2882 = vmin.f32 %v2879, %v2881
  %v2883 = vmin.f32 %v2876, %v2877
  %v2884 = vmin.f32 %v2882, %v2883
  %v2885 = vrot.slane %v2884, 4
  %v2886 = vmin.f32 %v2884, %v2885
  %v2887 = vrot.slane %v2886, 2
  %v2888 = vmin.f32 %v2886, %v2887
  %v2889 = vrot.slane %v2888, 1
  %v2890 = vmin.f32 %v2888, %v2889
  %vm2891 = vcmp.le.f32.partialorder %v2868, %v2890
  %vm2892 = vcmp.le.f32.partialorder %v2869, %v2890
  %vm2893 = vcmp.le.f32.partialorder %v2870, %v2890
  %vm2894 = vcmp.le.f32.partialorder %v2871, %v2890
  %vm2895 = vcmp.le.f32.partialorder %v2872, %v2890
  %vm2896 = vcmp.le.f32.partialorder %v2873, %v2890
  %v2897 = vsel %vm2891, inf, %v2868
  %v2898 = vsel %vm2892, inf, %v2869
  %v2899 = vsel %vm2893, inf, %v2870
  %v2900 = vsel %vm2894, inf, %v2871
  %v2901 = vsel %vm2895, inf, %v2872
  %v2902 = vsel %vm2896, inf, %v2873
  %v2903 = vsel %vm841, %v2897, inf
  %v2904 = vsel %vm841, %v2898, inf
  %v2905 = vsel %vm841, %v2899, inf
  %v2906 = vsel %vm841, %v2900, inf
  %v2907 = vsel %vm841, %v2901, inf
  %v2908 = vmin.f32 %v2903, %v2907
  %v2909 = vsel %vm2575, %v2902, inf
  %v2910 = vmin.f32 %v2904, %v2909
  %v2911 = vmin.f32 %v2908, %v2910
  %v2912 = vmin.f32 %v2905, %v2906
  %v2913 = vmin.f32 %v2911, %v2912
  %v2914 = vrot.slane %v2913, 4
  %v2915 = vmin.f32 %v2913, %v2914
  %v2916 = vrot.slane %v2915, 2
  %v2917 = vmin.f32 %v2915, %v2916
  %v2918 = vrot.slane %v2917, 1
  %v2919 = vmin.f32 %v2917, %v2918
  %vm2920 = vcmp.le.f32.partialorder %v2781, %v2919
  %vm2921 = vcmp.le.f32.partialorder %v2782, %v2919
  %vm2922 = vcmp.le.f32.partialorder %v2783, %v2919
  %vm2923 = vcmp.le.f32.partialorder %v2784, %v2919
  %vm2924 = vcmp.le.f32.partialorder %v2785, %v2919
  %vm2925 = vcmp.le.f32.partialorder %v2786, %v2919
  %v2926 = vsel %vm2920, 1, 0
  %v2927 = vsel %vm2921, 1, 0
  %v2928 = vsel %vm2922, 1, 0
  %v2929 = vsel %vm2923, 1, 0
  %v2930 = vsel %vm2924, 1, 0
  %v2931 = vsel %vm2925, 1, 0
  %v2932 = vcvt.s32.f32 %v2926
  %v2933 = vcvt.s32.f32 %v2927
  %v2934 = vcvt.s32.f32 %v2928
  %v2935 = vcvt.s32.f32 %v2929
  %v2936 = vcvt.s32.f32 %v2930
  %v2937 = vcvt.s32.f32 %v2931
  %v2938 = vmul.f32 %v1215, %v2932
  %v2939 = vmul.f32 %v1216, %v2933
  %v2940 = vmul.f32 %v1217, %v2934
  %v2941 = vmul.f32 %v1218, %v2935
  %v2942 = vmul.f32 %v1219, %v2936
  %v2943 = vmul.f32 %v1220, %v2937
  %2944 = vst.msk [vmem:[%s3 + $0x5a] sm:$0xff] %vm841, %v2938
  %2945 = vst.msk [vmem:[%s3 + $0x62] sm:$0xff] %vm841, %v2939
  %2946 = vst.msk [vmem:[%s3 + $0x6a] sm:$0xff] %vm841, %v2940
  %2947 = vst.msk [vmem:[%s3 + $0x72] sm:$0xff] %vm841, %v2941
  %2948 = vst.msk [vmem:[%s3 + $0x7a] sm:$0xff] %vm841, %v2942
  %2949 = vst.msk [vmem:[%s3 + $0x82] sm:$0x3] %vm2575, %v2943
  %2950 = vrot.lane.b32.xlu0 %v522, 2
  %v2951 = vpop.permute.xlu0 %2950
  %v2953 = vsub.f32 %v522, %v2951
  %2954 = vrot.lane.b32.xlu0 %v523, 2
  %v2955 = vpop.permute.xlu0 %2954
  %v2957 = vsub.f32 %v523, %v2955
  %2958 = vrot.lane.b32.xlu0 %v524, 2
  %v2959 = vpop.permute.xlu0 %2958
  %v2961 = vsub.f32 %v524, %v2959
  %2963 = vrot.lane.b32.xlu0 %v2953, 126
  %v2964 = vpop.permute.xlu0 %2963
  %2967 = vrot.lane.b32.xlu0 %v2957, 127
  %v2968 = vpop.permute.xlu0 %2967
  %v2970 = vsel %vm383, %v2964, %v2968
  %v2971 = vsel %vm388, %v2970, %v2961
  %v2973 = vsel %vm841, %v2938, 0
  %v2976 = vsel %vm841, %v2939, 0
  %v2979 = vsel %vm841, %v2940, 0
  %v2982 = vsel %vm841, %v2941, 0
  %v2985 = vsel %vm841, %v2942, 0
  %v2988 = vsel %vm841, %v2943, 0
  %2990 = vmatpush.msra.mxu0 0.0
  %2991 = vmatpush.msra.mxu0 0.0
  %2992 = vmatpush.msra.mxu0 0.0
  %2993 = vmatpush.msra.mxu0 0.0
  %2994 = vmatpush.msra.mxu0 0.0
  %2995 = vmatpush.msra.mxu0 0.0
  %2996 = vmatpush.msra.mxu0 0.0
  %2997 = vmatpush.msra.mxu0 0.0
  %2998 = vmatpush.msra.mxu0 0.0
  %2999 = vmatpush.msra.mxu0 0.0
  %3000 = vmatpush.msra.mxu0 0.0
  %3001 = vmatpush.msra.mxu0 0.0
  %3002 = vmatpush.msra.mxu0 0.0
  %3003 = vmatpush.msra.mxu0 0.0
  %3004 = vmatpush.msra.mxu0 0.0
  %3005 = vmatpush.msra.mxu0 %v2971
  %3006 = vmatmul.f32.gmra.mxu0 %v2973
  %v3007 = vpop.f32.mrf.mxu0
  %v3008 = vadd.f32 0.0, %v3007
  %3009 = vmatmul.f32.gmra.mxu0 %v2976
  %v3010 = vpop.f32.mrf.mxu0
  %v3011 = vadd.f32 0.0, %v3010
  %3012 = vmatmul.f32.gmra.mxu0 %v2979
  %v3013 = vpop.f32.mrf.mxu0
  %v3014 = vadd.f32 0.0, %v3013
  %3015 = vmatmul.f32.gmra.mxu0 %v2982
  %v3016 = vpop.f32.mrf.mxu0
  %v3017 = vadd.f32 0.0, %v3016
  %3018 = vmatmul.f32.gmra.mxu0 %v2985
  %v3019 = vpop.f32.mrf.mxu0
  %v3020 = vadd.f32 0.0, %v3019
  %3021 = vmatmul.f32.gmra.mxu0 %v2988
  %v3022 = vpop.f32.mrf.mxu0
  %v3023 = vadd.f32 0.0, %v3022
  %3024 = vdwg.mxu0
  %3031 = vrot.lane.b32.xlu0 %v3008, 33
  %v3032 = vpop.permute.xlu0 %3031
  %3033 = vrot.lane.b32.xlu0 %v3011, 33
  %v3034 = vpop.permute.xlu0 %3033
  %3035 = vrot.lane.b32.xlu0 %v3014, 33
  %v3036 = vpop.permute.xlu0 %3035
  %3037 = vrot.lane.b32.xlu0 %v3017, 33
  %v3038 = vpop.permute.xlu0 %3037
  %3039 = vrot.lane.b32.xlu0 %v3020, 33
  %v3040 = vpop.permute.xlu0 %3039
  %3041 = vrot.lane.b32.xlu0 %v3023, 33
  %v3042 = vpop.permute.xlu0 %3041
  %v3049 = vadd.f32 %v2521, %v3032
  %v3050 = vadd.f32 %v2522, %v3034
  %v3051 = vadd.f32 %v2523, %v3036
  %v3052 = vadd.f32 %v2524, %v3038
  %v3053 = vadd.f32 %v2525, %v3040
  %v3054 = vadd.f32 %v2526, %v3042
  %3061 = vrot.lane.b32.xlu0 %v3049, 95
  %v3062 = vpop.permute.xlu0 %3061
  %3063 = vrot.lane.b32.xlu0 %v3050, 95
  %v3064 = vpop.permute.xlu0 %3063
  %3065 = vrot.lane.b32.xlu0 %v3051, 95
  %v3066 = vpop.permute.xlu0 %3065
  %3067 = vrot.lane.b32.xlu0 %v3052, 95
  %v3068 = vpop.permute.xlu0 %3067
  %3069 = vrot.lane.b32.xlu0 %v3053, 95
  %v3070 = vpop.permute.xlu0 %3069
  %3071 = vrot.lane.b32.xlu0 %v3054, 95
  %v3072 = vpop.permute.xlu0 %3071
  %3079 = vst.msk [vmem:[%s3 + $0x30] sm:$0xff] %vm393, %v3062
  %3080 = vst.msk [vmem:[%s3 + $0x38] sm:$0xff] %vm393, %v3064
  %3081 = vst.msk [vmem:[%s3 + $0x40] sm:$0xff] %vm393, %v3066
  %3082 = vst.msk [vmem:[%s3 + $0x48] sm:$0xff] %vm393, %v3068
  %3083 = vst.msk [vmem:[%s3 + $0x50] sm:$0xff] %vm393, %v3070
  %3084 = vst.msk [vmem:[%s3 + $0x58] sm:$0x3] %vm2568, %v3072
  %v3085 = vadd.f32 %v2590, %v718
  %v3086 = vadd.f32 %v2595, %v718
  %v3087 = vadd.f32 %v2600, %v718
  %v3088 = vadd.f32 %v2605, %v718
  %v3089 = vadd.f32 %v2610, %v718
  %v3090 = vadd.f32 %v2615, %v718
  %v3091 = vmul.f32 %v2626, %v147
  %v3092 = vmul.f32 %v2630, %v147
  %v3093 = vmul.f32 %v2634, %v147
  %v3094 = vmul.f32 %v2638, %v147
  %v3095 = vmul.f32 %v2642, %v147
  %v3096 = vmul.f32 %v2646, %v147
  %v3097 = vmul.f32 %v2657, %v168
  %v3098 = vmul.f32 %v2661, %v168
  %v3099 = vmul.f32 %v2665, %v168
  %v3100 = vmul.f32 %v2669, %v168
  %v3101 = vmul.f32 %v2673, %v168
  %v3102 = vmul.f32 %v2677, %v168
  %v3103 = vadd.f32 %v3091, %v3097
  %v3104 = vadd.f32 %v3092, %v3098
  %v3105 = vadd.f32 %v3093, %v3099
  %v3106 = vadd.f32 %v3094, %v3100
  %v3107 = vadd.f32 %v3095, %v3101
  %v3108 = vadd.f32 %v3096, %v3102
  %v3109 = vmul.f32 %v2717, %v193
  %v3110 = vmul.f32 %v2721, %v193
  %v3111 = vmul.f32 %v2725, %v193
  %v3112 = vmul.f32 %v2729, %v193
  %v3113 = vmul.f32 %v2733, %v193
  %v3114 = vmul.f32 %v2737, %v193
  %v3115 = vadd.f32 %v3103, %v3109
  %v3116 = vadd.f32 %v3104, %v3110
  %v3117 = vadd.f32 %v3105, %v3111
  %v3118 = vadd.f32 %v3106, %v3112
  %v3119 = vadd.f32 %v3107, %v3113
  %v3120 = vadd.f32 %v3108, %v3114
  %v3121 = vmul.f32 %v3115, 2.0
  %v3122 = vmul.f32 %v3116, 2.0
  %v3123 = vmul.f32 %v3117, 2.0
  %v3124 = vmul.f32 %v3118, 2.0
  %v3125 = vmul.f32 %v3119, 2.0
  %v3126 = vmul.f32 %v3120, 2.0
  %v3127 = vsub.f32 %v3085, %v3121
  %v3128 = vsub.f32 %v3086, %v3122
  %v3129 = vsub.f32 %v3087, %v3123
  %v3130 = vsub.f32 %v3088, %v3124
  %v3131 = vsub.f32 %v3089, %v3125
  %v3132 = vsub.f32 %v3090, %v3126
  %v3133 = vmax.f32 %v3127, 0.0
  %v3134 = vmax.f32 %v3128, 0.0
  %v3135 = vmax.f32 %v3129, 0.0
  %v3136 = vmax.f32 %v3130, 0.0
  %v3137 = vmax.f32 %v3131, 0.0
  %v3138 = vmax.f32 %v3132, 0.0
  %v3139 = vadd.f32 %v3133, 1e-06
  %v3140 = vadd.f32 %v3134, 1e-06
  %v3141 = vadd.f32 %v3135, 1e-06
  %v3142 = vadd.f32 %v3136, 1e-06
  %v3143 = vadd.f32 %v3137, 1e-06
  %v3144 = vadd.f32 %v3138, 1e-06
  %v3145 = vrcp.pop %v3139
  %v3146 = vrcp.pop %v3140
  %v3147 = vrcp.pop %v3141
  %v3148 = vrcp.pop %v3142
  %v3149 = vrcp.pop %v3143
  %v3150 = vrcp.pop %v3144
  %v3151 = vadd.f32 %v3145, %v3146
  %v3152 = vadd.f32 %v3151, %v3147
  %v3153 = vadd.f32 %v3152, %v3148
  %v3154 = vadd.f32 %v3153, %v3149
  %v3155 = vsel %vm598, %v3150, 0.0
  %v3156 = vadd.f32 %v3154, %v3155
  %v3157 = vrot.slane %v3156, 4
  %v3158 = vadd.f32 %v3156, %v3157
  %v3159 = vrot.slane %v3158, 2
  %v3160 = vadd.f32 %v3158, %v3159
  %v3161 = vrot.slane %v3160, 1
  %v3162 = vadd.f32 %v3160, %v3161
  %v3163 = vrcp.pop %v3162
  %v3164 = vmul.f32 %v3162, %v3163
  %v3165 = vsub.f32 1.0, %v3164
  %v3166 = vmul.f32 %v3163, %v3165
  %v3167 = vadd.f32 %v3163, %v3166
  %vm3168 = vweird.f32 %v3162
  %vm3169 = vweird.f32 %v3163
  %vm3170 = vmor %vm3168, %vm3169
  %v3171 = vsel %vm3170, %v3163, %v3167
  %v3172 = vand.u32 2147483647, %v3162
  %vm3173 = vcmp.eq.f32.partialorder %v3172, 8.507059e+37
  %v3174 = vand.u32 %v3162, 2147483648
  %v3175 = vor.u32 1.1754944e-38, %v3174
  %v3176 = vsel %vm3173, %v3175, %v3171
  %v3177 = vmul.f32 %v3145, %v3176
  %v3178 = vmul.f32 %v3146, %v3176
  %v3179 = vmul.f32 %v3147, %v3176
  %v3180 = vmul.f32 %v3148, %v3176
  %v3181 = vmul.f32 %v3149, %v3176
  %v3182 = vmul.f32 %v3150, %v3176
  %3183 = vst [vmem:[%s5] sm:$0xff] %v3177
  %3184 = vst [vmem:[%s5 + $0x8] sm:$0xff] %v3178
  %3185 = vst [vmem:[%s5 + $0x10] sm:$0xff] %v3179
  %3186 = vst [vmem:[%s5 + $0x18] sm:$0xff] %v3180
  %3187 = vst [vmem:[%s5 + $0x20] sm:$0xff] %v3181
  %3188 = vst [vmem:[%s5 + $0x28] sm:$0x3] %v3182
  %3189 = vxpose.xlu0.b32.start [1/16] %v3062, 128
  %3190 = vxpose.xlu0.b32.cont [2/16] %v3064, 128
  %3191 = vxpose.xlu0.b32.cont [3/16] %v3066, 128
  %3192 = vxpose.xlu0.b32.cont [4/16] %v3068, 128
  %3193 = vxpose.xlu0.b32.cont [5/16] %v3070, 128
  %3194 = vxpose.xlu0.b32.cont [6/16] %v3072, 128
  %3195 = vxpose.xlu0.b32.cont [7/16] 0.0, 128
  %3196 = vxpose.xlu0.b32.cont [8/16] 0.0, 128
  %3197 = vxpose.xlu0.b32.cont [9/16] 0.0, 128
  %3198 = vxpose.xlu0.b32.cont [10/16] 0.0, 128
  %3199 = vxpose.xlu0.b32.cont [11/16] 0.0, 128
  %3200 = vxpose.xlu0.b32.cont [12/16] 0.0, 128
  %3201 = vxpose.xlu0.b32.cont [13/16] 0.0, 128
  %3202 = vxpose.xlu0.b32.cont [14/16] 0.0, 128
  %3203 = vxpose.xlu0.b32.cont [15/16] 0.0, 128
  %3204 = vxpose.xlu0.b32.end [16/16] 0.0, 128
  %v3205 = vpop.trf.xlu0
  %v3206 = vpop.trf.xlu0
  %v3207 = vpop.trf.xlu0
  %v3208 = vpop.trf.xlu0
  %v3209 = vpop.trf.xlu0
  %v3210 = vpop.trf.xlu0
  %v3211 = vpop.trf.xlu0
  %v3212 = vpop.trf.xlu0
  %v3213 = vpop.trf.xlu0
  %v3214 = vpop.trf.xlu0
  %v3215 = vpop.trf.xlu0
  %v3216 = vpop.trf.xlu0
  %v3217 = vpop.trf.xlu0
  %v3218 = vpop.trf.xlu0
  %v3219 = vpop.trf.xlu0
  %v3220 = vpop.trf.xlu0
  %v3222 = vsel %vm1024, %v3205, 0
  %v3225 = vsel %vm598, %v3182, 0
  %3227 = vmatpush.msra.mxu0 0.0
  %3228 = vmatpush.msra.mxu0 0.0
  %3229 = vmatpush.msra.mxu0 0.0
  %3230 = vmatpush.msra.mxu0 0.0
  %3231 = vmatpush.msra.mxu0 0.0
  %3232 = vmatpush.msra.mxu0 0.0
  %3233 = vmatpush.msra.mxu0 0.0
  %3234 = vmatpush.msra.mxu0 0.0
  %3235 = vmatpush.msra.mxu0 0.0
  %3236 = vmatpush.msra.mxu0 0.0
  %3237 = vmatpush.msra.mxu0 %v3225
  %3238 = vmatpush.msra.mxu0 %v3181
  %3239 = vmatpush.msra.mxu0 %v3180
  %3240 = vmatpush.msra.mxu0 %v3179
  %3241 = vmatpush.msra.mxu0 %v3178
  %3242 = vmatpush.msra.mxu0 %v3177
  %3243 = vmatmul.f32.gmra.mxu0 %v3222
  %v3244 = vpop.f32.mrf.mxu0
  %v3245 = vadd.f32 0.0, %v3244
  %3246 = vdwg.mxu0
  %3247 = vst [vmem:[%s4] sm:$0x7] %v3245
  %v3248 = vmul.f32 %v1365, %v27
  %v3249 = vmul.f32 %v1366, %v28
  %v3250 = vmul.f32 %v1367, %v29
  %v3251 = vmul.f32 %v1368, %v30
  %v3252 = vmul.f32 %v1369, %v31
  %v3253 = vmul.f32 %v1370, %v32
  %v3254 = vmul.f32 %v1365, %v1365
  %v3255 = vmul.f32 %v1366, %v1366
  %v3256 = vmul.f32 %v1367, %v1367
  %v3257 = vmul.f32 %v1368, %v1368
  %v3258 = vmul.f32 %v1369, %v1369
  %v3259 = vmul.f32 %v1370, %v1370
  %v3260 = vmul.f32 %v3254, %v99
  %v3261 = vmul.f32 %v3255, %v100
  %v3262 = vmul.f32 %v3256, %v101
  %v3263 = vmul.f32 %v3257, %v102
  %v3264 = vmul.f32 %v3258, %v103
  %v3265 = vmul.f32 %v3259, %v104
  %3272 = vrot.lane.b32.xlu0 %v3248, 95
  %v3273 = vpop.permute.xlu0 %3272
  %3274 = vrot.lane.b32.xlu0 %v3249, 95
  %v3275 = vpop.permute.xlu0 %3274
  %3276 = vrot.lane.b32.xlu0 %v3250, 95
  %v3277 = vpop.permute.xlu0 %3276
  %3278 = vrot.lane.b32.xlu0 %v3251, 95
  %v3279 = vpop.permute.xlu0 %3278
  %3280 = vrot.lane.b32.xlu0 %v3252, 95
  %v3281 = vpop.permute.xlu0 %3280
  %3282 = vrot.lane.b32.xlu0 %v3253, 95
  %v3283 = vpop.permute.xlu0 %3282
  %3290 = vst.msk [vmem:[%s623 + $0x6] sm:$0xff] %vm393, %v3273
  %3291 = vst.msk [vmem:[%s623 + $0xe] sm:$0xff] %vm393, %v3275
  %3292 = vst.msk [vmem:[%s623 + $0x16] sm:$0xff] %vm393, %v3277
  %3293 = vst.msk [vmem:[%s623 + $0x1e] sm:$0xff] %vm393, %v3279
  %3294 = vst.msk [vmem:[%s623 + $0x26] sm:$0xff] %vm393, %v3281
  %3295 = vst.msk [vmem:[%s623 + $0x2e] sm:$0x3] %vm2568, %v3283
  %3302 = vrot.lane.b32.xlu0 %v1156, 120
  %v3303 = vpop.permute.xlu0 %3302
  %3304 = vrot.lane.b32.xlu0 %v1159, 120
  %v3305 = vpop.permute.xlu0 %3304
  %3306 = vrot.lane.b32.xlu0 %v1162, 120
  %v3307 = vpop.permute.xlu0 %3306
  %3308 = vrot.lane.b32.xlu0 %v1165, 120
  %v3309 = vpop.permute.xlu0 %3308
  %3310 = vrot.lane.b32.xlu0 %v1168, 120
  %v3311 = vpop.permute.xlu0 %3310
  %3312 = vrot.lane.b32.xlu0 %v1171, 120
  %v3313 = vpop.permute.xlu0 %3312
  %3320 = vst.msk [vmem:[%s623 + $0x84] sm:$0xff] %vm841, %v3303
  %3321 = vst.msk [vmem:[%s623 + $0x8c] sm:$0xff] %vm841, %v3305
  %3322 = vst.msk [vmem:[%s623 + $0x94] sm:$0xff] %vm841, %v3307
  %3323 = vst.msk [vmem:[%s623 + $0x9c] sm:$0xff] %vm841, %v3309
  %3324 = vst.msk [vmem:[%s623 + $0xa4] sm:$0xff] %vm841, %v3311
  %3325 = vst.msk [vmem:[%s623 + $0xac] sm:$0x3] %vm2575, %v3313
  %3327 = vset.pattern.permute.xlu0 33
  %3328 = vperm.xlu0 %3327, %v3260
  %v3329 = vpop.permute.xlu0 %3328
  %3332 = vset.pattern.permute.xlu0 33
  %3333 = vperm.xlu0 %3332, %v3261
  %v3334 = vpop.permute.xlu0 %3333
  %3337 = vset.pattern.permute.xlu0 33
  %3338 = vperm.xlu0 %3337, %v3262
  %v3339 = vpop.permute.xlu0 %3338
  %3342 = vset.pattern.permute.xlu0 33
  %3343 = vperm.xlu0 %3342, %v3263
  %v3344 = vpop.permute.xlu0 %3343
  %3347 = vset.pattern.permute.xlu0 33
  %3348 = vperm.xlu0 %3347, %v3264
  %v3349 = vpop.permute.xlu0 %3348
  %3352 = vset.pattern.permute.xlu0 33
  %3353 = vperm.xlu0 %3352, %v3265
  %v3354 = vpop.permute.xlu0 %3353
  %v3356 = vperm.slane %v2586, 1
  %v3357 = vadd.f32 %v3329, %v3356
  %v3358 = vadd.f32 %v3334, %v3356
  %v3359 = vadd.f32 %v3339, %v3356
  %v3360 = vadd.f32 %v3344, %v3356
  %v3361 = vadd.f32 %v3349, %v3356
  %v3362 = vadd.f32 %v3354, %v3356
  %3363 = vset.pattern.permute.xlu0 33
  %3364 = vperm.xlu0 %3363, %v3248
  %v3365 = vpop.permute.xlu0 %3364
  %3367 = vset.pattern.permute.xlu0 33
  %3368 = vperm.xlu0 %3367, %v3249
  %v3369 = vpop.permute.xlu0 %3368
  %3371 = vset.pattern.permute.xlu0 33
  %3372 = vperm.xlu0 %3371, %v3250
  %v3373 = vpop.permute.xlu0 %3372
  %3375 = vset.pattern.permute.xlu0 33
  %3376 = vperm.xlu0 %3375, %v3251
  %v3377 = vpop.permute.xlu0 %3376
  %3379 = vset.pattern.permute.xlu0 33
  %3380 = vperm.xlu0 %3379, %v3252
  %v3381 = vpop.permute.xlu0 %3380
  %3383 = vset.pattern.permute.xlu0 33
  %3384 = vperm.xlu0 %3383, %v3253
  %v3385 = vpop.permute.xlu0 %3384
  %v3387 = vperm.slane %v586, 1
  %v3388 = vmul.f32 %v3365, %v3387
  %v3389 = vmul.f32 %v3369, %v3387
  %v3390 = vmul.f32 %v3373, %v3387
  %v3391 = vmul.f32 %v3377, %v3387
  %v3392 = vmul.f32 %v3381, %v3387
  %v3393 = vmul.f32 %v3385, %v3387
  %3394 = vset.pattern.permute.xlu0 34
  %3395 = vperm.xlu0 %3394, %v3248
  %v3396 = vpop.permute.xlu0 %3395
  %3398 = vset.pattern.permute.xlu0 34
  %3399 = vperm.xlu0 %3398, %v3249
  %v3400 = vpop.permute.xlu0 %3399
  %3402 = vset.pattern.permute.xlu0 34
  %3403 = vperm.xlu0 %3402, %v3250
  %v3404 = vpop.permute.xlu0 %3403
  %3406 = vset.pattern.permute.xlu0 34
  %3407 = vperm.xlu0 %3406, %v3251
  %v3408 = vpop.permute.xlu0 %3407
  %3410 = vset.pattern.permute.xlu0 34
  %3411 = vperm.xlu0 %3410, %v3252
  %v3412 = vpop.permute.xlu0 %3411
  %3414 = vset.pattern.permute.xlu0 34
  %3415 = vperm.xlu0 %3414, %v3253
  %v3416 = vpop.permute.xlu0 %3415
  %v3418 = vmul.f32 %v3396, %v3387
  %v3419 = vmul.f32 %v3400, %v3387
  %v3420 = vmul.f32 %v3404, %v3387
  %v3421 = vmul.f32 %v3408, %v3387
  %v3422 = vmul.f32 %v3412, %v3387
  %v3423 = vmul.f32 %v3416, %v3387
  %3430 = vrot.lane.b32.xlu0 %v3418, 120
  %v3431 = vpop.permute.xlu0 %3430
  %3432 = vrot.lane.b32.xlu0 %v3419, 120
  %v3433 = vpop.permute.xlu0 %3432
  %3434 = vrot.lane.b32.xlu0 %v3420, 120
  %v3435 = vpop.permute.xlu0 %3434
  %3436 = vrot.lane.b32.xlu0 %v3421, 120
  %v3437 = vpop.permute.xlu0 %3436
  %3438 = vrot.lane.b32.xlu0 %v3422, 120
  %v3439 = vpop.permute.xlu0 %3438
  %3440 = vrot.lane.b32.xlu0 %v3423, 120
  %v3441 = vpop.permute.xlu0 %3440
  %v3448 = vadd.f32 %v3388, %v3431
  %v3449 = vadd.f32 %v3389, %v3433
  %v3450 = vadd.f32 %v3390, %v3435
  %v3451 = vadd.f32 %v3391, %v3437
  %v3452 = vadd.f32 %v3392, %v3439
  %v3453 = vadd.f32 %v3393, %v3441
  %3454 = vset.pattern.permute.xlu0 35
  %3455 = vperm.xlu0 %3454, %v3248
  %v3456 = vpop.permute.xlu0 %3455
  %3458 = vset.pattern.permute.xlu0 35
  %3459 = vperm.xlu0 %3458, %v3249
  %v3460 = vpop.permute.xlu0 %3459
  %3462 = vset.pattern.permute.xlu0 35
  %3463 = vperm.xlu0 %3462, %v3250
  %v3464 = vpop.permute.xlu0 %3463
  %3466 = vset.pattern.permute.xlu0 35
  %3467 = vperm.xlu0 %3466, %v3251
  %v3468 = vpop.permute.xlu0 %3467
  %3470 = vset.pattern.permute.xlu0 35
  %3471 = vperm.xlu0 %3470, %v3252
  %v3472 = vpop.permute.xlu0 %3471
  %3474 = vset.pattern.permute.xlu0 35
  %3475 = vperm.xlu0 %3474, %v3253
  %v3476 = vpop.permute.xlu0 %3475
  %v3478 = vmul.f32 %v3456, %v3387
  %v3479 = vmul.f32 %v3460, %v3387
  %v3480 = vmul.f32 %v3464, %v3387
  %v3481 = vmul.f32 %v3468, %v3387
  %v3482 = vmul.f32 %v3472, %v3387
  %v3483 = vmul.f32 %v3476, %v3387
  %3490 = vrot.lane.b32.xlu0 %v3478, 112
  %v3491 = vpop.permute.xlu0 %3490
  %3492 = vrot.lane.b32.xlu0 %v3479, 112
  %v3493 = vpop.permute.xlu0 %3492
  %3494 = vrot.lane.b32.xlu0 %v3480, 112
  %v3495 = vpop.permute.xlu0 %3494
  %3496 = vrot.lane.b32.xlu0 %v3481, 112
  %v3497 = vpop.permute.xlu0 %3496
  %3498 = vrot.lane.b32.xlu0 %v3482, 112
  %v3499 = vpop.permute.xlu0 %3498
  %3500 = vrot.lane.b32.xlu0 %v3483, 112
  %v3501 = vpop.permute.xlu0 %3500
  %v3508 = vadd.f32 %v3448, %v3491
  %v3509 = vadd.f32 %v3449, %v3493
  %v3510 = vadd.f32 %v3450, %v3495
  %v3511 = vadd.f32 %v3451, %v3497
  %v3512 = vadd.f32 %v3452, %v3499
  %v3513 = vadd.f32 %v3453, %v3501
  %v3514 = vmul.f32 %v3508, 2.0
  %v3515 = vmul.f32 %v3509, 2.0
  %v3516 = vmul.f32 %v3510, 2.0
  %v3517 = vmul.f32 %v3511, 2.0
  %v3518 = vmul.f32 %v3512, 2.0
  %v3519 = vmul.f32 %v3513, 2.0
  %v3520 = vsub.f32 %v3357, %v3514
  %v3521 = vsub.f32 %v3358, %v3515
  %v3522 = vsub.f32 %v3359, %v3516
  %v3523 = vsub.f32 %v3360, %v3517
  %v3524 = vsub.f32 %v3361, %v3518
  %v3525 = vsub.f32 %v3362, %v3519
  %v3526 = vsel %vm841, %v3520, inf
  %v3527 = vsel %vm841, %v3521, inf
  %v3528 = vsel %vm841, %v3522, inf
  %v3529 = vsel %vm841, %v3523, inf
  %v3530 = vsel %vm841, %v3524, inf
  %v3531 = vmin.f32 %v3526, %v3530
  %v3532 = vsel %vm2575, %v3525, inf
  %v3533 = vmin.f32 %v3527, %v3532
  %v3534 = vmin.f32 %v3531, %v3533
  %v3535 = vmin.f32 %v3528, %v3529
  %v3536 = vmin.f32 %v3534, %v3535
  %v3537 = vrot.slane %v3536, 4
  %v3538 = vmin.f32 %v3536, %v3537
  %v3539 = vrot.slane %v3538, 2
  %v3540 = vmin.f32 %v3538, %v3539
  %v3541 = vrot.slane %v3540, 1
  %v3542 = vmin.f32 %v3540, %v3541
  %vm3543 = vcmp.le.f32.partialorder %v3520, %v3542
  %vm3544 = vcmp.le.f32.partialorder %v3521, %v3542
  %vm3545 = vcmp.le.f32.partialorder %v3522, %v3542
  %vm3546 = vcmp.le.f32.partialorder %v3523, %v3542
  %vm3547 = vcmp.le.f32.partialorder %v3524, %v3542
  %vm3548 = vcmp.le.f32.partialorder %v3525, %v3542
  %v3549 = vsel %vm3543, inf, %v3520
  %v3550 = vsel %vm3544, inf, %v3521
  %v3551 = vsel %vm3545, inf, %v3522
  %v3552 = vsel %vm3546, inf, %v3523
  %v3553 = vsel %vm3547, inf, %v3524
  %v3554 = vsel %vm3548, inf, %v3525
  %v3555 = vsel %vm841, %v3549, inf
  %v3556 = vsel %vm841, %v3550, inf
  %v3557 = vsel %vm841, %v3551, inf
  %v3558 = vsel %vm841, %v3552, inf
  %v3559 = vsel %vm841, %v3553, inf
  %v3560 = vmin.f32 %v3555, %v3559
  %v3561 = vsel %vm2575, %v3554, inf
  %v3562 = vmin.f32 %v3556, %v3561
  %v3563 = vmin.f32 %v3560, %v3562
  %v3564 = vmin.f32 %v3557, %v3558
  %v3565 = vmin.f32 %v3563, %v3564
  %v3566 = vrot.slane %v3565, 4
  %v3567 = vmin.f32 %v3565, %v3566
  %v3568 = vrot.slane %v3567, 2
  %v3569 = vmin.f32 %v3567, %v3568
  %v3570 = vrot.slane %v3569, 1
  %v3571 = vmin.f32 %v3569, %v3570
  %vm3572 = vcmp.le.f32.partialorder %v3549, %v3571
  %vm3573 = vcmp.le.f32.partialorder %v3550, %v3571
  %vm3574 = vcmp.le.f32.partialorder %v3551, %v3571
  %vm3575 = vcmp.le.f32.partialorder %v3552, %v3571
  %vm3576 = vcmp.le.f32.partialorder %v3553, %v3571
  %vm3577 = vcmp.le.f32.partialorder %v3554, %v3571
  %v3578 = vsel %vm3572, inf, %v3549
  %v3579 = vsel %vm3573, inf, %v3550
  %v3580 = vsel %vm3574, inf, %v3551
  %v3581 = vsel %vm3575, inf, %v3552
  %v3582 = vsel %vm3576, inf, %v3553
  %v3583 = vsel %vm3577, inf, %v3554
  %v3584 = vsel %vm841, %v3578, inf
  %v3585 = vsel %vm841, %v3579, inf
  %v3586 = vsel %vm841, %v3580, inf
  %v3587 = vsel %vm841, %v3581, inf
  %v3588 = vsel %vm841, %v3582, inf
  %v3589 = vmin.f32 %v3584, %v3588
  %v3590 = vsel %vm2575, %v3583, inf
  %v3591 = vmin.f32 %v3585, %v3590
  %v3592 = vmin.f32 %v3589, %v3591
  %v3593 = vmin.f32 %v3586, %v3587
  %v3594 = vmin.f32 %v3592, %v3593
  %v3595 = vrot.slane %v3594, 4
  %v3596 = vmin.f32 %v3594, %v3595
  %v3597 = vrot.slane %v3596, 2
  %v3598 = vmin.f32 %v3596, %v3597
  %v3599 = vrot.slane %v3598, 1
  %v3600 = vmin.f32 %v3598, %v3599
  %vm3601 = vcmp.le.f32.partialorder %v3578, %v3600
  %vm3602 = vcmp.le.f32.partialorder %v3579, %v3600
  %vm3603 = vcmp.le.f32.partialorder %v3580, %v3600
  %vm3604 = vcmp.le.f32.partialorder %v3581, %v3600
  %vm3605 = vcmp.le.f32.partialorder %v3582, %v3600
  %vm3606 = vcmp.le.f32.partialorder %v3583, %v3600
  %v3607 = vsel %vm3601, inf, %v3578
  %v3608 = vsel %vm3602, inf, %v3579
  %v3609 = vsel %vm3603, inf, %v3580
  %v3610 = vsel %vm3604, inf, %v3581
  %v3611 = vsel %vm3605, inf, %v3582
  %v3612 = vsel %vm3606, inf, %v3583
  %v3613 = vsel %vm841, %v3607, inf
  %v3614 = vsel %vm841, %v3608, inf
  %v3615 = vsel %vm841, %v3609, inf
  %v3616 = vsel %vm841, %v3610, inf
  %v3617 = vsel %vm841, %v3611, inf
  %v3618 = vmin.f32 %v3613, %v3617
  %v3619 = vsel %vm2575, %v3612, inf
  %v3620 = vmin.f32 %v3614, %v3619
  %v3621 = vmin.f32 %v3618, %v3620
  %v3622 = vmin.f32 %v3615, %v3616
  %v3623 = vmin.f32 %v3621, %v3622
  %v3624 = vrot.slane %v3623, 4
  %v3625 = vmin.f32 %v3623, %v3624
  %v3626 = vrot.slane %v3625, 2
  %v3627 = vmin.f32 %v3625, %v3626
  %v3628 = vrot.slane %v3627, 1
  %v3629 = vmin.f32 %v3627, %v3628
  %vm3630 = vcmp.le.f32.partialorder %v3607, %v3629
  %vm3631 = vcmp.le.f32.partialorder %v3608, %v3629
  %vm3632 = vcmp.le.f32.partialorder %v3609, %v3629
  %vm3633 = vcmp.le.f32.partialorder %v3610, %v3629
  %vm3634 = vcmp.le.f32.partialorder %v3611, %v3629
  %vm3635 = vcmp.le.f32.partialorder %v3612, %v3629
  %v3636 = vsel %vm3630, inf, %v3607
  %v3637 = vsel %vm3631, inf, %v3608
  %v3638 = vsel %vm3632, inf, %v3609
  %v3639 = vsel %vm3633, inf, %v3610
  %v3640 = vsel %vm3634, inf, %v3611
  %v3641 = vsel %vm3635, inf, %v3612
  %v3642 = vsel %vm841, %v3636, inf
  %v3643 = vsel %vm841, %v3637, inf
  %v3644 = vsel %vm841, %v3638, inf
  %v3645 = vsel %vm841, %v3639, inf
  %v3646 = vsel %vm841, %v3640, inf
  %v3647 = vmin.f32 %v3642, %v3646
  %v3648 = vsel %vm2575, %v3641, inf
  %v3649 = vmin.f32 %v3643, %v3648
  %v3650 = vmin.f32 %v3647, %v3649
  %v3651 = vmin.f32 %v3644, %v3645
  %v3652 = vmin.f32 %v3650, %v3651
  %v3653 = vrot.slane %v3652, 4
  %v3654 = vmin.f32 %v3652, %v3653
  %v3655 = vrot.slane %v3654, 2
  %v3656 = vmin.f32 %v3654, %v3655
  %v3657 = vrot.slane %v3656, 1
  %v3658 = vmin.f32 %v3656, %v3657
  %vm3659 = vcmp.le.f32.partialorder %v3520, %v3658
  %vm3660 = vcmp.le.f32.partialorder %v3521, %v3658
  %vm3661 = vcmp.le.f32.partialorder %v3522, %v3658
  %vm3662 = vcmp.le.f32.partialorder %v3523, %v3658
  %vm3663 = vcmp.le.f32.partialorder %v3524, %v3658
  %vm3664 = vcmp.le.f32.partialorder %v3525, %v3658
  %v3665 = vsel %vm3659, 1, 0
  %v3666 = vsel %vm3660, 1, 0
  %v3667 = vsel %vm3661, 1, 0
  %v3668 = vsel %vm3662, 1, 0
  %v3669 = vsel %vm3663, 1, 0
  %v3670 = vsel %vm3664, 1, 0
  %v3671 = vcvt.s32.f32 %v3665
  %v3672 = vcvt.s32.f32 %v3666
  %v3673 = vcvt.s32.f32 %v3667
  %v3674 = vcvt.s32.f32 %v3668
  %v3675 = vcvt.s32.f32 %v3669
  %v3676 = vcvt.s32.f32 %v3670
  %3683 = vrot.lane.b32.xlu0 %v3671, 8
  %v3684 = vpop.permute.xlu0 %3683
  %3685 = vrot.lane.b32.xlu0 %v3672, 8
  %v3686 = vpop.permute.xlu0 %3685
  %3687 = vrot.lane.b32.xlu0 %v3673, 8
  %v3688 = vpop.permute.xlu0 %3687
  %3689 = vrot.lane.b32.xlu0 %v3674, 8
  %v3690 = vpop.permute.xlu0 %3689
  %3691 = vrot.lane.b32.xlu0 %v3675, 8
  %v3692 = vpop.permute.xlu0 %3691
  %3693 = vrot.lane.b32.xlu0 %v3676, 8
  %v3694 = vpop.permute.xlu0 %3693
  %v3701 = vmul.f32 %v1215, %v3684
  %v3702 = vmul.f32 %v1216, %v3686
  %v3703 = vmul.f32 %v1217, %v3688
  %v3704 = vmul.f32 %v1218, %v3690
  %v3705 = vmul.f32 %v1219, %v3692
  %v3706 = vmul.f32 %v1220, %v3694
  %3713 = vrot.lane.b32.xlu0 %v3701, 120
  %v3714 = vpop.permute.xlu0 %3713
  %3715 = vrot.lane.b32.xlu0 %v3702, 120
  %v3716 = vpop.permute.xlu0 %3715
  %3717 = vrot.lane.b32.xlu0 %v3703, 120
  %v3718 = vpop.permute.xlu0 %3717
  %3719 = vrot.lane.b32.xlu0 %v3704, 120
  %v3720 = vpop.permute.xlu0 %3719
  %3721 = vrot.lane.b32.xlu0 %v3705, 120
  %v3722 = vpop.permute.xlu0 %3721
  %3723 = vrot.lane.b32.xlu0 %v3706, 120
  %v3724 = vpop.permute.xlu0 %3723
  %3731 = vst.msk [vmem:[%s623 + $0x5a] sm:$0xff] %vm841, %v3714
  %3732 = vst.msk [vmem:[%s623 + $0x62] sm:$0xff] %vm841, %v3716
  %3733 = vst.msk [vmem:[%s623 + $0x6a] sm:$0xff] %vm841, %v3718
  %3734 = vst.msk [vmem:[%s623 + $0x72] sm:$0xff] %vm841, %v3720
  %3735 = vst.msk [vmem:[%s623 + $0x7a] sm:$0xff] %vm841, %v3722
  %3736 = vst.msk [vmem:[%s623 + $0x82] sm:$0x3] %vm2575, %v3724
  %3737 = vrot.lane.b32.xlu0 %v2953, 125
  %v3738 = vpop.permute.xlu0 %3737
  %3740 = vrot.lane.b32.xlu0 %v2957, 126
  %v3741 = vpop.permute.xlu0 %3740
  %3744 = vrot.lane.b32.xlu0 %v2961, 127
  %v3745 = vpop.permute.xlu0 %3744
  %v3747 = vsel %vm383, %v3738, %v3741
  %v3748 = vsel %vm388, %v3747, %v3745
  %v3749 = vsel %vm841, %v3714, 0
  %v3751 = vsel %vm841, %v3716, 0
  %v3753 = vsel %vm841, %v3718, 0
  %v3755 = vsel %vm841, %v3720, 0
  %v3757 = vsel %vm841, %v3722, 0
  %v3759 = vsel %vm841, %v3724, 0
  %3761 = vmatpush.msra.mxu0 0.0
  %3762 = vmatpush.msra.mxu0 0.0
  %3763 = vmatpush.msra.mxu0 0.0
  %3764 = vmatpush.msra.mxu0 0.0
  %3765 = vmatpush.msra.mxu0 0.0
  %3766 = vmatpush.msra.mxu0 0.0
  %3767 = vmatpush.msra.mxu0 0.0
  %3768 = vmatpush.msra.mxu0 0.0
  %3769 = vmatpush.msra.mxu0 0.0
  %3770 = vmatpush.msra.mxu0 0.0
  %3771 = vmatpush.msra.mxu0 0.0
  %3772 = vmatpush.msra.mxu0 0.0
  %3773 = vmatpush.msra.mxu0 0.0
  %3774 = vmatpush.msra.mxu0 0.0
  %3775 = vmatpush.msra.mxu0 0.0
  %3776 = vmatpush.msra.mxu0 %v3748
  %3777 = vmatmul.f32.gmra.mxu0 %v3749
  %v3778 = vpop.f32.mrf.mxu0
  %v3779 = vadd.f32 0.0, %v3778
  %3780 = vmatmul.f32.gmra.mxu0 %v3751
  %v3781 = vpop.f32.mrf.mxu0
  %v3782 = vadd.f32 0.0, %v3781
  %3783 = vmatmul.f32.gmra.mxu0 %v3753
  %v3784 = vpop.f32.mrf.mxu0
  %v3785 = vadd.f32 0.0, %v3784
  %3786 = vmatmul.f32.gmra.mxu0 %v3755
  %v3787 = vpop.f32.mrf.mxu0
  %v3788 = vadd.f32 0.0, %v3787
  %3789 = vmatmul.f32.gmra.mxu0 %v3757
  %v3790 = vpop.f32.mrf.mxu0
  %v3791 = vadd.f32 0.0, %v3790
  %3792 = vmatmul.f32.gmra.mxu0 %v3759
  %v3793 = vpop.f32.mrf.mxu0
  %v3794 = vadd.f32 0.0, %v3793
  %3795 = vdwg.mxu0
  %3802 = vrot.lane.b32.xlu0 %v3779, 33
  %v3803 = vpop.permute.xlu0 %3802
  %3804 = vrot.lane.b32.xlu0 %v3782, 33
  %v3805 = vpop.permute.xlu0 %3804
  %3806 = vrot.lane.b32.xlu0 %v3785, 33
  %v3807 = vpop.permute.xlu0 %3806
  %3808 = vrot.lane.b32.xlu0 %v3788, 33
  %v3809 = vpop.permute.xlu0 %3808
  %3810 = vrot.lane.b32.xlu0 %v3791, 33
  %v3811 = vpop.permute.xlu0 %3810
  %3812 = vrot.lane.b32.xlu0 %v3794, 33
  %v3813 = vpop.permute.xlu0 %3812
  %v3820 = vadd.f32 %v3248, %v3803
  %v3821 = vadd.f32 %v3249, %v3805
  %v3822 = vadd.f32 %v3250, %v3807
  %v3823 = vadd.f32 %v3251, %v3809
  %v3824 = vadd.f32 %v3252, %v3811
  %v3825 = vadd.f32 %v3253, %v3813
  %3832 = vrot.lane.b32.xlu0 %v3820, 95
  %v3833 = vpop.permute.xlu0 %3832
  %3834 = vrot.lane.b32.xlu0 %v3821, 95
  %v3835 = vpop.permute.xlu0 %3834
  %3836 = vrot.lane.b32.xlu0 %v3822, 95
  %v3837 = vpop.permute.xlu0 %3836
  %3838 = vrot.lane.b32.xlu0 %v3823, 95
  %v3839 = vpop.permute.xlu0 %3838
  %3840 = vrot.lane.b32.xlu0 %v3824, 95
  %v3841 = vpop.permute.xlu0 %3840
  %3842 = vrot.lane.b32.xlu0 %v3825, 95
  %v3843 = vpop.permute.xlu0 %3842
  %3850 = vst.msk [vmem:[%s623 + $0x30] sm:$0xff] %vm393, %v3833
  %3851 = vst.msk [vmem:[%s623 + $0x38] sm:$0xff] %vm393, %v3835
  %3852 = vst.msk [vmem:[%s623 + $0x40] sm:$0xff] %vm393, %v3837
  %3853 = vst.msk [vmem:[%s623 + $0x48] sm:$0xff] %vm393, %v3839
  %3854 = vst.msk [vmem:[%s623 + $0x50] sm:$0xff] %vm393, %v3841
  %3855 = vst.msk [vmem:[%s623 + $0x58] sm:$0x3] %vm2568, %v3843
  %v3856 = vadd.f32 %v3329, %v795
  %v3857 = vadd.f32 %v3334, %v795
  %v3858 = vadd.f32 %v3339, %v795
  %v3859 = vadd.f32 %v3344, %v795
  %v3860 = vadd.f32 %v3349, %v795
  %v3861 = vadd.f32 %v3354, %v795
  %v3862 = vmul.f32 %v3365, %v242
  %v3863 = vmul.f32 %v3369, %v242
  %v3864 = vmul.f32 %v3373, %v242
  %v3865 = vmul.f32 %v3377, %v242
  %v3866 = vmul.f32 %v3381, %v242
  %v3867 = vmul.f32 %v3385, %v242
  %v3868 = vmul.f32 %v3396, %v247
  %v3869 = vmul.f32 %v3400, %v247
  %v3870 = vmul.f32 %v3404, %v247
  %v3871 = vmul.f32 %v3408, %v247
  %v3872 = vmul.f32 %v3412, %v247
  %v3873 = vmul.f32 %v3416, %v247
  %v3874 = vadd.f32 %v3862, %v3868
  %v3875 = vadd.f32 %v3863, %v3869
  %v3876 = vadd.f32 %v3864, %v3870
  %v3877 = vadd.f32 %v3865, %v3871
  %v3878 = vadd.f32 %v3866, %v3872
  %v3879 = vadd.f32 %v3867, %v3873
  %v3880 = vmul.f32 %v3456, %v256
  %v3881 = vmul.f32 %v3460, %v256
  %v3882 = vmul.f32 %v3464, %v256
  %v3883 = vmul.f32 %v3468, %v256
  %v3884 = vmul.f32 %v3472, %v256
  %v3885 = vmul.f32 %v3476, %v256
  %v3886 = vadd.f32 %v3874, %v3880
  %v3887 = vadd.f32 %v3875, %v3881
  %v3888 = vadd.f32 %v3876, %v3882
  %v3889 = vadd.f32 %v3877, %v3883
  %v3890 = vadd.f32 %v3878, %v3884
  %v3891 = vadd.f32 %v3879, %v3885
  %v3892 = vmul.f32 %v3886, 2.0
  %v3893 = vmul.f32 %v3887, 2.0
  %v3894 = vmul.f32 %v3888, 2.0
  %v3895 = vmul.f32 %v3889, 2.0
  %v3896 = vmul.f32 %v3890, 2.0
  %v3897 = vmul.f32 %v3891, 2.0
  %v3898 = vsub.f32 %v3856, %v3892
  %v3899 = vsub.f32 %v3857, %v3893
  %v3900 = vsub.f32 %v3858, %v3894
  %v3901 = vsub.f32 %v3859, %v3895
  %v3902 = vsub.f32 %v3860, %v3896
  %v3903 = vsub.f32 %v3861, %v3897
  %v3904 = vmax.f32 %v3898, 0.0
  %v3905 = vmax.f32 %v3899, 0.0
  %v3906 = vmax.f32 %v3900, 0.0
  %v3907 = vmax.f32 %v3901, 0.0
  %v3908 = vmax.f32 %v3902, 0.0
  %v3909 = vmax.f32 %v3903, 0.0
  %v3910 = vadd.f32 %v3904, 1e-06
  %v3911 = vadd.f32 %v3905, 1e-06
  %v3912 = vadd.f32 %v3906, 1e-06
  %v3913 = vadd.f32 %v3907, 1e-06
  %v3914 = vadd.f32 %v3908, 1e-06
  %v3915 = vadd.f32 %v3909, 1e-06
  %v3916 = vrcp.pop %v3910
  %v3917 = vrcp.pop %v3911
  %v3918 = vrcp.pop %v3912
  %v3919 = vrcp.pop %v3913
  %v3920 = vrcp.pop %v3914
  %v3921 = vrcp.pop %v3915
  %v3922 = vadd.f32 %v3916, %v3917
  %v3923 = vadd.f32 %v3922, %v3918
  %v3924 = vadd.f32 %v3923, %v3919
  %v3925 = vadd.f32 %v3924, %v3920
  %v3926 = vsel %vm598, %v3921, 0.0
  %v3927 = vadd.f32 %v3925, %v3926
  %v3928 = vrot.slane %v3927, 4
  %v3929 = vadd.f32 %v3927, %v3928
  %v3930 = vrot.slane %v3929, 2
  %v3931 = vadd.f32 %v3929, %v3930
  %v3932 = vrot.slane %v3931, 1
  %v3933 = vadd.f32 %v3931, %v3932
  %v3934 = vrcp.pop %v3933
  %v3935 = vmul.f32 %v3933, %v3934
  %v3936 = vsub.f32 1.0, %v3935
  %v3937 = vmul.f32 %v3934, %v3936
  %v3938 = vadd.f32 %v3934, %v3937
  %vm3939 = vweird.f32 %v3933
  %vm3940 = vweird.f32 %v3934
  %vm3941 = vmor %vm3939, %vm3940
  %v3942 = vsel %vm3941, %v3934, %v3938
  %v3943 = vand.u32 2147483647, %v3933
  %vm3944 = vcmp.eq.f32.partialorder %v3943, 8.507059e+37
  %v3945 = vand.u32 %v3933, 2147483648
  %v3946 = vor.u32 1.1754944e-38, %v3945
  %v3947 = vsel %vm3944, %v3946, %v3942
  %v3948 = vmul.f32 %v3916, %v3947
  %v3949 = vmul.f32 %v3917, %v3947
  %v3950 = vmul.f32 %v3918, %v3947
  %v3951 = vmul.f32 %v3919, %v3947
  %v3952 = vmul.f32 %v3920, %v3947
  %v3953 = vmul.f32 %v3921, %v3947
  %s3954 = scalar_lea.vmem %s5, 48
  %3955 = vst [vmem:[%s3954] sm:$0xff] %v3948
  %3956 = vst [vmem:[%s3954 + $0x8] sm:$0xff] %v3949
  %3957 = vst [vmem:[%s3954 + $0x10] sm:$0xff] %v3950
  %3958 = vst [vmem:[%s3954 + $0x18] sm:$0xff] %v3951
  %3959 = vst [vmem:[%s3954 + $0x20] sm:$0xff] %v3952
  %3960 = vst [vmem:[%s3954 + $0x28] sm:$0x3] %v3953
  %3961 = vxpose.xlu0.b32.start [1/16] %v3833, 128
  %3962 = vxpose.xlu0.b32.cont [2/16] %v3835, 128
  %3963 = vxpose.xlu0.b32.cont [3/16] %v3837, 128
  %3964 = vxpose.xlu0.b32.cont [4/16] %v3839, 128
  %3965 = vxpose.xlu0.b32.cont [5/16] %v3841, 128
  %3966 = vxpose.xlu0.b32.cont [6/16] %v3843, 128
  %3967 = vxpose.xlu0.b32.cont [7/16] 0.0, 128
  %3968 = vxpose.xlu0.b32.cont [8/16] 0.0, 128
  %3969 = vxpose.xlu0.b32.cont [9/16] 0.0, 128
  %3970 = vxpose.xlu0.b32.cont [10/16] 0.0, 128
  %3971 = vxpose.xlu0.b32.cont [11/16] 0.0, 128
  %3972 = vxpose.xlu0.b32.cont [12/16] 0.0, 128
  %3973 = vxpose.xlu0.b32.cont [13/16] 0.0, 128
  %3974 = vxpose.xlu0.b32.cont [14/16] 0.0, 128
  %3975 = vxpose.xlu0.b32.cont [15/16] 0.0, 128
  %3976 = vxpose.xlu0.b32.end [16/16] 0.0, 128
  %v3977 = vpop.trf.xlu0
  %v3978 = vpop.trf.xlu0
  %v3979 = vpop.trf.xlu0
  %v3980 = vpop.trf.xlu0
  %v3981 = vpop.trf.xlu0
  %v3982 = vpop.trf.xlu0
  %v3983 = vpop.trf.xlu0
  %v3984 = vpop.trf.xlu0
  %v3985 = vpop.trf.xlu0
  %v3986 = vpop.trf.xlu0
  %v3987 = vpop.trf.xlu0
  %v3988 = vpop.trf.xlu0
  %v3989 = vpop.trf.xlu0
  %v3990 = vpop.trf.xlu0
  %v3991 = vpop.trf.xlu0
  %v3992 = vpop.trf.xlu0
  %v3994 = vsel %vm1024, %v3977, 0
  %v3997 = vsel %vm598, %v3953, 0
  %3999 = vmatpush.msra.mxu0 0.0
  %4000 = vmatpush.msra.mxu0 0.0
  %4001 = vmatpush.msra.mxu0 0.0
  %4002 = vmatpush.msra.mxu0 0.0
  %4003 = vmatpush.msra.mxu0 0.0
  %4004 = vmatpush.msra.mxu0 0.0
  %4005 = vmatpush.msra.mxu0 0.0
  %4006 = vmatpush.msra.mxu0 0.0
  %4007 = vmatpush.msra.mxu0 0.0
  %4008 = vmatpush.msra.mxu0 0.0
  %4009 = vmatpush.msra.mxu0 %v3997
  %4010 = vmatpush.msra.mxu0 %v3952
  %4011 = vmatpush.msra.mxu0 %v3951
  %4012 = vmatpush.msra.mxu0 %v3950
  %4013 = vmatpush.msra.mxu0 %v3949
  %4014 = vmatpush.msra.mxu0 %v3948
  %4015 = vmatmul.f32.gmra.mxu0 %v3994
  %v4016 = vpop.f32.mrf.mxu0
  %v4017 = vadd.f32 0.0, %v4016
  %4018 = vdwg.mxu0
  %s4019 = scalar_lea.vmem %s4, 4
  %4020 = vst [vmem:[%s4019] sm:$0x7] %v4017
  // Predicated region
  $region21: #{cage_skinning_forward.1} parent=0 // pred_check
    _
  $region22: #{cage_skinning_forward.1} parent=0 // pred_check_branch
    %4022 = sbr.rel (0) target = $region24
  $region23: #{cage_skinning_forward.1} parent=0 // pred_region
    _
  $region24: #{cage_skinning_forward.1} parent=0 // pred_fallthru
    _
  // Predicated region
  $region25: #{cage_skinning_forward.1} parent=0 // pred_check
    _
  $region26: #{cage_skinning_forward.1} parent=0 // pred_check_branch
    %4024 = sbr.rel (0) target = $region28
  $region27: #{cage_skinning_forward.1} parent=0 // pred_region
    _
  $region28: #{cage_skinning_forward.1} parent=0 // pred_fallthru
    _
  // Predicated region
  $region29: #{cage_skinning_forward.1} parent=0 // pred_check
    _
  $region30: #{cage_skinning_forward.1} parent=0 // pred_check_branch
    %4026 = sbr.rel (0) target = $region32
  $region31: #{cage_skinning_forward.1} parent=0 // pred_region
    _
  $region32: #{cage_skinning_forward.1} parent=0 // pred_fallthru
    _
  // Predicated region
  $region33: #{cage_skinning_forward.1} parent=0 // pred_check
    _
  $region34: #{cage_skinning_forward.1} parent=0 // pred_check_branch
    %4028 = sbr.rel (0) target = $region36
  $region35: #{cage_skinning_forward.1} parent=0 // pred_region
    _
  $region36: #{cage_skinning_forward.1} parent=0 // pred_fallthru
    _
  // Predicated region
  $region37: #{cage_skinning_forward.1} parent=0 // pred_check
    _
  $region38: #{cage_skinning_forward.1} parent=0 // pred_check_branch
    %4030 = sbr.rel (0) target = $region40
  $region39: #{cage_skinning_forward.1} parent=0 // pred_region
    _
  $region40: #{cage_skinning_forward.1} parent=0 // pred_fallthru
    _
  // Predicated region
  $region41: #{cage_skinning_forward.1} parent=0 // pred_check
    _
  $region42: #{cage_skinning_forward.1} parent=0 // pred_check_branch
    %4032 = sbr.rel (0) target = $region44
  $region43: #{cage_skinning_forward.1} parent=0 // pred_region
    _
  $region44: #{cage_skinning_forward.1} parent=0 // pred_fallthru
    _

</llo_original>
